<compile_context>
chip_gen: v7x
topology: tpu7x:2x2x1
jax: 0.10.0
libtpu: 0.0.40
codegen_flags: <defaults>
</compile_context>

<pallas_src>
import functools

import jax
import jax.numpy as jnp
from jax import lax
from jax.experimental import pallas as pl
from jax.experimental.pallas import tpu as pltpu


def _round_up(v, m):
    return (v + m - 1) // m * m


def _pick_cin_tile(cin):
    for t in (512, 256, 128):
        if cin % t == 0:
            return t
    return cin


def _make_kernel(H, W, HW_pad, pad_l, L, Cout_pad, tap_offsets, chunk):
    """Stacked-tap dilated-conv-sum kernel over grid (batch, cin-tile)."""

    def kernel(x_ref, w_ref, rc_ref, b_ref, o_ref, xpad_ref, y_ref):
        # x_ref   : (1, TCin, HW_pad)        bf16  activation tile (flat spatial)
        # w_ref   : (T*Cout_pad, TCin)       bf16  stacked per-tap weights
        # rc_ref  : (2, HW_pad)              i32   row / col index per flat pos
        # b_ref   : (Cout_pad, 1)            f32   branch-summed bias (zero-padded)
        # o_ref   : (1, Cout_pad, HW_pad)    f32   output block
        # xpad_ref: (TCin, L)                bf16  halo'd flat slab (never zeroed)
        # y_ref   : (T*Cout_pad, L)          f32   stacked matmul accumulator
        c = pl.program_id(1)
        nc = pl.num_programs(1)

        # Lane-aligned dense fill of the slab interior (pad_l % 128 == 0).
        xpad_ref[:, pad_l:pad_l + HW_pad] = x_ref[0]

        # ONE stacked MXU matmul: (T*Cout_pad, TCin) x (TCin, L), f32 accumulate.
        contrib = jnp.dot(w_ref[...], xpad_ref[...],
                          preferred_element_type=jnp.float32)

        @pl.when(c == 0)
        def _():
            y_ref[...] = contrib

        @pl.when(c != 0)
        def _():
            y_ref[...] += contrib

        # Epilogue (last Cin tile only): cheap VPU shifted-add combine of the T
        # taps with row/col validity masks; chunked so the live accumulator is
        # a handful of vregs; output store is lane-dense and sublane-aligned.
        @pl.when(c == nc - 1)
        def _():
            for s in range(0, HW_pad, chunk):
                e = min(s + chunk, HW_pad)
                row_c = rc_ref[0:1, s:e]
                col_c = rc_ref[1:2, s:e]
                acc = jnp.zeros((Cout_pad, e - s), jnp.float32)
                for t, (dh, dw) in enumerate(tap_offsets):
                    off = dh * W + dw
                    y_t = y_ref[t * Cout_pad:(t + 1) * Cout_pad,
                                pad_l + off + s:pad_l + off + e]
                    conds = []
                    if dw > 0:
                        conds.append(col_c < (W - dw))
                    elif dw < 0:
                        conds.append(col_c >= (-dw))
                    if dh > 0:
                        conds.append(row_c < (H - dh))
                    elif dh < 0:
                        conds.append(row_c >= (-dh))
                    if conds:
                        m = functools.reduce(jnp.logical_and, conds)
                        y_t = jnp.where(m, y_t, 0.0)   # select: halo garbage dropped
                    acc = acc + y_t
                o_ref[0, :, s:e] = (acc + b_ref[...]).astype(o_ref.dtype)

    return kernel


def classifier_module_forward(x_nchw, weights, biases, dilations):
    """Pallas equivalent of Classifier_Module.forward.

    x_nchw : (N, Cin, H, W) float32
    weights: (B, 3, 3, Cin, Cout) float32   (B = number of dilated branches)
    biases : (B, Cout) float32
    """
    N, Cin, H, W = x_nchw.shape
    Cout = weights.shape[-1]
    HW = H * W
    max_d = max(dilations)

    HW_pad = _round_up(HW, 128)                  # lane-dense spatial axis
    Cout_pad = _round_up(Cout, 8)                # sublane-aligned tap blocks
    pad_l = _round_up(max_d * W + max_d, 128)    # aligned left halo (>= max shift)
    L = pad_l + HW_pad + pad_l                   # halo'd flat slab length
    TCin = _pick_cin_tile(Cin)
    NC = Cin // TCin
    CHUNK = 512                                  # combine tile (acc <= ~4 KB*4 vregs)

    # Group taps of every branch by (dh, dw); pre-sum shared offsets in f32
    # (centre-tap dedup) and stack everything into one (T*Cout_pad, Cin) matrix.
    groups = {}
    for b, d in enumerate(dilations):
        for i in range(3):
            for j in range(3):
                groups.setdefault(((i - 1) * d, (j - 1) * d), []).append((b, i, j))
    tap_offsets = tuple(sorted(groups.keys()))
    T = len(tap_offsets)
    w_rows = []
    for off in tap_offsets:
        w_t = sum(weights[b, i, j] for (b, i, j) in groups[off]).T   # (Cout, Cin) f32
        w_rows.append(jnp.pad(w_t, ((0, Cout_pad - Cout), (0, 0))))
    w_all = jnp.concatenate(w_rows, axis=0).astype(jnp.bfloat16)     # (T*Cout_pad, Cin)
    Mpad = T * Cout_pad

    bsum = jnp.pad(jnp.sum(biases, axis=0), (0, Cout_pad - Cout))
    bsum = bsum.reshape(Cout_pad, 1).astype(jnp.float32)

    q = jnp.arange(HW_pad, dtype=jnp.int32)
    rc = jnp.stack([q // W, q % W]).astype(jnp.int32)                # (2, HW_pad)

    # bf16 activations, flat spatial axis zero-padded to a 128-lane multiple.
    x_flat = x_nchw.reshape(N, Cin, HW).astype(jnp.bfloat16)
    x_flat = jnp.pad(x_flat, ((0, 0), (0, 0), (0, HW_pad - HW)))

    kernel = _make_kernel(H, W, HW_pad, pad_l, L, Cout_pad, tap_offsets, CHUNK)

    # VMEM budget: double-buffered pipeline blocks + scratch, with headroom.
    need = (2 * (TCin * HW_pad * 2 + Mpad * TCin * 2 + Cout_pad * HW_pad * 4
                 + 2 * HW_pad * 4 + Cout_pad * 4)
            + TCin * L * 2 + Mpad * L * 4)
    vmem_limit = int(min(100 * 2 ** 20, max(32 * 2 ** 20, 2 * need)))

    cost = pl.CostEstimate(
        flops=int(2 * N * NC * Mpad * TCin * L),
        transcendentals=0,
        bytes_accessed=int(x_flat.size * 2 + N * NC * w_all.size * 2
                           + N * Cout_pad * HW_pad * 4),
    )

    out_full = pl.pallas_call(
        kernel,
        out_shape=jax.ShapeDtypeStruct((N, Cout_pad, HW_pad), jnp.float32),
        grid=(N, NC),
        in_specs=[
            pl.BlockSpec((1, TCin, HW_pad), lambda n, c: (n, c, 0)),
            pl.BlockSpec((Mpad, TCin), lambda n, c: (0, c)),
            pl.BlockSpec((2, HW_pad), lambda n, c: (0, 0)),
            pl.BlockSpec((Cout_pad, 1), lambda n, c: (0, 0)),
        ],
        out_specs=pl.BlockSpec((1, Cout_pad, HW_pad), lambda n, c: (n, 0, 0)),
        scratch_shapes=[
            pltpu.VMEM((TCin, L), jnp.bfloat16),   # halo'd flat activation slab
            pltpu.VMEM((Mpad, L), jnp.float32),    # stacked matmul accumulator
        ],
        compiler_params=pltpu.CompilerParams(
            dimension_semantics=("parallel", "arbitrary"),
            vmem_limit_bytes=vmem_limit),
        cost_estimate=cost,
    )(x_flat, w_all, rc, bsum)

    # Free reshape / slice back to NCHW, dropping the Cout / HW padding.
    return out_full[:, :Cout, :HW].reshape(N, Cout, H, W)


def reference_forward(x_nchw, weights, biases, dilations):
    """Plain-JAX reference (lax.conv) matching the PyTorch module semantics."""
    out = None
    for b, d in enumerate(dilations):
        w_oihw = jnp.transpose(weights[b], (3, 2, 0, 1))             # (Cout,Cin,3,3)
        y = lax.conv_general_dilated(
            x_nchw, w_oihw, window_strides=(1, 1),
            padding=((d, d), (d, d)), rhs_dilation=(d, d),
            dimension_numbers=("NCHW", "OIHW", "NCHW"))
        y = y + biases[b][None, :, None, None]
        out = y if out is None else out + y
    return out


if __name__ == "__main__":
    # Classifier_Module(dilation_series, padding_series, NoLabels, input_channel)
    dilations = [1, 2, 3, 4]      # padding_series == dilation_series (ASPP convention)
    NoLabels = 3
    input_channel = 4
    N, H, W = 2, 16, 16
    B = len(dilations)

    key = jax.random.PRNGKey(0)
    kx, kw, kb = jax.random.split(key, 3)

    x = jax.random.normal(kx, (N, input_channel, H, W), dtype=jnp.float32)
    # m.weight.data.normal_(0, 0.01); bias left at PyTorch default (small uniform).
    weights = 0.01 * jax.random.normal(
        kw, (B, 3, 3, input_channel, NoLabels), dtype=jnp.float32)
    fan_in = input_channel * 3 * 3
    bound = 1.0 / (fan_in ** 0.5)
    biases = jax.random.uniform(
        kb, (B, NoLabels), dtype=jnp.float32, minval=-bound, maxval=bound)

    out = classifier_module_forward(x, weights, biases, dilations)
    jax.block_until_ready(out)

    ref = reference_forward(x, weights, biases, dilations)
    assert out.shape == (N, NoLabels, H, W)
    # bf16 MXU operands with f32 accumulation -> compare with bf16 tolerance.
    assert jnp.allclose(out, ref, atol=1e-2, rtol=5e-2), "mismatch vs reference"

    print("KERNEL_OK")
</pallas_src>

<mosaic_0001>
module attributes {stable_mosaic.version = 11 : i64} {
  func.func @kernel(%arg0: i32, %arg1: i32, %arg2: memref<1x4x256xbf16, #tpu.memory_space<vmem>>, %arg3: memref<264x4xbf16, #tpu.memory_space<vmem>>, %arg4: memref<2x256xi32, #tpu.memory_space<vmem>>, %arg5: memref<8x1xf32, #tpu.memory_space<vmem>>, %arg6: memref<1x8x256xf32, #tpu.memory_space<vmem>>, %arg7: memref<4x512xbf16, #tpu.memory_space<vmem>>, %arg8: memref<264x512xf32, #tpu.memory_space<vmem>>) attributes {dimension_semantics = [#tpu.dimension_semantics<parallel>, #tpu.dimension_semantics<arbitrary>], iteration_bounds = array<i64: 2, 1>, scalar_prefetch = 0 : i64, scratch_operands = 2 : i64, tpu.core_type = #tpu.core_type<tc>, window_params = [{transform_indices = @transform_0, window_bounds = array<i64: 1, 4, 256>}, {transform_indices = @transform_1, window_bounds = array<i64: 264, 4>}, {pipeline_mode = #tpu.pipeline_mode<synchronous>, transform_indices = @transform_2, window_bounds = array<i64: 2, 256>}, {pipeline_mode = #tpu.pipeline_mode<synchronous>, transform_indices = @transform_3, window_bounds = array<i64: 8, 1>}, {transform_indices = @transform_4, window_bounds = array<i64: 1, 8, 256>}]} {
    %c0 = arith.constant 0 : index
    %c0_0 = arith.constant 0 : index
    %c0_1 = arith.constant 0 : index
    %0 = vector.load %arg2[%c0, %c0_0, %c0_1] : memref<1x4x256xbf16, #tpu.memory_space<vmem>>, vector<1x4x256xbf16>
    %1 = vector.shape_cast %0 : vector<1x4x256xbf16> to vector<4x256xbf16>
    %c0_2 = arith.constant 0 : index
    %c128 = arith.constant 128 : index
    %2 = vector.load %arg7[%c0_2, %c128] : memref<4x512xbf16, #tpu.memory_space<vmem>>, vector<4x256xbf16>
    tpu.vector_store %arg7[%c0_2, %c128], %1 {strides = array<i32>} : memref<4x512xbf16, #tpu.memory_space<vmem>>, vector<4x256xbf16>,
    %c0_3 = arith.constant 0 : index
    %c0_4 = arith.constant 0 : index
    %3 = vector.load %arg3[%c0_3, %c0_4] : memref<264x4xbf16, #tpu.memory_space<vmem>>, vector<264x4xbf16>
    %c0_5 = arith.constant 0 : index
    %c0_6 = arith.constant 0 : index
    %4 = vector.load %arg7[%c0_5, %c0_6] : memref<4x512xbf16, #tpu.memory_space<vmem>>, vector<4x512xbf16>
    %cst = arith.constant dense<0.000000e+00> : vector<264x512xf32>
    %5 = tpu.matmul %3, %4, %cst {dimension_numbers = #tpu.dot_dimension_numbers<[1], [0], [0], [1], [0, 0, 1, 1], [], []>} : vector<264x4xbf16>, vector<4x512xbf16>, vector<264x512xf32> -> vector<264x512xf32>
    %c0_i32 = arith.constant 0 : i32
    %6 = arith.cmpi eq, %arg1, %c0_i32 : i32
    %7 = arith.extui %6 : i1 to i32
    %c0_i32_7 = arith.constant 0 : i32
    %8 = arith.cmpi ne, %7, %c0_i32_7 : i32
    scf.if %8 {
      %c0_12 = arith.constant 0 : index
      %c0_13 = arith.constant 0 : index
      %15 = vector.load %arg8[%c0_12, %c0_13] : memref<264x512xf32, #tpu.memory_space<vmem>>, vector<264x512xf32>
      tpu.vector_store %arg8[%c0_12, %c0_13], %5 {strides = array<i32>} : memref<264x512xf32, #tpu.memory_space<vmem>>, vector<264x512xf32>,
    } else {
    }
    %c0_i32_8 = arith.constant 0 : i32
    %9 = arith.cmpi ne, %arg1, %c0_i32_8 : i32
    %10 = arith.extui %9 : i1 to i32
    %c0_i32_9 = arith.constant 0 : i32
    %11 = arith.cmpi ne, %10, %c0_i32_9 : i32
    scf.if %11 {
      %c0_12 = arith.constant 0 : index
      %c0_13 = arith.constant 0 : index
      %15 = vector.load %arg8[%c0_12, %c0_13] : memref<264x512xf32, #tpu.memory_space<vmem>>, vector<264x512xf32>
      %16 = arith.addf %15, %5 : vector<264x512xf32>
      %c0_14 = arith.constant 0 : index
      %c0_15 = arith.constant 0 : index
      %17 = vector.load %arg8[%c0_14, %c0_15] : memref<264x512xf32, #tpu.memory_space<vmem>>, vector<264x512xf32>
      tpu.vector_store %arg8[%c0_14, %c0_15], %16 {strides = array<i32>} : memref<264x512xf32, #tpu.memory_space<vmem>>, vector<264x512xf32>,
    } else {
    }
    %c0_i32_10 = arith.constant 0 : i32
    %12 = arith.cmpi eq, %arg1, %c0_i32_10 : i32
    %13 = arith.extui %12 : i1 to i32
    %c0_i32_11 = arith.constant 0 : i32
    %14 = arith.cmpi ne, %13, %c0_i32_11 : i32
    scf.if %14 {
      %c0_12 = arith.constant 0 : index
      %c0_13 = arith.constant 0 : index
      %15 = vector.load %arg4[%c0_12, %c0_13] : memref<2x256xi32, #tpu.memory_space<vmem>>, vector<1x256xi32>
      %c1 = arith.constant 1 : index
      %c0_14 = arith.constant 0 : index
      %16 = vector.load %arg4[%c1, %c0_14] : memref<2x256xi32, #tpu.memory_space<vmem>>, vector<1x256xi32>
      %cst_15 = arith.constant 0.000000e+00 : f32
      %17 = vector.broadcast %cst_15 : f32 to vector<8x256xf32>
      %c0_16 = arith.constant 0 : index
      %c60 = arith.constant 60 : index
      %18 = vector.load %arg8[%c0_16, %c60] : memref<264x512xf32, #tpu.memory_space<vmem>>, vector<8x256xf32>
      %c4_i32 = arith.constant 4 : i32
      %19 = vector.broadcast %c4_i32 : i32 to vector<1x256xi32>
      %20 = arith.cmpi sge, %16, %19 : vector<1x256xi32>
      %c4_i32_17 = arith.constant 4 : i32
      %21 = vector.broadcast %c4_i32_17 : i32 to vector<1x256xi32>
      %22 = arith.cmpi sge, %15, %21 : vector<1x256xi32>
      %23 = arith.andi %20, %22 : vector<1x256xi1>
      %cst_18 = arith.constant 0.000000e+00 : f32
      %24 = vector.shape_cast %23 : vector<1x256xi1> to vector<1x256xi1>
      %25 = vector.broadcast %24 : vector<1x256xi1> to vector<8x256xi1>
      %26 = vector.broadcast %cst_18 : f32 to vector<8x256xf32>
      %27 = arith.select %25, %18, %26 : vector<8x256xi1>, vector<8x256xf32>
      %28 = arith.addf %17, %27 : vector<8x256xf32>
      %c8 = arith.constant 8 : index
      %c64 = arith.constant 64 : index
      %29 = vector.load %arg8[%c8, %c64] : memref<264x512xf32, #tpu.memory_space<vmem>>, vector<8x256xf32>
      %c4_i32_19 = arith.constant 4 : i32
      %30 = vector.broadcast %c4_i32_19 : i32 to vector<1x256xi32>
      %31 = arith.cmpi sge, %15, %30 : vector<1x256xi32>
      %cst_20 = arith.constant 0.000000e+00 : f32
      %32 = vector.shape_cast %31 : vector<1x256xi1> to vector<1x256xi1>
      %33 = vector.broadcast %32 : vector<1x256xi1> to vector<8x256xi1>
      %34 = vector.broadcast %cst_20 : f32 to vector<8x256xf32>
      %35 = arith.select %33, %29, %34 : vector<8x256xi1>, vector<8x256xf32>
      %36 = arith.addf %28, %35 : vector<8x256xf32>
      %c16 = arith.constant 16 : index
      %c68 = arith.constant 68 : index
      %37 = vector.load %arg8[%c16, %c68] : memref<264x512xf32, #tpu.memory_space<vmem>>, vector<8x256xf32>
      %c12_i32 = arith.constant 12 : i32
      %38 = vector.broadcast %c12_i32 : i32 to vector<1x256xi32>
      %39 = arith.cmpi slt, %16, %38 : vector<1x256xi32>
      %c4_i32_21 = arith.constant 4 : i32
      %40 = vector.broadcast %c4_i32_21 : i32 to vector<1x256xi32>
      %41 = arith.cmpi sge, %15, %40 : vector<1x256xi32>
      %42 = arith.andi %39, %41 : vector<1x256xi1>
      %cst_22 = arith.constant 0.000000e+00 : f32
      %43 = vector.shape_cast %42 : vector<1x256xi1> to vector<1x256xi1>
      %44 = vector.broadcast %43 : vector<1x256xi1> to vector<8x256xi1>
      %45 = vector.broadcast %cst_22 : f32 to vector<8x256xf32>
      %46 = arith.select %44, %37, %45 : vector<8x256xi1>, vector<8x256xf32>
      %47 = arith.addf %36, %46 : vector<8x256xf32>
      %c24 = arith.constant 24 : index
      %c77 = arith.constant 77 : index
      %48 = vector.load %arg8[%c24, %c77] : memref<264x512xf32, #tpu.memory_space<vmem>>, vector<8x256xf32>
      %c3_i32 = arith.constant 3 : i32
      %49 = vector.broadcast %c3_i32 : i32 to vector<1x256xi32>
      %50 = arith.cmpi sge, %16, %49 : vector<1x256xi32>
      %c3_i32_23 = arith.constant 3 : i32
      %51 = vector.broadcast %c3_i32_23 : i32 to vector<1x256xi32>
      %52 = arith.cmpi sge, %15, %51 : vector<1x256xi32>
      %53 = arith.andi %50, %52 : vector<1x256xi1>
      %cst_24 = arith.constant 0.000000e+00 : f32
      %54 = vector.shape_cast %53 : vector<1x256xi1> to vector<1x256xi1>
      %55 = vector.broadcast %54 : vector<1x256xi1> to vector<8x256xi1>
      %56 = vector.broadcast %cst_24 : f32 to vector<8x256xf32>
      %57 = arith.select %55, %48, %56 : vector<8x256xi1>, vector<8x256xf32>
      %58 = arith.addf %47, %57 : vector<8x256xf32>
      %c32 = arith.constant 32 : index
      %c80 = arith.constant 80 : index
      %59 = vector.load %arg8[%c32, %c80] : memref<264x512xf32, #tpu.memory_space<vmem>>, vector<8x256xf32>
      %c3_i32_25 = arith.constant 3 : i32
      %60 = vector.broadcast %c3_i32_25 : i32 to vector<1x256xi32>
      %61 = arith.cmpi sge, %15, %60 : vector<1x256xi32>
      %cst_26 = arith.constant 0.000000e+00 : f32
      %62 = vector.shape_cast %61 : vector<1x256xi1> to vector<1x256xi1>
      %63 = vector.broadcast %62 : vector<1x256xi1> to vector<8x256xi1>
      %64 = vector.broadcast %cst_26 : f32 to vector<8x256xf32>
      %65 = arith.select %63, %59, %64 : vector<8x256xi1>, vector<8x256xf32>
      %66 = arith.addf %58, %65 : vector<8x256xf32>
      %c40 = arith.constant 40 : index
      %c83 = arith.constant 83 : index
      %67 = vector.load %arg8[%c40, %c83] : memref<264x512xf32, #tpu.memory_space<vmem>>, vector<8x256xf32>
      %c13_i32 = arith.constant 13 : i32
      %68 = vector.broadcast %c13_i32 : i32 to vector<1x256xi32>
      %69 = arith.cmpi slt, %16, %68 : vector<1x256xi32>
      %c3_i32_27 = arith.constant 3 : i32
      %70 = vector.broadcast %c3_i32_27 : i32 to vector<1x256xi32>
      %71 = arith.cmpi sge, %15, %70 : vector<1x256xi32>
      %72 = arith.andi %69, %71 : vector<1x256xi1>
      %cst_28 = arith.constant 0.000000e+00 : f32
      %73 = vector.shape_cast %72 : vector<1x256xi1> to vector<1x256xi1>
      %74 = vector.broadcast %73 : vector<1x256xi1> to vector<8x256xi1>
      %75 = vector.broadcast %cst_28 : f32 to vector<8x256xf32>
      %76 = arith.select %74, %67, %75 : vector<8x256xi1>, vector<8x256xf32>
      %77 = arith.addf %66, %76 : vector<8x256xf32>
      %c48 = arith.constant 48 : index
      %c94 = arith.constant 94 : index
      %78 = vector.load %arg8[%c48, %c94] : memref<264x512xf32, #tpu.memory_space<vmem>>, vector<8x256xf32>
      %c2_i32 = arith.constant 2 : i32
      %79 = vector.broadcast %c2_i32 : i32 to vector<1x256xi32>
      %80 = arith.cmpi sge, %16, %79 : vector<1x256xi32>
      %c2_i32_29 = arith.constant 2 : i32
      %81 = vector.broadcast %c2_i32_29 : i32 to vector<1x256xi32>
      %82 = arith.cmpi sge, %15, %81 : vector<1x256xi32>
      %83 = arith.andi %80, %82 : vector<1x256xi1>
      %cst_30 = arith.constant 0.000000e+00 : f32
      %84 = vector.shape_cast %83 : vector<1x256xi1> to vector<1x256xi1>
      %85 = vector.broadcast %84 : vector<1x256xi1> to vector<8x256xi1>
      %86 = vector.broadcast %cst_30 : f32 to vector<8x256xf32>
      %87 = arith.select %85, %78, %86 : vector<8x256xi1>, vector<8x256xf32>
      %88 = arith.addf %77, %87 : vector<8x256xf32>
      %c56 = arith.constant 56 : index
      %c96 = arith.constant 96 : index
      %89 = vector.load %arg8[%c56, %c96] : memref<264x512xf32, #tpu.memory_space<vmem>>, vector<8x256xf32>
      %c2_i32_31 = arith.constant 2 : i32
      %90 = vector.broadcast %c2_i32_31 : i32 to vector<1x256xi32>
      %91 = arith.cmpi sge, %15, %90 : vector<1x256xi32>
      %cst_32 = arith.constant 0.000000e+00 : f32
      %92 = vector.shape_cast %91 : vector<1x256xi1> to vector<1x256xi1>
      %93 = vector.broadcast %92 : vector<1x256xi1> to vector<8x256xi1>
      %94 = vector.broadcast %cst_32 : f32 to vector<8x256xf32>
      %95 = arith.select %93, %89, %94 : vector<8x256xi1>, vector<8x256xf32>
      %96 = arith.addf %88, %95 : vector<8x256xf32>
      %c64_33 = arith.constant 64 : index
      %c98 = arith.constant 98 : index
      %97 = vector.load %arg8[%c64_33, %c98] : memref<264x512xf32, #tpu.memory_space<vmem>>, vector<8x256xf32>
      %c14_i32 = arith.constant 14 : i32
      %98 = vector.broadcast %c14_i32 : i32 to vector<1x256xi32>
      %99 = arith.cmpi slt, %16, %98 : vector<1x256xi32>
      %c2_i32_34 = arith.constant 2 : i32
      %100 = vector.broadcast %c2_i32_34 : i32 to vector<1x256xi32>
      %101 = arith.cmpi sge, %15, %100 : vector<1x256xi32>
      %102 = arith.andi %99, %101 : vector<1x256xi1>
      %cst_35 = arith.constant 0.000000e+00 : f32
      %103 = vector.shape_cast %102 : vector<1x256xi1> to vector<1x256xi1>
      %104 = vector.broadcast %103 : vector<1x256xi1> to vector<8x256xi1>
      %105 = vector.broadcast %cst_35 : f32 to vector<8x256xf32>
      %106 = arith.select %104, %97, %105 : vector<8x256xi1>, vector<8x256xf32>
      %107 = arith.addf %96, %106 : vector<8x256xf32>
      %c72 = arith.constant 72 : index
      %c111 = arith.constant 111 : index
      %108 = vector.load %arg8[%c72, %c111] : memref<264x512xf32, #tpu.memory_space<vmem>>, vector<8x256xf32>
      %c1_i32 = arith.constant 1 : i32
      %109 = vector.broadcast %c1_i32 : i32 to vector<1x256xi32>
      %110 = arith.cmpi sge, %16, %109 : vector<1x256xi32>
      %c1_i32_36 = arith.constant 1 : i32
      %111 = vector.broadcast %c1_i32_36 : i32 to vector<1x256xi32>
      %112 = arith.cmpi sge, %15, %111 : vector<1x256xi32>
      %113 = arith.andi %110, %112 : vector<1x256xi1>
      %cst_37 = arith.constant 0.000000e+00 : f32
      %114 = vector.shape_cast %113 : vector<1x256xi1> to vector<1x256xi1>
      %115 = vector.broadcast %114 : vector<1x256xi1> to vector<8x256xi1>
      %116 = vector.broadcast %cst_37 : f32 to vector<8x256xf32>
      %117 = arith.select %115, %108, %116 : vector<8x256xi1>, vector<8x256xf32>
      %118 = arith.addf %107, %117 : vector<8x256xf32>
      %c80_38 = arith.constant 80 : index
      %c112 = arith.constant 112 : index
      %119 = vector.load %arg8[%c80_38, %c112] : memref<264x512xf32, #tpu.memory_space<vmem>>, vector<8x256xf32>
      %c1_i32_39 = arith.constant 1 : i32
      %120 = vector.broadcast %c1_i32_39 : i32 to vector<1x256xi32>
      %121 = arith.cmpi sge, %15, %120 : vector<1x256xi32>
      %cst_40 = arith.constant 0.000000e+00 : f32
      %122 = vector.shape_cast %121 : vector<1x256xi1> to vector<1x256xi1>
      %123 = vector.broadcast %122 : vector<1x256xi1> to vector<8x256xi1>
      %124 = vector.broadcast %cst_40 : f32 to vector<8x256xf32>
      %125 = arith.select %123, %119, %124 : vector<8x256xi1>, vector<8x256xf32>
      %126 = arith.addf %118, %125 : vector<8x256xf32>
      %c88 = arith.constant 88 : index
      %c113 = arith.constant 113 : index
      %127 = vector.load %arg8[%c88, %c113] : memref<264x512xf32, #tpu.memory_space<vmem>>, vector<8x256xf32>
      %c15_i32 = arith.constant 15 : i32
      %128 = vector.broadcast %c15_i32 : i32 to vector<1x256xi32>
      %129 = arith.cmpi slt, %16, %128 : vector<1x256xi32>
      %c1_i32_41 = arith.constant 1 : i32
      %130 = vector.broadcast %c1_i32_41 : i32 to vector<1x256xi32>
      %131 = arith.cmpi sge, %15, %130 : vector<1x256xi32>
      %132 = arith.andi %129, %131 : vector<1x256xi1>
      %cst_42 = arith.constant 0.000000e+00 : f32
      %133 = vector.shape_cast %132 : vector<1x256xi1> to vector<1x256xi1>
      %134 = vector.broadcast %133 : vector<1x256xi1> to vector<8x256xi1>
      %135 = vector.broadcast %cst_42 : f32 to vector<8x256xf32>
      %136 = arith.select %134, %127, %135 : vector<8x256xi1>, vector<8x256xf32>
      %137 = arith.addf %126, %136 : vector<8x256xf32>
      %c96_43 = arith.constant 96 : index
      %c124 = arith.constant 124 : index
      %138 = vector.load %arg8[%c96_43, %c124] : memref<264x512xf32, #tpu.memory_space<vmem>>, vector<8x256xf32>
      %c4_i32_44 = arith.constant 4 : i32
      %139 = vector.broadcast %c4_i32_44 : i32 to vector<1x256xi32>
      %140 = arith.cmpi sge, %16, %139 : vector<1x256xi32>
      %cst_45 = arith.constant 0.000000e+00 : f32
      %141 = vector.shape_cast %140 : vector<1x256xi1> to vector<1x256xi1>
      %142 = vector.broadcast %141 : vector<1x256xi1> to vector<8x256xi1>
      %143 = vector.broadcast %cst_45 : f32 to vector<8x256xf32>
      %144 = arith.select %142, %138, %143 : vector<8x256xi1>, vector<8x256xf32>
      %145 = arith.addf %137, %144 : vector<8x256xf32>
      %c104 = arith.constant 104 : index
      %c125 = arith.constant 125 : index
      %146 = vector.load %arg8[%c104, %c125] : memref<264x512xf32, #tpu.memory_space<vmem>>, vector<8x256xf32>
      %c3_i32_46 = arith.constant 3 : i32
      %147 = vector.broadcast %c3_i32_46 : i32 to vector<1x256xi32>
      %148 = arith.cmpi sge, %16, %147 : vector<1x256xi32>
      %cst_47 = arith.constant 0.000000e+00 : f32
      %149 = vector.shape_cast %148 : vector<1x256xi1> to vector<1x256xi1>
      %150 = vector.broadcast %149 : vector<1x256xi1> to vector<8x256xi1>
      %151 = vector.broadcast %cst_47 : f32 to vector<8x256xf32>
      %152 = arith.select %150, %146, %151 : vector<8x256xi1>, vector<8x256xf32>
      %153 = arith.addf %145, %152 : vector<8x256xf32>
      %c112_48 = arith.constant 112 : index
      %c126 = arith.constant 126 : index
      %154 = vector.load %arg8[%c112_48, %c126] : memref<264x512xf32, #tpu.memory_space<vmem>>, vector<8x256xf32>
      %c2_i32_49 = arith.constant 2 : i32
      %155 = vector.broadcast %c2_i32_49 : i32 to vector<1x256xi32>
      %156 = arith.cmpi sge, %16, %155 : vector<1x256xi32>
      %cst_50 = arith.constant 0.000000e+00 : f32
      %157 = vector.shape_cast %156 : vector<1x256xi1> to vector<1x256xi1>
      %158 = vector.broadcast %157 : vector<1x256xi1> to vector<8x256xi1>
      %159 = vector.broadcast %cst_50 : f32 to vector<8x256xf32>
      %160 = arith.select %158, %154, %159 : vector<8x256xi1>, vector<8x256xf32>
      %161 = arith.addf %153, %160 : vector<8x256xf32>
      %c120 = arith.constant 120 : index
      %c127 = arith.constant 127 : index
      %162 = vector.load %arg8[%c120, %c127] : memref<264x512xf32, #tpu.memory_space<vmem>>, vector<8x256xf32>
      %c1_i32_51 = arith.constant 1 : i32
      %163 = vector.broadcast %c1_i32_51 : i32 to vector<1x256xi32>
      %164 = arith.cmpi sge, %16, %163 : vector<1x256xi32>
      %cst_52 = arith.constant 0.000000e+00 : f32
      %165 = vector.shape_cast %164 : vector<1x256xi1> to vector<1x256xi1>
      %166 = vector.broadcast %165 : vector<1x256xi1> to vector<8x256xi1>
      %167 = vector.broadcast %cst_52 : f32 to vector<8x256xf32>
      %168 = arith.select %166, %162, %167 : vector<8x256xi1>, vector<8x256xf32>
      %169 = arith.addf %161, %168 : vector<8x256xf32>
      %c128_53 = arith.constant 128 : index
      %c128_54 = arith.constant 128 : index
      %170 = vector.load %arg8[%c128_53, %c128_54] : memref<264x512xf32, #tpu.memory_space<vmem>>, vector<8x256xf32>
      %171 = arith.addf %169, %170 : vector<8x256xf32>
      %c136 = arith.constant 136 : index
      %c129 = arith.constant 129 : index
      %172 = vector.load %arg8[%c136, %c129] : memref<264x512xf32, #tpu.memory_space<vmem>>, vector<8x256xf32>
      %c15_i32_55 = arith.constant 15 : i32
      %173 = vector.broadcast %c15_i32_55 : i32 to vector<1x256xi32>
      %174 = arith.cmpi slt, %16, %173 : vector<1x256xi32>
      %cst_56 = arith.constant 0.000000e+00 : f32
      %175 = vector.shape_cast %174 : vector<1x256xi1> to vector<1x256xi1>
      %176 = vector.broadcast %175 : vector<1x256xi1> to vector<8x256xi1>
      %177 = vector.broadcast %cst_56 : f32 to vector<8x256xf32>
      %178 = arith.select %176, %172, %177 : vector<8x256xi1>, vector<8x256xf32>
      %179 = arith.addf %171, %178 : vector<8x256xf32>
      %c144 = arith.constant 144 : index
      %c130 = arith.constant 130 : index
      %180 = vector.load %arg8[%c144, %c130] : memref<264x512xf32, #tpu.memory_space<vmem>>, vector<8x256xf32>
      %c14_i32_57 = arith.constant 14 : i32
      %181 = vector.broadcast %c14_i32_57 : i32 to vector<1x256xi32>
      %182 = arith.cmpi slt, %16, %181 : vector<1x256xi32>
      %cst_58 = arith.constant 0.000000e+00 : f32
      %183 = vector.shape_cast %182 : vector<1x256xi1> to vector<1x256xi1>
      %184 = vector.broadcast %183 : vector<1x256xi1> to vector<8x256xi1>
      %185 = vector.broadcast %cst_58 : f32 to vector<8x256xf32>
      %186 = arith.select %184, %180, %185 : vector<8x256xi1>, vector<8x256xf32>
      %187 = arith.addf %179, %186 : vector<8x256xf32>
      %c152 = arith.constant 152 : index
      %c131 = arith.constant 131 : index
      %188 = vector.load %arg8[%c152, %c131] : memref<264x512xf32, #tpu.memory_space<vmem>>, vector<8x256xf32>
      %c13_i32_59 = arith.constant 13 : i32
      %189 = vector.broadcast %c13_i32_59 : i32 to vector<1x256xi32>
      %190 = arith.cmpi slt, %16, %189 : vector<1x256xi32>
      %cst_60 = arith.constant 0.000000e+00 : f32
      %191 = vector.shape_cast %190 : vector<1x256xi1> to vector<1x256xi1>
      %192 = vector.broadcast %191 : vector<1x256xi1> to vector<8x256xi1>
      %193 = vector.broadcast %cst_60 : f32 to vector<8x256xf32>
      %194 = arith.select %192, %188, %193 : vector<8x256xi1>, vector<8x256xf32>
      %195 = arith.addf %187, %194 : vector<8x256xf32>
      %c160 = arith.constant 160 : index
      %c132 = arith.constant 132 : index
      %196 = vector.load %arg8[%c160, %c132] : memref<264x512xf32, #tpu.memory_space<vmem>>, vector<8x256xf32>
      %c12_i32_61 = arith.constant 12 : i32
      %197 = vector.broadcast %c12_i32_61 : i32 to vector<1x256xi32>
      %198 = arith.cmpi slt, %16, %197 : vector<1x256xi32>
      %cst_62 = arith.constant 0.000000e+00 : f32
      %199 = vector.shape_cast %198 : vector<1x256xi1> to vector<1x256xi1>
      %200 = vector.broadcast %199 : vector<1x256xi1> to vector<8x256xi1>
      %201 = vector.broadcast %cst_62 : f32 to vector<8x256xf32>
      %202 = arith.select %200, %196, %201 : vector<8x256xi1>, vector<8x256xf32>
      %203 = arith.addf %195, %202 : vector<8x256xf32>
      %c168 = arith.constant 168 : index
      %c143 = arith.constant 143 : index
      %204 = vector.load %arg8[%c168, %c143] : memref<264x512xf32, #tpu.memory_space<vmem>>, vector<8x256xf32>
      %c1_i32_63 = arith.constant 1 : i32
      %205 = vector.broadcast %c1_i32_63 : i32 to vector<1x256xi32>
      %206 = arith.cmpi sge, %16, %205 : vector<1x256xi32>
      %c15_i32_64 = arith.constant 15 : i32
      %207 = vector.broadcast %c15_i32_64 : i32 to vector<1x256xi32>
      %208 = arith.cmpi slt, %15, %207 : vector<1x256xi32>
      %209 = arith.andi %206, %208 : vector<1x256xi1>
      %cst_65 = arith.constant 0.000000e+00 : f32
      %210 = vector.shape_cast %209 : vector<1x256xi1> to vector<1x256xi1>
      %211 = vector.broadcast %210 : vector<1x256xi1> to vector<8x256xi1>
      %212 = vector.broadcast %cst_65 : f32 to vector<8x256xf32>
      %213 = arith.select %211, %204, %212 : vector<8x256xi1>, vector<8x256xf32>
      %214 = arith.addf %203, %213 : vector<8x256xf32>
      %c176 = arith.constant 176 : index
      %c144_66 = arith.constant 144 : index
      %215 = vector.load %arg8[%c176, %c144_66] : memref<264x512xf32, #tpu.memory_space<vmem>>, vector<8x256xf32>
      %c15_i32_67 = arith.constant 15 : i32
      %216 = vector.broadcast %c15_i32_67 : i32 to vector<1x256xi32>
      %217 = arith.cmpi slt, %15, %216 : vector<1x256xi32>
      %cst_68 = arith.constant 0.000000e+00 : f32
      %218 = vector.shape_cast %217 : vector<1x256xi1> to vector<1x256xi1>
      %219 = vector.broadcast %218 : vector<1x256xi1> to vector<8x256xi1>
      %220 = vector.broadcast %cst_68 : f32 to vector<8x256xf32>
      %221 = arith.select %219, %215, %220 : vector<8x256xi1>, vector<8x256xf32>
      %222 = arith.addf %214, %221 : vector<8x256xf32>
      %c184 = arith.constant 184 : index
      %c145 = arith.constant 145 : index
      %223 = vector.load %arg8[%c184, %c145] : memref<264x512xf32, #tpu.memory_space<vmem>>, vector<8x256xf32>
      %c15_i32_69 = arith.constant 15 : i32
      %224 = vector.broadcast %c15_i32_69 : i32 to vector<1x256xi32>
      %225 = arith.cmpi slt, %16, %224 : vector<1x256xi32>
      %c15_i32_70 = arith.constant 15 : i32
      %226 = vector.broadcast %c15_i32_70 : i32 to vector<1x256xi32>
      %227 = arith.cmpi slt, %15, %226 : vector<1x256xi32>
      %228 = arith.andi %225, %227 : vector<1x256xi1>
      %cst_71 = arith.constant 0.000000e+00 : f32
      %229 = vector.shape_cast %228 : vector<1x256xi1> to vector<1x256xi1>
      %230 = vector.broadcast %229 : vector<1x256xi1> to vector<8x256xi1>
      %231 = vector.broadcast %cst_71 : f32 to vector<8x256xf32>
      %232 = arith.select %230, %223, %231 : vector<8x256xi1>, vector<8x256xf32>
      %233 = arith.addf %222, %232 : vector<8x256xf32>
      %c192 = arith.constant 192 : index
      %c158 = arith.constant 158 : index
      %234 = vector.load %arg8[%c192, %c158] : memref<264x512xf32, #tpu.memory_space<vmem>>, vector<8x256xf32>
      %c2_i32_72 = arith.constant 2 : i32
      %235 = vector.broadcast %c2_i32_72 : i32 to vector<1x256xi32>
      %236 = arith.cmpi sge, %16, %235 : vector<1x256xi32>
      %c14_i32_73 = arith.constant 14 : i32
      %237 = vector.broadcast %c14_i32_73 : i32 to vector<1x256xi32>
      %238 = arith.cmpi slt, %15, %237 : vector<1x256xi32>
      %239 = arith.andi %236, %238 : vector<1x256xi1>
      %cst_74 = arith.constant 0.000000e+00 : f32
      %240 = vector.shape_cast %239 : vector<1x256xi1> to vector<1x256xi1>
      %241 = vector.broadcast %240 : vector<1x256xi1> to vector<8x256xi1>
      %242 = vector.broadcast %cst_74 : f32 to vector<8x256xf32>
      %243 = arith.select %241, %234, %242 : vector<8x256xi1>, vector<8x256xf32>
      %244 = arith.addf %233, %243 : vector<8x256xf32>
      %c200 = arith.constant 200 : index
      %c160_75 = arith.constant 160 : index
      %245 = vector.load %arg8[%c200, %c160_75] : memref<264x512xf32, #tpu.memory_space<vmem>>, vector<8x256xf32>
      %c14_i32_76 = arith.constant 14 : i32
      %246 = vector.broadcast %c14_i32_76 : i32 to vector<1x256xi32>
      %247 = arith.cmpi slt, %15, %246 : vector<1x256xi32>
      %cst_77 = arith.constant 0.000000e+00 : f32
      %248 = vector.shape_cast %247 : vector<1x256xi1> to vector<1x256xi1>
      %249 = vector.broadcast %248 : vector<1x256xi1> to vector<8x256xi1>
      %250 = vector.broadcast %cst_77 : f32 to vector<8x256xf32>
      %251 = arith.select %249, %245, %250 : vector<8x256xi1>, vector<8x256xf32>
      %252 = arith.addf %244, %251 : vector<8x256xf32>
      %c208 = arith.constant 208 : index
      %c162 = arith.constant 162 : index
      %253 = vector.load %arg8[%c208, %c162] : memref<264x512xf32, #tpu.memory_space<vmem>>, vector<8x256xf32>
      %c14_i32_78 = arith.constant 14 : i32
      %254 = vector.broadcast %c14_i32_78 : i32 to vector<1x256xi32>
      %255 = arith.cmpi slt, %16, %254 : vector<1x256xi32>
      %c14_i32_79 = arith.constant 14 : i32
      %256 = vector.broadcast %c14_i32_79 : i32 to vector<1x256xi32>
      %257 = arith.cmpi slt, %15, %256 : vector<1x256xi32>
      %258 = arith.andi %255, %257 : vector<1x256xi1>
      %cst_80 = arith.constant 0.000000e+00 : f32
      %259 = vector.shape_cast %258 : vector<1x256xi1> to vector<1x256xi1>
      %260 = vector.broadcast %259 : vector<1x256xi1> to vector<8x256xi1>
      %261 = vector.broadcast %cst_80 : f32 to vector<8x256xf32>
      %262 = arith.select %260, %253, %261 : vector<8x256xi1>, vector<8x256xf32>
      %263 = arith.addf %252, %262 : vector<8x256xf32>
      %c216 = arith.constant 216 : index
      %c173 = arith.constant 173 : index
      %264 = vector.load %arg8[%c216, %c173] : memref<264x512xf32, #tpu.memory_space<vmem>>, vector<8x256xf32>
      %c3_i32_81 = arith.constant 3 : i32
      %265 = vector.broadcast %c3_i32_81 : i32 to vector<1x256xi32>
      %266 = arith.cmpi sge, %16, %265 : vector<1x256xi32>
      %c13_i32_82 = arith.constant 13 : i32
      %267 = vector.broadcast %c13_i32_82 : i32 to vector<1x256xi32>
      %268 = arith.cmpi slt, %15, %267 : vector<1x256xi32>
      %269 = arith.andi %266, %268 : vector<1x256xi1>
      %cst_83 = arith.constant 0.000000e+00 : f32
      %270 = vector.shape_cast %269 : vector<1x256xi1> to vector<1x256xi1>
      %271 = vector.broadcast %270 : vector<1x256xi1> to vector<8x256xi1>
      %272 = vector.broadcast %cst_83 : f32 to vector<8x256xf32>
      %273 = arith.select %271, %264, %272 : vector<8x256xi1>, vector<8x256xf32>
      %274 = arith.addf %263, %273 : vector<8x256xf32>
      %c224 = arith.constant 224 : index
      %c176_84 = arith.constant 176 : index
      %275 = vector.load %arg8[%c224, %c176_84] : memref<264x512xf32, #tpu.memory_space<vmem>>, vector<8x256xf32>
      %c13_i32_85 = arith.constant 13 : i32
      %276 = vector.broadcast %c13_i32_85 : i32 to vector<1x256xi32>
      %277 = arith.cmpi slt, %15, %276 : vector<1x256xi32>
      %cst_86 = arith.constant 0.000000e+00 : f32
      %278 = vector.shape_cast %277 : vector<1x256xi1> to vector<1x256xi1>
      %279 = vector.broadcast %278 : vector<1x256xi1> to vector<8x256xi1>
      %280 = vector.broadcast %cst_86 : f32 to vector<8x256xf32>
      %281 = arith.select %279, %275, %280 : vector<8x256xi1>, vector<8x256xf32>
      %282 = arith.addf %274, %281 : vector<8x256xf32>
      %c232 = arith.constant 232 : index
      %c179 = arith.constant 179 : index
      %283 = vector.load %arg8[%c232, %c179] : memref<264x512xf32, #tpu.memory_space<vmem>>, vector<8x256xf32>
      %c13_i32_87 = arith.constant 13 : i32
      %284 = vector.broadcast %c13_i32_87 : i32 to vector<1x256xi32>
      %285 = arith.cmpi slt, %16, %284 : vector<1x256xi32>
      %c13_i32_88 = arith.constant 13 : i32
      %286 = vector.broadcast %c13_i32_88 : i32 to vector<1x256xi32>
      %287 = arith.cmpi slt, %15, %286 : vector<1x256xi32>
      %288 = arith.andi %285, %287 : vector<1x256xi1>
      %cst_89 = arith.constant 0.000000e+00 : f32
      %289 = vector.shape_cast %288 : vector<1x256xi1> to vector<1x256xi1>
      %290 = vector.broadcast %289 : vector<1x256xi1> to vector<8x256xi1>
      %291 = vector.broadcast %cst_89 : f32 to vector<8x256xf32>
      %292 = arith.select %290, %283, %291 : vector<8x256xi1>, vector<8x256xf32>
      %293 = arith.addf %282, %292 : vector<8x256xf32>
      %c240 = arith.constant 240 : index
      %c188 = arith.constant 188 : index
      %294 = vector.load %arg8[%c240, %c188] : memref<264x512xf32, #tpu.memory_space<vmem>>, vector<8x256xf32>
      %c4_i32_90 = arith.constant 4 : i32
      %295 = vector.broadcast %c4_i32_90 : i32 to vector<1x256xi32>
      %296 = arith.cmpi sge, %16, %295 : vector<1x256xi32>
      %c12_i32_91 = arith.constant 12 : i32
      %297 = vector.broadcast %c12_i32_91 : i32 to vector<1x256xi32>
      %298 = arith.cmpi slt, %15, %297 : vector<1x256xi32>
      %299 = arith.andi %296, %298 : vector<1x256xi1>
      %cst_92 = arith.constant 0.000000e+00 : f32
      %300 = vector.shape_cast %299 : vector<1x256xi1> to vector<1x256xi1>
      %301 = vector.broadcast %300 : vector<1x256xi1> to vector<8x256xi1>
      %302 = vector.broadcast %cst_92 : f32 to vector<8x256xf32>
      %303 = arith.select %301, %294, %302 : vector<8x256xi1>, vector<8x256xf32>
      %304 = arith.addf %293, %303 : vector<8x256xf32>
      %c248 = arith.constant 248 : index
      %c192_93 = arith.constant 192 : index
      %305 = vector.load %arg8[%c248, %c192_93] : memref<264x512xf32, #tpu.memory_space<vmem>>, vector<8x256xf32>
      %c12_i32_94 = arith.constant 12 : i32
      %306 = vector.broadcast %c12_i32_94 : i32 to vector<1x256xi32>
      %307 = arith.cmpi slt, %15, %306 : vector<1x256xi32>
      %cst_95 = arith.constant 0.000000e+00 : f32
      %308 = vector.shape_cast %307 : vector<1x256xi1> to vector<1x256xi1>
      %309 = vector.broadcast %308 : vector<1x256xi1> to vector<8x256xi1>
      %310 = vector.broadcast %cst_95 : f32 to vector<8x256xf32>
      %311 = arith.select %309, %305, %310 : vector<8x256xi1>, vector<8x256xf32>
      %312 = arith.addf %304, %311 : vector<8x256xf32>
      %c256 = arith.constant 256 : index
      %c196 = arith.constant 196 : index
      %313 = vector.load %arg8[%c256, %c196] : memref<264x512xf32, #tpu.memory_space<vmem>>, vector<8x256xf32>
      %c12_i32_96 = arith.constant 12 : i32
      %314 = vector.broadcast %c12_i32_96 : i32 to vector<1x256xi32>
      %315 = arith.cmpi slt, %16, %314 : vector<1x256xi32>
      %c12_i32_97 = arith.constant 12 : i32
      %316 = vector.broadcast %c12_i32_97 : i32 to vector<1x256xi32>
      %317 = arith.cmpi slt, %15, %316 : vector<1x256xi32>
      %318 = arith.andi %315, %317 : vector<1x256xi1>
      %cst_98 = arith.constant 0.000000e+00 : f32
      %319 = vector.shape_cast %318 : vector<1x256xi1> to vector<1x256xi1>
      %320 = vector.broadcast %319 : vector<1x256xi1> to vector<8x256xi1>
      %321 = vector.broadcast %cst_98 : f32 to vector<8x256xf32>
      %322 = arith.select %320, %313, %321 : vector<8x256xi1>, vector<8x256xf32>
      %323 = arith.addf %312, %322 : vector<8x256xf32>
      %c0_99 = arith.constant 0 : index
      %c0_100 = arith.constant 0 : index
      %324 = vector.load %arg5[%c0_99, %c0_100] : memref<8x1xf32, #tpu.memory_space<vmem>>, vector<8x1xf32>
      %325 = vector.broadcast %324 : vector<8x1xf32> to vector<8x256xf32>
      %326 = arith.addf %323, %325 : vector<8x256xf32>
      %c0_101 = arith.constant 0 : index
      %c0_102 = arith.constant 0 : index
      %c0_103 = arith.constant 0 : index
      %327 = vector.load %arg6[%c0_101, %c0_102, %c0_103] : memref<1x8x256xf32, #tpu.memory_space<vmem>>, vector<1x8x256xf32>
      %328 = vector.shape_cast %327 : vector<1x8x256xf32> to vector<8x256xf32>
      %329 = vector.shape_cast %326 : vector<8x256xf32> to vector<1x8x256xf32>
      tpu.vector_store %arg6[%c0_101, %c0_102, %c0_103], %329 {strides = array<i32>} : memref<1x8x256xf32, #tpu.memory_space<vmem>>, vector<1x8x256xf32>,
    } else {
    }
    return
  }
  func.func @transform_0(%arg0: i32, %arg1: i32) -> (i32, i32, i32) {
    %c0_i32 = arith.constant 0 : i32
    %c0_i32_0 = arith.constant 0 : i32
    return %arg0, %arg1, %c0_i32 : i32, i32, i32
  }
  func.func @transform_1(%arg0: i32, %arg1: i32) -> (i32, i32) {
    %c0_i32 = arith.constant 0 : i32
    %c0_i32_0 = arith.constant 0 : i32
    return %c0_i32, %arg1 : i32, i32
  }
  func.func @transform_2(%arg0: i32, %arg1: i32) -> (i32, i32) {
    %c0_i32 = arith.constant 0 : i32
    %c0_i32_0 = arith.constant 0 : i32
    %c0_i32_1 = arith.constant 0 : i32
    return %c0_i32, %c0_i32_0 : i32, i32
  }
  func.func @transform_3(%arg0: i32, %arg1: i32) -> (i32, i32) {
    %c0_i32 = arith.constant 0 : i32
    %c0_i32_0 = arith.constant 0 : i32
    %c0_i32_1 = arith.constant 0 : i32
    return %c0_i32, %c0_i32_0 : i32, i32
  }
  func.func @transform_4(%arg0: i32, %arg1: i32) -> (i32, i32, i32) {
    %c0_i32 = arith.constant 0 : i32
    %c0_i32_0 = arith.constant 0 : i32
    %c0_i32_1 = arith.constant 0 : i32
    return %arg0, %c0_i32, %c0_i32_0 : i32, i32, i32
  }
}

</mosaic_0001>

<llo_original>
// kernel: tpu_custom_call.1
$region0: #{tpu_custom_call.1}
  #allocation0 [shape = 'u32[]', space=smem, size = 0x4, offset = 0x4, fixed_abs, tag = 'smem constant byte address 0x4 - core index']
  #allocation1 [shape = 'u32[144,128]{1,0:T(1,128)}', space=vmem, size = 0x12000, scoped, tag = 'internal scratch']
  #allocation2 [shape = 'bf16[4,512]{1,0:T(4,128)(2,1)}', space=vmem, size = 0x1000, scoped, tag = 'scratch operand']
  #allocation3 [shape = 'f32[264,512]{1,0:T(8,128)}', space=vmem, size = 0x84000, scoped, tag = 'scratch operand']
  %s0 = inlined_call_operand.vmem [shape: bf16[2,4,256], index: 0, kind: input, shape index: {}]
  %s1 = inlined_call_operand.vmem [shape: bf16[264,4], index: 1, kind: input, shape index: {}]
  %s2 = inlined_call_operand.vmem [shape: s32[2,256], index: 2, kind: input, shape index: {}]
  %s3 = inlined_call_operand.vmem [shape: f32[8,1], index: 3, kind: input, shape index: {}]
  %s4 = inlined_call_operand.hbm [shape: f32[2,8,256], index: 4, kind: output, shape index: {}]
  %s5 = sld [smem:[#allocation0]]
  $region61: #{tpu_custom_call.1} parent=0
    _
  %s7 = ssub.s32 1, %s5
  %s8 = scalar_select 0, %s7, %s5
  $region1: #{tpu_custom_call.1} parent=0
    #allocation4 [shape = 'u8[16384]{0}', space=vmem, size = 0x4000, scoped, tag = 'output window, operand 0']
    #allocation5 [shape = 's32[2]{0}', space=sflag, size = 0x8, scoped, tag = 'scoped memory for tpu_custom_call.1']
    %9 = vsyncpa [#allocation5], 0
    %s10 = scalar_lea.sflag [#allocation5], 1
    %11 = vsyncpa %s10, 0
    loop: start=0, step=1, limit=4
    $region2: #{tpu_custom_call.1} parent=1 // loop_pre_header
      _
    $region3: #{tpu_custom_call.1} parent=1 // loop_header
      %s13 = sphi 0, %s17
      %p14 = scmp.ge.s32.totalorder %s13, 4
      %s20 = sphi 0, %s32
      %s21 = sphi 0, %s28
      %s22 = sphi 0, %s20
      %s23 = sphi 0, %s21
      %s24 = sphi 0, %s22
      %s25 = sphi 0, %s23
      %s37 = sphi 0, %s39
      %s40 = sphi 0, %s37
      %s41 = sphi 0, %s40
      %s57 = sphi 0, %s41
      %s63 = sphi 0, %s65
      %s66 = sphi 0, %s63
      %s67 = sphi 0, %s66
      %s83 = sphi 0, %s67
      %s87 = sphi 0, %s87
      %s89 = sphi 0, %s87
      %s90 = sphi 0, %s89
      %s104 = sphi 0, %s90
      %s108 = sphi 0, %s108
      %s110 = sphi 0, %s108
      %s111 = sphi 0, %s110
      %s125 = sphi 0, %s111
      %s131 = sphi 0, %s133
      %s134 = sphi 0, %s131
      %s135 = sphi 0, %s134
      %s151 = sphi 0, %s135
    $region4: #{tpu_custom_call.1} parent=1 // loop_header_branch
      %16 = sbr.rel (%p14) target = $region8
    $region5: #{tpu_custom_call.1} parent=1 // loop_body
      %s18 = ssub.s32 %s13, 1
      %s19 = ssub.s32 %s13, 2
      %s26 = sadd.s32 1, %s21
      %p27 = scmp.ge.s32.totalorder %s26, 1
      %s28 = scalar_select %p27, 0, %s26
      %s29 = sadd.s32 1, %s20
      %s30 = scalar_select %p27, %s29, %s20
      %p31 = scmp.ge.s32.totalorder %s30, 2
      %s32 = scalar_select %p31, 0, %s30
      %s33 = ssub.s32 %s20, %s32
      %s34 = ssub.s32 %s21, %s28
      %s35 = sor.u32 %s33, %s34
      %p36 = scmp.eq.s32.totalorder %s35, 0
      %s38 = sadd.s32 %s37, 1
      %s39 = scalar_select %p36, %s37, %s38
      %p42 = pneg %p36
      %p43 = scmp.eq.s32.totalorder %s13, 1
      %p44 = por %p42, %p43
      %p45 = scmp.ne.s32.totalorder %s37, %s40
      %p46 = scmp.eq.s32.totalorder %s13, 0
      %p47 = por %p45, %p46
      %p48 = scmp.ne.s32.totalorder %s37, %s40
      %p49 = scmp.eq.s32.totalorder %s18, 1
      %p50 = por %p48, %p49
      %p51 = scmp.ne.s32.totalorder %s40, %s41
      %p52 = scmp.eq.s32.totalorder %s18, 0
      %p53 = por %p51, %p52
      %p54 = scmp.ne.s32.totalorder %s40, %s41
      %p55 = scmp.eq.s32.totalorder %s19, 1
      %p56 = por %p54, %p55
      %p58 = scmp.ne.s32.totalorder %s41, %s57
      %p59 = scmp.eq.s32.totalorder %s19, 0
      %p60 = por %p58, %p59
      %s61 = ssub.s32 %s21, %s28
      %p62 = scmp.eq.s32.totalorder %s61, 0
      %s64 = sadd.s32 %s63, 1
      %s65 = scalar_select %p62, %s63, %s64
      %p68 = pneg %p62
      %p69 = scmp.eq.s32.totalorder %s13, 1
      %p70 = por %p68, %p69
      %p71 = scmp.ne.s32.totalorder %s63, %s66
      %p72 = scmp.eq.s32.totalorder %s13, 0
      %p73 = por %p71, %p72
      %p74 = scmp.ne.s32.totalorder %s63, %s66
      %p75 = scmp.eq.s32.totalorder %s18, 1
      %p76 = por %p74, %p75
      %p77 = scmp.ne.s32.totalorder %s66, %s67
      %p78 = scmp.eq.s32.totalorder %s18, 0
      %p79 = por %p77, %p78
      %p80 = scmp.ne.s32.totalorder %s66, %s67
      %p81 = scmp.eq.s32.totalorder %s19, 1
      %p82 = por %p80, %p81
      %p84 = scmp.ne.s32.totalorder %s67, %s83
      %p85 = scmp.eq.s32.totalorder %s19, 0
      %p86 = por %p84, %p85
      %s88 = sadd.s32 %s87, 1
      %p91 = scmp.eq.s32.totalorder %s13, 1
      %p92 = scmp.ne.s32.totalorder %s87, %s89
      %p93 = scmp.eq.s32.totalorder %s13, 0
      %p94 = por %p92, %p93
      %p95 = scmp.ne.s32.totalorder %s87, %s89
      %p96 = scmp.eq.s32.totalorder %s18, 1
      %p97 = por %p95, %p96
      %p98 = scmp.ne.s32.totalorder %s89, %s90
      %p99 = scmp.eq.s32.totalorder %s18, 0
      %p100 = por %p98, %p99
      %p101 = scmp.ne.s32.totalorder %s89, %s90
      %p102 = scmp.eq.s32.totalorder %s19, 1
      %p103 = por %p101, %p102
      %p105 = scmp.ne.s32.totalorder %s90, %s104
      %p106 = scmp.eq.s32.totalorder %s19, 0
      %p107 = por %p105, %p106
      %s109 = sadd.s32 %s108, 1
      %p112 = scmp.eq.s32.totalorder %s13, 1
      %p113 = scmp.ne.s32.totalorder %s108, %s110
      %p114 = scmp.eq.s32.totalorder %s13, 0
      %p115 = por %p113, %p114
      %p116 = scmp.ne.s32.totalorder %s108, %s110
      %p117 = scmp.eq.s32.totalorder %s18, 1
      %p118 = por %p116, %p117
      %p119 = scmp.ne.s32.totalorder %s110, %s111
      %p120 = scmp.eq.s32.totalorder %s18, 0
      %p121 = por %p119, %p120
      %p122 = scmp.ne.s32.totalorder %s110, %s111
      %p123 = scmp.eq.s32.totalorder %s19, 1
      %p124 = por %p122, %p123
      %p126 = scmp.ne.s32.totalorder %s111, %s125
      %p127 = scmp.eq.s32.totalorder %s19, 0
      %p128 = por %p126, %p127
      %s129 = ssub.s32 %s20, %s32
      %p130 = scmp.eq.s32.totalorder %s129, 0
      %s132 = sadd.s32 %s131, 1
      %s133 = scalar_select %p130, %s131, %s132
      %p136 = pneg %p130
      %p137 = scmp.eq.s32.totalorder %s13, 1
      %p138 = por %p136, %p137
      %p139 = scmp.ne.s32.totalorder %s131, %s134
      %p140 = scmp.eq.s32.totalorder %s13, 0
      %p141 = por %p139, %p140
      %p142 = scmp.ne.s32.totalorder %s131, %s134
      %p143 = scmp.eq.s32.totalorder %s18, 1
      %p144 = por %p142, %p143
      %p145 = scmp.ne.s32.totalorder %s134, %s135
      %p146 = scmp.eq.s32.totalorder %s18, 0
      %p147 = por %p145, %p146
      %p148 = scmp.ne.s32.totalorder %s134, %s135
      %p149 = scmp.eq.s32.totalorder %s19, 1
      %p150 = por %p148, %p149
      %p152 = scmp.ne.s32.totalorder %s135, %s151
      %p153 = scmp.eq.s32.totalorder %s19, 0
      %p154 = por %p152, %p153
      %p155 = scmp.le.s32.totalorder 1, %s13
      %p156 = scmp.lt.s32.totalorder %s13, 3
      %p157 = pnand %p155, %p156
      %p158 = pneg %p157
      // Predicated region
      $region9: #{tpu_custom_call.1} parent=5 // pred_check
        _
      $region10: #{tpu_custom_call.1} parent=5 // pred_check_branch
        %160 = sbr.rel (%p157) target = $region12
      $region11: #{tpu_custom_call.1} parent=5 // pred_region
        %s161 = ssub.s32 %s13, 1
        // Predicated region
        $region13: #{tpu_custom_call.1} parent=11 // pred_check
          %p162 = pneg %p79
        $region14: #{tpu_custom_call.1} parent=11 // pred_check_branch
          %164 = sbr.rel (%p162) target = $region16
        $region15: #{tpu_custom_call.1} parent=11 // pred_region
          %p165 = scmp.lt.s32.totalorder %s23, 0
          %s166 = scalar_select %p165, %s23, 0
          %s167 = smul.addr %s166, 4
          %s168 = scalar_lea.vmem %s1, %s167
        $region16: #{tpu_custom_call.1} parent=11 // pred_fallthru
          _
        // Predicated region
        $region17: #{tpu_custom_call.1} parent=11 // pred_check
          %p169 = pneg %p100
        $region18: #{tpu_custom_call.1} parent=11 // pred_check_branch
          %171 = sbr.rel (%p169) target = $region20
        $region19: #{tpu_custom_call.1} parent=11 // pred_region
          _
        $region20: #{tpu_custom_call.1} parent=11 // pred_fallthru
          _
        // Predicated region
        $region21: #{tpu_custom_call.1} parent=11 // pred_check
          %p172 = pneg %p121
        $region22: #{tpu_custom_call.1} parent=11 // pred_check_branch
          %174 = sbr.rel (%p172) target = $region24
        $region23: #{tpu_custom_call.1} parent=11 // pred_region
          _
        $region24: #{tpu_custom_call.1} parent=11 // pred_fallthru
          _
      $region12: #{tpu_custom_call.1} parent=5 // pred_fallthru
        _
      %p175 = scmp.lt.s32.totalorder %s13, 2
      // Predicated region
      $region25: #{tpu_custom_call.1} parent=5 // pred_check
        %p176 = pneg %p175
      $region26: #{tpu_custom_call.1} parent=5 // pred_check_branch
        %178 = sbr.rel (%p176) target = $region28
      $region27: #{tpu_custom_call.1} parent=5 // pred_region
        // Predicated region
        $region29: #{tpu_custom_call.1} parent=27 // pred_check
          %p179 = pneg %p47
        $region30: #{tpu_custom_call.1} parent=27 // pred_check_branch
          %181 = sbr.rel (%p179) target = $region32
        $region31: #{tpu_custom_call.1} parent=27 // pred_region
          %p182 = scmp.lt.s32.totalorder %s20, 1
          %s183 = scalar_select %p182, %s20, 1
          %p184 = scmp.lt.s32.totalorder %s21, 0
          %s185 = scalar_select %p184, %s21, 0
          %s186 = smul.addr %s185, 2
          %s187 = smul.addr %s183, 2
          %s188 = sadd.s32 %s186, %s187
          %s189 = smul.addr %s188, 2
          %s190 = scalar_lea.vmem %s0, %s189
        $region32: #{tpu_custom_call.1} parent=27 // pred_fallthru
          _
      $region28: #{tpu_custom_call.1} parent=5 // pred_fallthru
        _
      %p191 = scmp.le.s32.totalorder 1, %s13
      %p192 = scmp.lt.s32.totalorder %s13, 3
      %p193 = pnand %p191, %p192
      %p194 = pneg %p193
      // Predicated region
      $region33: #{tpu_custom_call.1} parent=5 // pred_check
        _
      $region34: #{tpu_custom_call.1} parent=5 // pred_check_branch
        %196 = sbr.rel (%p193) target = $region36
      $region35: #{tpu_custom_call.1} parent=5 // pred_region
        %s197 = ssub.s32 %s13, 1
        %p198 = scmp.lt.s32.totalorder %s22, 1
        %s199 = scalar_select %p198, %s22, 1
        %p200 = scmp.lt.s32.totalorder %s23, 0
        %s201 = scalar_select %p200, %s23, 0
        %s202 = smul.addr %s201, 2
        %s203 = smul.addr %s199, 2
        %s204 = sadd.s32 %s202, %s203
        %s205 = smul.addr %s204, 2
        %s206 = scalar_lea.vmem %s0, %s205
        %p207 = pneg %p53
        %p208 = pneg %p50
        %p209 = scmp.lt.s32.totalorder %s23, 0
        %s210 = scalar_select %p209, %s23, 0
        %s211 = smul.addr %s210, 4
        %s212 = scalar_lea.vmem %s1, %s211
        %p213 = pneg %p79
        %p214 = pneg %p76
        %p215 = pneg %p100
        %p216 = pneg %p97
        %p217 = pneg %p121
        %p218 = pneg %p118
        %p219 = pneg %p147
        %p220 = pneg %p144
        %s221 = sand.u32 %s134, 1
        %s222 = scalar_lea.sflag [#allocation5], %s221
        %s223 = sand.u32 %s134, 1
        %s224 = smul.addr %s223, 16
        %s225 = scalar_lea.vmem [#allocation4], %s224
        %p226 = scmp.lt.s32.totalorder %s22, 1
        %s227 = scalar_select %p226, %s22, 1
        %p228 = scmp.lt.s32.totalorder %s23, 0
        %s229 = scalar_select %p228, %s23, 0
        %s230 = smul.addr %s229, 2
        %s231 = smul.addr %s227, 2
        %s232 = sadd.s32 %s230, %s231
        %s233 = smul.addr %s232, 2
        %s234 = scalar_lea.vmem %s0, %s233
        %p235 = scmp.lt.s32.totalorder %s23, 0
        %s236 = scalar_select %p235, %s23, 0
        %s237 = smul.addr %s236, 4
        %s238 = scalar_lea.vmem %s1, %s237
        %v240 = vld [vmem:[%s234] sm:$0xf]
        %241 = vst [vmem:[#allocation2 + $0x2] sm:$0xf] %v240
        %v242 = vld [vmem:[%s238] sm:$0xf]
        %v243 = vld [vmem:[%s238 + $0x4] sm:$0xf]
        %v244 = vld [vmem:[%s238 + $0x8] sm:$0xf]
        %v245 = vld [vmem:[%s238 + $0xc] sm:$0xf]
        %v246 = vld [vmem:[%s238 + $0x10] sm:$0xf]
        %v247 = vld [vmem:[%s238 + $0x14] sm:$0xf]
        %v248 = vld [vmem:[%s238 + $0x18] sm:$0xf]
        %v249 = vld [vmem:[%s238 + $0x1c] sm:$0xf]
        %v250 = vld [vmem:[%s238 + $0x20] sm:$0xf]
        %v251 = vld [vmem:[%s238 + $0x24] sm:$0xf]
        %v252 = vld [vmem:[%s238 + $0x28] sm:$0xf]
        %v253 = vld [vmem:[%s238 + $0x2c] sm:$0xf]
        %v254 = vld [vmem:[%s238 + $0x30] sm:$0xf]
        %v255 = vld [vmem:[%s238 + $0x34] sm:$0xf]
        %v256 = vld [vmem:[%s238 + $0x38] sm:$0xf]
        %v257 = vld [vmem:[%s238 + $0x3c] sm:$0xf]
        %v258 = vld [vmem:[%s238 + $0x40] sm:$0xf]
        %v259 = vld [vmem:[%s238 + $0x44] sm:$0xf]
        %v260 = vld [vmem:[%s238 + $0x48] sm:$0xf]
        %v261 = vld [vmem:[%s238 + $0x4c] sm:$0xf]
        %v262 = vld [vmem:[%s238 + $0x50] sm:$0xf]
        %v263 = vld [vmem:[%s238 + $0x54] sm:$0xf]
        %v264 = vld [vmem:[%s238 + $0x58] sm:$0xf]
        %v265 = vld [vmem:[%s238 + $0x5c] sm:$0xf]
        %v266 = vld [vmem:[%s238 + $0x60] sm:$0xf]
        %v267 = vld [vmem:[%s238 + $0x64] sm:$0xf]
        %v268 = vld [vmem:[%s238 + $0x68] sm:$0xf]
        %v269 = vld [vmem:[%s238 + $0x6c] sm:$0xf]
        %v270 = vld [vmem:[%s238 + $0x70] sm:$0xf]
        %v271 = vld [vmem:[%s238 + $0x74] sm:$0xf]
        %v272 = vld [vmem:[%s238 + $0x78] sm:$0xf]
        %v273 = vld [vmem:[%s238 + $0x7c] sm:$0xf]
        %v274 = vld [vmem:[%s238 + $0x80] sm:$0xf]
        %v275 = vld [vmem:[#allocation2] sm:$0xff]
        %v309 = vunpack.c.l.b16 %v242
        %v310 = vunpack.c.l.b16 %v243
        %v311 = vunpack.c.l.b16 %v244
        %v312 = vunpack.c.l.b16 %v245
        %v313 = vunpack.c.l.b16 %v246
        %v314 = vunpack.c.l.b16 %v247
        %v315 = vunpack.c.l.b16 %v248
        %v316 = vunpack.c.l.b16 %v249
        %v317 = vunpack.c.l.b16 %v250
        %v318 = vunpack.c.l.b16 %v251
        %v319 = vunpack.c.l.b16 %v252
        %v320 = vunpack.c.l.b16 %v253
        %v321 = vunpack.c.l.b16 %v254
        %v322 = vunpack.c.l.b16 %v255
        %v323 = vunpack.c.l.b16 %v256
        %v324 = vunpack.c.l.b16 %v257
        %v325 = vunpack.c.l.b16 %v258
        %v326 = vunpack.c.l.b16 %v259
        %v327 = vunpack.c.l.b16 %v260
        %v328 = vunpack.c.l.b16 %v261
        %v329 = vunpack.c.l.b16 %v262
        %v330 = vunpack.c.l.b16 %v263
        %v331 = vunpack.c.l.b16 %v264
        %v332 = vunpack.c.l.b16 %v265
        %v333 = vunpack.c.l.b16 %v266
        %v334 = vunpack.c.l.b16 %v267
        %v335 = vunpack.c.l.b16 %v268
        %v336 = vunpack.c.l.b16 %v269
        %v337 = vunpack.c.l.b16 %v270
        %v338 = vunpack.c.l.b16 %v271
        %v339 = vunpack.c.l.b16 %v272
        %v340 = vunpack.c.l.b16 %v273
        %v341 = vunpack.c.l.b16 %v274
        %v342 = vpack.c.b16 %v310, %v309
        %v343 = vpack.c.b16 %v312, %v311
        %v344 = vpack.c.b16 %v314, %v313
        %v345 = vpack.c.b16 %v316, %v315
        %v346 = vpack.c.b16 %v318, %v317
        %v347 = vpack.c.b16 %v320, %v319
        %v348 = vpack.c.b16 %v322, %v321
        %v349 = vpack.c.b16 %v324, %v323
        %v350 = vpack.c.b16 %v326, %v325
        %v351 = vpack.c.b16 %v328, %v327
        %v352 = vpack.c.b16 %v330, %v329
        %v353 = vpack.c.b16 %v332, %v331
        %v354 = vpack.c.b16 %v334, %v333
        %v355 = vpack.c.b16 %v336, %v335
        %v356 = vpack.c.b16 %v338, %v337
        %v357 = vpack.c.b16 %v340, %v339
        %v358 = vpack.c.b16 %v341, %v341
        %v360 = vcombine.high %v275, %v275
        %v362 = vunpack.c.l.s4 1983009808
        %v363 = vunpack.c.0.s8 %v362
        %v364 = vlaneseq
        %v365 = vshrl.u32 %v364, 7
        %v366 = vsub.s32 %v363, %v365
        %v367 = vrot.slane %v275, %v366
        %v369 = vunpack.c.l.s4 1983009808
        %v370 = vunpack.c.0.s8 %v369
        %v371 = vlaneseq
        %v372 = vshrl.u32 %v371, 7
        %v373 = vsub.s32 %v370, %v372
        %v374 = vrot.slane %v360, %v373
        %v375 = vcombine.high %v367, %v367
        %v376 = vcombine.high %v374, %v374
        %vm377 = vcmask 31744
        %v379 = vsel %vm377, %v342, 0
        %v382 = vsel %vm377, %v343, 0
        %v385 = vsel %vm377, %v344, 0
        %v388 = vsel %vm377, %v345, 0
        %v391 = vsel %vm377, %v346, 0
        %v394 = vsel %vm377, %v347, 0
        %v397 = vsel %vm377, %v348, 0
        %v400 = vsel %vm377, %v349, 0
        %v403 = vsel %vm377, %v350, 0
        %v406 = vsel %vm377, %v351, 0
        %v409 = vsel %vm377, %v352, 0
        %v412 = vsel %vm377, %v353, 0
        %v415 = vsel %vm377, %v354, 0
        %v418 = vsel %vm377, %v355, 0
        %v421 = vsel %vm377, %v356, 0
        %v424 = vsel %vm377, %v357, 0
        %v427 = vsel %vm377, %v358, 0
        %vm429 = vcmask 1041408
        %v431 = vsel %vm429, %v367, 0
        %v434 = vsel %vm429, %v375, 0
        %v437 = vsel %vm429, %v374, 0
        %v440 = vsel %vm429, %v376, 0
        %442 = vmatprep.subr.bf16.mxu0 %v434
        %443 = vmatpush1.bf16.msra.mxu0 %v431
        %444 = vmatprep.subr.bf16.mxu0 0
        %445 = vmatpush1.bf16.msra.mxu0 0
        %446 = vmatprep.subr.bf16.mxu0 0
        %447 = vmatpush1.bf16.msra.mxu0 0
        %448 = vmatprep.subr.bf16.mxu0 0
        %449 = vmatpush1.bf16.msra.mxu0 0
        %450 = vmatprep.subr.bf16.mxu0 0
        %451 = vmatpush1.bf16.msra.mxu0 0
        %452 = vmatprep.subr.bf16.mxu0 0
        %453 = vmatpush1.bf16.msra.mxu0 0
        %454 = vmatprep.subr.bf16.mxu0 0
        %455 = vmatpush1.bf16.msra.mxu0 0
        %456 = vmatprep.subr.bf16.mxu0 0
        %457 = vmatpush1.bf16.msra.mxu0 0
        %458 = vmatprep.subr.bf16.mxu0 0
        %459 = vmatpush1.bf16.msra.mxu0 0
        %460 = vmatprep.subr.bf16.mxu0 0
        %461 = vmatpush1.bf16.msra.mxu0 0
        %462 = vmatprep.subr.bf16.mxu0 0
        %463 = vmatpush1.bf16.msra.mxu0 0
        %464 = vmatprep.subr.bf16.mxu0 0
        %465 = vmatpush1.bf16.msra.mxu0 0
        %466 = vmatprep.subr.bf16.mxu0 0
        %467 = vmatpush1.bf16.msra.mxu0 0
        %468 = vmatprep.subr.bf16.mxu0 0
        %469 = vmatpush1.bf16.msra.mxu0 0
        %470 = vmatprep.subr.bf16.mxu0 0
        %471 = vmatpush1.bf16.msra.mxu0 0
        %472 = vmatprep.subr.bf16.mxu0 0
        %473 = vmatpush1.bf16.msra.mxu0 0
        %474 = vmatprep.mubr.bf16.mxu0 0
        %475 = vmatmul.mubr.bf16.gmra.mrb[0].mxu0 %v379
        %v476 = vpop.f32.mrb[0].mxu0
        %v477 = vadd.f32 0.0, %v476
        %v478 = vpop.f32.mrb[0].mxu0
        %v479 = vadd.f32 0.0, %v478
        %v480 = vpop.f32.mrb[0].mxu0
        %v481 = vadd.f32 0.0, %v480
        %v482 = vpop.f32.mrb[0].mxu0
        %v483 = vadd.f32 0.0, %v482
        %484 = vmatprep.mubr.bf16.mxu0 0
        %485 = vmatmul.mubr.bf16.gmra.mrb[0].mxu0 %v382
        %v486 = vpop.f32.mrb[0].mxu0
        %v487 = vadd.f32 0.0, %v486
        %v488 = vpop.f32.mrb[0].mxu0
        %v489 = vadd.f32 0.0, %v488
        %v490 = vpop.f32.mrb[0].mxu0
        %v491 = vadd.f32 0.0, %v490
        %v492 = vpop.f32.mrb[0].mxu0
        %v493 = vadd.f32 0.0, %v492
        %494 = vmatprep.mubr.bf16.mxu0 0
        %495 = vmatmul.mubr.bf16.gmra.mrb[0].mxu0 %v385
        %v496 = vpop.f32.mrb[0].mxu0
        %v497 = vadd.f32 0.0, %v496
        %v498 = vpop.f32.mrb[0].mxu0
        %v499 = vadd.f32 0.0, %v498
        %v500 = vpop.f32.mrb[0].mxu0
        %v501 = vadd.f32 0.0, %v500
        %v502 = vpop.f32.mrb[0].mxu0
        %v503 = vadd.f32 0.0, %v502
        %504 = vmatprep.mubr.bf16.mxu0 0
        %505 = vmatmul.mubr.bf16.gmra.mrb[0].mxu0 %v388
        %v506 = vpop.f32.mrb[0].mxu0
        %v507 = vadd.f32 0.0, %v506
        %v508 = vpop.f32.mrb[0].mxu0
        %v509 = vadd.f32 0.0, %v508
        %v510 = vpop.f32.mrb[0].mxu0
        %v511 = vadd.f32 0.0, %v510
        %v512 = vpop.f32.mrb[0].mxu0
        %v513 = vadd.f32 0.0, %v512
        %514 = vmatprep.mubr.bf16.mxu0 0
        %515 = vmatmul.mubr.bf16.gmra.mrb[0].mxu0 %v391
        %v516 = vpop.f32.mrb[0].mxu0
        %v517 = vadd.f32 0.0, %v516
        %v518 = vpop.f32.mrb[0].mxu0
        %v519 = vadd.f32 0.0, %v518
        %v520 = vpop.f32.mrb[0].mxu0
        %v521 = vadd.f32 0.0, %v520
        %v522 = vpop.f32.mrb[0].mxu0
        %v523 = vadd.f32 0.0, %v522
        %524 = vmatprep.mubr.bf16.mxu0 0
        %525 = vmatmul.mubr.bf16.gmra.mrb[0].mxu0 %v394
        %v526 = vpop.f32.mrb[0].mxu0
        %v527 = vadd.f32 0.0, %v526
        %v528 = vpop.f32.mrb[0].mxu0
        %v529 = vadd.f32 0.0, %v528
        %v530 = vpop.f32.mrb[0].mxu0
        %v531 = vadd.f32 0.0, %v530
        %v532 = vpop.f32.mrb[0].mxu0
        %v533 = vadd.f32 0.0, %v532
        %534 = vmatprep.mubr.bf16.mxu0 0
        %535 = vmatmul.mubr.bf16.gmra.mrb[0].mxu0 %v397
        %v536 = vpop.f32.mrb[0].mxu0
        %v537 = vadd.f32 0.0, %v536
        %v538 = vpop.f32.mrb[0].mxu0
        %v539 = vadd.f32 0.0, %v538
        %v540 = vpop.f32.mrb[0].mxu0
        %v541 = vadd.f32 0.0, %v540
        %v542 = vpop.f32.mrb[0].mxu0
        %v543 = vadd.f32 0.0, %v542
        %544 = vmatprep.mubr.bf16.mxu0 0
        %545 = vmatmul.mubr.bf16.gmra.mrb[0].mxu0 %v400
        %v546 = vpop.f32.mrb[0].mxu0
        %v547 = vadd.f32 0.0, %v546
        %v548 = vpop.f32.mrb[0].mxu0
        %v549 = vadd.f32 0.0, %v548
        %v550 = vpop.f32.mrb[0].mxu0
        %v551 = vadd.f32 0.0, %v550
        %v552 = vpop.f32.mrb[0].mxu0
        %v553 = vadd.f32 0.0, %v552
        %554 = vmatprep.mubr.bf16.mxu0 0
        %555 = vmatmul.mubr.bf16.gmra.mrb[0].mxu0 %v403
        %v556 = vpop.f32.mrb[0].mxu0
        %v557 = vadd.f32 0.0, %v556
        %v558 = vpop.f32.mrb[0].mxu0
        %v559 = vadd.f32 0.0, %v558
        %v560 = vpop.f32.mrb[0].mxu0
        %v561 = vadd.f32 0.0, %v560
        %v562 = vpop.f32.mrb[0].mxu0
        %v563 = vadd.f32 0.0, %v562
        %564 = vmatprep.mubr.bf16.mxu0 0
        %565 = vmatmul.mubr.bf16.gmra.mrb[0].mxu0 %v406
        %v566 = vpop.f32.mrb[0].mxu0
        %v567 = vadd.f32 0.0, %v566
        %v568 = vpop.f32.mrb[0].mxu0
        %v569 = vadd.f32 0.0, %v568
        %v570 = vpop.f32.mrb[0].mxu0
        %v571 = vadd.f32 0.0, %v570
        %v572 = vpop.f32.mrb[0].mxu0
        %v573 = vadd.f32 0.0, %v572
        %574 = vmatprep.mubr.bf16.mxu0 0
        %575 = vmatmul.mubr.bf16.gmra.mrb[0].mxu0 %v409
        %v576 = vpop.f32.mrb[0].mxu0
        %v577 = vadd.f32 0.0, %v576
        %v578 = vpop.f32.mrb[0].mxu0
        %v579 = vadd.f32 0.0, %v578
        %v580 = vpop.f32.mrb[0].mxu0
        %v581 = vadd.f32 0.0, %v580
        %v582 = vpop.f32.mrb[0].mxu0
        %v583 = vadd.f32 0.0, %v582
        %584 = vmatprep.mubr.bf16.mxu0 0
        %585 = vmatmul.mubr.bf16.gmra.mrb[0].mxu0 %v412
        %v586 = vpop.f32.mrb[0].mxu0
        %v587 = vadd.f32 0.0, %v586
        %v588 = vpop.f32.mrb[0].mxu0
        %v589 = vadd.f32 0.0, %v588
        %v590 = vpop.f32.mrb[0].mxu0
        %v591 = vadd.f32 0.0, %v590
        %v592 = vpop.f32.mrb[0].mxu0
        %v593 = vadd.f32 0.0, %v592
        %594 = vmatprep.mubr.bf16.mxu0 0
        %595 = vmatmul.mubr.bf16.gmra.mrb[0].mxu0 %v415
        %v596 = vpop.f32.mrb[0].mxu0
        %v597 = vadd.f32 0.0, %v596
        %v598 = vpop.f32.mrb[0].mxu0
        %v599 = vadd.f32 0.0, %v598
        %v600 = vpop.f32.mrb[0].mxu0
        %v601 = vadd.f32 0.0, %v600
        %v602 = vpop.f32.mrb[0].mxu0
        %v603 = vadd.f32 0.0, %v602
        %604 = vmatprep.mubr.bf16.mxu0 0
        %605 = vmatmul.mubr.bf16.gmra.mrb[0].mxu0 %v418
        %v606 = vpop.f32.mrb[0].mxu0
        %v607 = vadd.f32 0.0, %v606
        %v608 = vpop.f32.mrb[0].mxu0
        %v609 = vadd.f32 0.0, %v608
        %v610 = vpop.f32.mrb[0].mxu0
        %v611 = vadd.f32 0.0, %v610
        %v612 = vpop.f32.mrb[0].mxu0
        %v613 = vadd.f32 0.0, %v612
        %614 = vmatprep.mubr.bf16.mxu0 0
        %615 = vmatmul.mubr.bf16.gmra.mrb[0].mxu0 %v421
        %v616 = vpop.f32.mrb[0].mxu0
        %v617 = vadd.f32 0.0, %v616
        %v618 = vpop.f32.mrb[0].mxu0
        %v619 = vadd.f32 0.0, %v618
        %v620 = vpop.f32.mrb[0].mxu0
        %v621 = vadd.f32 0.0, %v620
        %v622 = vpop.f32.mrb[0].mxu0
        %v623 = vadd.f32 0.0, %v622
        %624 = vmatprep.mubr.bf16.mxu0 0
        %625 = vmatmul.mubr.bf16.gmra.mrb[0].mxu0 %v424
        %v626 = vpop.f32.mrb[0].mxu0
        %v627 = vadd.f32 0.0, %v626
        %v628 = vpop.f32.mrb[0].mxu0
        %v629 = vadd.f32 0.0, %v628
        %v630 = vpop.f32.mrb[0].mxu0
        %v631 = vadd.f32 0.0, %v630
        %v632 = vpop.f32.mrb[0].mxu0
        %v633 = vadd.f32 0.0, %v632
        %634 = vmatprep.mubr.bf16.mxu0 0
        %635 = vmatmul.mubr.bf16.gmra.mrb[0].mxu0 %v427
        %v636 = vpop.f32.mrb[0].mxu0
        %v637 = vadd.f32 0.0, %v636
        %v638 = vpop.f32.mrb[0].mxu0
        %v639 = vadd.f32 0.0, %v638
        %v640 = vpop.f32.mrb[0].mxu0
        %v641 = vpop.f32.mrb[0].mxu0
        %642 = vdwg.mxu0
        %643 = vmatprep.subr.bf16.mxu0 %v440
        %644 = vmatpush1.bf16.msra.mxu0 %v437
        %645 = vmatprep.subr.bf16.mxu0 0
        %646 = vmatpush1.bf16.msra.mxu0 0
        %647 = vmatprep.subr.bf16.mxu0 0
        %648 = vmatpush1.bf16.msra.mxu0 0
        %649 = vmatprep.subr.bf16.mxu0 0
        %650 = vmatpush1.bf16.msra.mxu0 0
        %651 = vmatprep.subr.bf16.mxu0 0
        %652 = vmatpush1.bf16.msra.mxu0 0
        %653 = vmatprep.subr.bf16.mxu0 0
        %654 = vmatpush1.bf16.msra.mxu0 0
        %655 = vmatprep.subr.bf16.mxu0 0
        %656 = vmatpush1.bf16.msra.mxu0 0
        %657 = vmatprep.subr.bf16.mxu0 0
        %658 = vmatpush1.bf16.msra.mxu0 0
        %659 = vmatprep.subr.bf16.mxu0 0
        %660 = vmatpush1.bf16.msra.mxu0 0
        %661 = vmatprep.subr.bf16.mxu0 0
        %662 = vmatpush1.bf16.msra.mxu0 0
        %663 = vmatprep.subr.bf16.mxu0 0
        %664 = vmatpush1.bf16.msra.mxu0 0
        %665 = vmatprep.subr.bf16.mxu0 0
        %666 = vmatpush1.bf16.msra.mxu0 0
        %667 = vmatprep.subr.bf16.mxu0 0
        %668 = vmatpush1.bf16.msra.mxu0 0
        %669 = vmatprep.subr.bf16.mxu0 0
        %670 = vmatpush1.bf16.msra.mxu0 0
        %671 = vmatprep.subr.bf16.mxu0 0
        %672 = vmatpush1.bf16.msra.mxu0 0
        %673 = vmatprep.subr.bf16.mxu0 0
        %674 = vmatpush1.bf16.msra.mxu0 0
        %675 = vmatprep.mubr.bf16.mxu0 0
        %676 = vmatmul.mubr.bf16.gmra.mrb[0].mxu0 %v379
        %v677 = vpop.f32.mrb[0].mxu0
        %v678 = vadd.f32 0.0, %v677
        %v679 = vpop.f32.mrb[0].mxu0
        %v680 = vadd.f32 0.0, %v679
        %v681 = vpop.f32.mrb[0].mxu0
        %v682 = vadd.f32 0.0, %v681
        %v683 = vpop.f32.mrb[0].mxu0
        %v684 = vadd.f32 0.0, %v683
        %685 = vmatprep.mubr.bf16.mxu0 0
        %686 = vmatmul.mubr.bf16.gmra.mrb[0].mxu0 %v382
        %v687 = vpop.f32.mrb[0].mxu0
        %v688 = vadd.f32 0.0, %v687
        %v689 = vpop.f32.mrb[0].mxu0
        %v690 = vadd.f32 0.0, %v689
        %v691 = vpop.f32.mrb[0].mxu0
        %v692 = vadd.f32 0.0, %v691
        %v693 = vpop.f32.mrb[0].mxu0
        %v694 = vadd.f32 0.0, %v693
        %695 = vmatprep.mubr.bf16.mxu0 0
        %696 = vmatmul.mubr.bf16.gmra.mrb[0].mxu0 %v385
        %v697 = vpop.f32.mrb[0].mxu0
        %v698 = vadd.f32 0.0, %v697
        %v699 = vpop.f32.mrb[0].mxu0
        %v700 = vadd.f32 0.0, %v699
        %v701 = vpop.f32.mrb[0].mxu0
        %v702 = vadd.f32 0.0, %v701
        %v703 = vpop.f32.mrb[0].mxu0
        %v704 = vadd.f32 0.0, %v703
        %705 = vmatprep.mubr.bf16.mxu0 0
        %706 = vmatmul.mubr.bf16.gmra.mrb[0].mxu0 %v388
        %v707 = vpop.f32.mrb[0].mxu0
        %v708 = vadd.f32 0.0, %v707
        %v709 = vpop.f32.mrb[0].mxu0
        %v710 = vadd.f32 0.0, %v709
        %v711 = vpop.f32.mrb[0].mxu0
        %v712 = vadd.f32 0.0, %v711
        %v713 = vpop.f32.mrb[0].mxu0
        %v714 = vadd.f32 0.0, %v713
        %715 = vmatprep.mubr.bf16.mxu0 0
        %716 = vmatmul.mubr.bf16.gmra.mrb[0].mxu0 %v391
        %v717 = vpop.f32.mrb[0].mxu0
        %v718 = vadd.f32 0.0, %v717
        %v719 = vpop.f32.mrb[0].mxu0
        %v720 = vadd.f32 0.0, %v719
        %v721 = vpop.f32.mrb[0].mxu0
        %v722 = vadd.f32 0.0, %v721
        %v723 = vpop.f32.mrb[0].mxu0
        %v724 = vadd.f32 0.0, %v723
        %725 = vmatprep.mubr.bf16.mxu0 0
        %726 = vmatmul.mubr.bf16.gmra.mrb[0].mxu0 %v394
        %v727 = vpop.f32.mrb[0].mxu0
        %v728 = vadd.f32 0.0, %v727
        %v729 = vpop.f32.mrb[0].mxu0
        %v730 = vadd.f32 0.0, %v729
        %v731 = vpop.f32.mrb[0].mxu0
        %v732 = vadd.f32 0.0, %v731
        %v733 = vpop.f32.mrb[0].mxu0
        %v734 = vadd.f32 0.0, %v733
        %735 = vmatprep.mubr.bf16.mxu0 0
        %736 = vmatmul.mubr.bf16.gmra.mrb[0].mxu0 %v397
        %v737 = vpop.f32.mrb[0].mxu0
        %v738 = vadd.f32 0.0, %v737
        %v739 = vpop.f32.mrb[0].mxu0
        %v740 = vadd.f32 0.0, %v739
        %v741 = vpop.f32.mrb[0].mxu0
        %v742 = vadd.f32 0.0, %v741
        %v743 = vpop.f32.mrb[0].mxu0
        %v744 = vadd.f32 0.0, %v743
        %745 = vmatprep.mubr.bf16.mxu0 0
        %746 = vmatmul.mubr.bf16.gmra.mrb[0].mxu0 %v400
        %v747 = vpop.f32.mrb[0].mxu0
        %v748 = vadd.f32 0.0, %v747
        %v749 = vpop.f32.mrb[0].mxu0
        %v750 = vadd.f32 0.0, %v749
        %v751 = vpop.f32.mrb[0].mxu0
        %v752 = vadd.f32 0.0, %v751
        %v753 = vpop.f32.mrb[0].mxu0
        %v754 = vadd.f32 0.0, %v753
        %755 = vmatprep.mubr.bf16.mxu0 0
        %756 = vmatmul.mubr.bf16.gmra.mrb[0].mxu0 %v403
        %v757 = vpop.f32.mrb[0].mxu0
        %v758 = vadd.f32 0.0, %v757
        %v759 = vpop.f32.mrb[0].mxu0
        %v760 = vadd.f32 0.0, %v759
        %v761 = vpop.f32.mrb[0].mxu0
        %v762 = vadd.f32 0.0, %v761
        %v763 = vpop.f32.mrb[0].mxu0
        %v764 = vadd.f32 0.0, %v763
        %765 = vmatprep.mubr.bf16.mxu0 0
        %766 = vmatmul.mubr.bf16.gmra.mrb[0].mxu0 %v406
        %v767 = vpop.f32.mrb[0].mxu0
        %v768 = vadd.f32 0.0, %v767
        %v769 = vpop.f32.mrb[0].mxu0
        %v770 = vadd.f32 0.0, %v769
        %v771 = vpop.f32.mrb[0].mxu0
        %v772 = vadd.f32 0.0, %v771
        %v773 = vpop.f32.mrb[0].mxu0
        %v774 = vadd.f32 0.0, %v773
        %775 = vmatprep.mubr.bf16.mxu0 0
        %776 = vmatmul.mubr.bf16.gmra.mrb[0].mxu0 %v409
        %v777 = vpop.f32.mrb[0].mxu0
        %v778 = vadd.f32 0.0, %v777
        %v779 = vpop.f32.mrb[0].mxu0
        %v780 = vadd.f32 0.0, %v779
        %v781 = vpop.f32.mrb[0].mxu0
        %v782 = vadd.f32 0.0, %v781
        %v783 = vpop.f32.mrb[0].mxu0
        %v784 = vadd.f32 0.0, %v783
        %785 = vmatprep.mubr.bf16.mxu0 0
        %786 = vmatmul.mubr.bf16.gmra.mrb[0].mxu0 %v412
        %v787 = vpop.f32.mrb[0].mxu0
        %v788 = vadd.f32 0.0, %v787
        %v789 = vpop.f32.mrb[0].mxu0
        %v790 = vadd.f32 0.0, %v789
        %v791 = vpop.f32.mrb[0].mxu0
        %v792 = vadd.f32 0.0, %v791
        %v793 = vpop.f32.mrb[0].mxu0
        %v794 = vadd.f32 0.0, %v793
        %795 = vmatprep.mubr.bf16.mxu0 0
        %796 = vmatmul.mubr.bf16.gmra.mrb[0].mxu0 %v415
        %v797 = vpop.f32.mrb[0].mxu0
        %v798 = vadd.f32 0.0, %v797
        %v799 = vpop.f32.mrb[0].mxu0
        %v800 = vadd.f32 0.0, %v799
        %v801 = vpop.f32.mrb[0].mxu0
        %v802 = vadd.f32 0.0, %v801
        %v803 = vpop.f32.mrb[0].mxu0
        %v804 = vadd.f32 0.0, %v803
        %805 = vmatprep.mubr.bf16.mxu0 0
        %806 = vmatmul.mubr.bf16.gmra.mrb[0].mxu0 %v418
        %v807 = vpop.f32.mrb[0].mxu0
        %v808 = vadd.f32 0.0, %v807
        %v809 = vpop.f32.mrb[0].mxu0
        %v810 = vadd.f32 0.0, %v809
        %v811 = vpop.f32.mrb[0].mxu0
        %v812 = vadd.f32 0.0, %v811
        %v813 = vpop.f32.mrb[0].mxu0
        %v814 = vadd.f32 0.0, %v813
        %815 = vmatprep.mubr.bf16.mxu0 0
        %816 = vmatmul.mubr.bf16.gmra.mrb[0].mxu0 %v421
        %v817 = vpop.f32.mrb[0].mxu0
        %v818 = vadd.f32 0.0, %v817
        %v819 = vpop.f32.mrb[0].mxu0
        %v820 = vadd.f32 0.0, %v819
        %v821 = vpop.f32.mrb[0].mxu0
        %v822 = vadd.f32 0.0, %v821
        %v823 = vpop.f32.mrb[0].mxu0
        %v824 = vadd.f32 0.0, %v823
        %825 = vmatprep.mubr.bf16.mxu0 0
        %826 = vmatmul.mubr.bf16.gmra.mrb[0].mxu0 %v424
        %v827 = vpop.f32.mrb[0].mxu0
        %v828 = vadd.f32 0.0, %v827
        %v829 = vpop.f32.mrb[0].mxu0
        %v830 = vadd.f32 0.0, %v829
        %v831 = vpop.f32.mrb[0].mxu0
        %v832 = vadd.f32 0.0, %v831
        %v833 = vpop.f32.mrb[0].mxu0
        %v834 = vadd.f32 0.0, %v833
        %835 = vmatprep.mubr.bf16.mxu0 0
        %836 = vmatmul.mubr.bf16.gmra.mrb[0].mxu0 %v427
        %v837 = vpop.f32.mrb[0].mxu0
        %v838 = vadd.f32 0.0, %v837
        %v839 = vpop.f32.mrb[0].mxu0
        %v840 = vadd.f32 0.0, %v839
        %v841 = vpop.f32.mrb[0].mxu0
        %v842 = vpop.f32.mrb[0].mxu0
        %843 = vdwg.mxu0
        %p844 = scmp.eq.s32.totalorder %s23, 0
        // Predicated region
        $region37: #{tpu_custom_call.1} parent=35 // pred_check
          %p845 = pneg %p844
        $region38: #{tpu_custom_call.1} parent=35 // pred_check_branch
          %847 = sbr.rel (%p845) target = $region40
        $region39: #{tpu_custom_call.1} parent=35 // pred_region
          %848 = vst [vmem:[#allocation3] sm:$0xff] %v477
          %849 = vst [vmem:[#allocation3 + $0x8] sm:$0xff] %v479
          %850 = vst [vmem:[#allocation3 + $0x10] sm:$0xff] %v678
          %851 = vst [vmem:[#allocation3 + $0x18] sm:$0xff] %v680
          %852 = vst [vmem:[#allocation3 + $0x20] sm:$0xff] %v481
          %853 = vst [vmem:[#allocation3 + $0x28] sm:$0xff] %v483
          %854 = vst [vmem:[#allocation3 + $0x30] sm:$0xff] %v682
          %855 = vst [vmem:[#allocation3 + $0x38] sm:$0xff] %v684
          %856 = vst [vmem:[#allocation3 + $0x40] sm:$0xff] %v487
          %857 = vst [vmem:[#allocation3 + $0x48] sm:$0xff] %v489
          %858 = vst [vmem:[#allocation3 + $0x50] sm:$0xff] %v688
          %859 = vst [vmem:[#allocation3 + $0x58] sm:$0xff] %v690
          %860 = vst [vmem:[#allocation3 + $0x60] sm:$0xff] %v491
          %861 = vst [vmem:[#allocation3 + $0x68] sm:$0xff] %v493
          %862 = vst [vmem:[#allocation3 + $0x70] sm:$0xff] %v692
          %863 = vst [vmem:[#allocation3 + $0x78] sm:$0xff] %v694
          %864 = vst [vmem:[#allocation3 + $0x80] sm:$0xff] %v497
          %865 = vst [vmem:[#allocation3 + $0x88] sm:$0xff] %v499
          %866 = vst [vmem:[#allocation3 + $0x90] sm:$0xff] %v698
          %867 = vst [vmem:[#allocation3 + $0x98] sm:$0xff] %v700
          %868 = vst [vmem:[#allocation3 + $0xa0] sm:$0xff] %v501
          %869 = vst [vmem:[#allocation3 + $0xa8] sm:$0xff] %v503
          %870 = vst [vmem:[#allocation3 + $0xb0] sm:$0xff] %v702
          %871 = vst [vmem:[#allocation3 + $0xb8] sm:$0xff] %v704
          %872 = vst [vmem:[#allocation3 + $0xc0] sm:$0xff] %v507
          %873 = vst [vmem:[#allocation3 + $0xc8] sm:$0xff] %v509
          %874 = vst [vmem:[#allocation3 + $0xd0] sm:$0xff] %v708
          %875 = vst [vmem:[#allocation3 + $0xd8] sm:$0xff] %v710
          %876 = vst [vmem:[#allocation3 + $0xe0] sm:$0xff] %v511
          %877 = vst [vmem:[#allocation3 + $0xe8] sm:$0xff] %v513
          %878 = vst [vmem:[#allocation3 + $0xf0] sm:$0xff] %v712
          %879 = vst [vmem:[#allocation3 + $0xf8] sm:$0xff] %v714
          %880 = vst [vmem:[#allocation3 + $0x100] sm:$0xff] %v517
          %881 = vst [vmem:[#allocation3 + $0x108] sm:$0xff] %v519
          %882 = vst [vmem:[#allocation3 + $0x110] sm:$0xff] %v718
          %883 = vst [vmem:[#allocation3 + $0x118] sm:$0xff] %v720
          %884 = vst [vmem:[#allocation3 + $0x120] sm:$0xff] %v521
          %885 = vst [vmem:[#allocation3 + $0x128] sm:$0xff] %v523
          %886 = vst [vmem:[#allocation3 + $0x130] sm:$0xff] %v722
          %887 = vst [vmem:[#allocation3 + $0x138] sm:$0xff] %v724
          %888 = vst [vmem:[#allocation3 + $0x140] sm:$0xff] %v527
          %889 = vst [vmem:[#allocation3 + $0x148] sm:$0xff] %v529
          %890 = vst [vmem:[#allocation3 + $0x150] sm:$0xff] %v728
          %891 = vst [vmem:[#allocation3 + $0x158] sm:$0xff] %v730
          %892 = vst [vmem:[#allocation3 + $0x160] sm:$0xff] %v531
          %893 = vst [vmem:[#allocation3 + $0x168] sm:$0xff] %v533
          %894 = vst [vmem:[#allocation3 + $0x170] sm:$0xff] %v732
          %895 = vst [vmem:[#allocation3 + $0x178] sm:$0xff] %v734
          %896 = vst [vmem:[#allocation3 + $0x180] sm:$0xff] %v537
          %897 = vst [vmem:[#allocation3 + $0x188] sm:$0xff] %v539
          %898 = vst [vmem:[#allocation3 + $0x190] sm:$0xff] %v738
          %899 = vst [vmem:[#allocation3 + $0x198] sm:$0xff] %v740
          %900 = vst [vmem:[#allocation3 + $0x1a0] sm:$0xff] %v541
          %901 = vst [vmem:[#allocation3 + $0x1a8] sm:$0xff] %v543
          %902 = vst [vmem:[#allocation3 + $0x1b0] sm:$0xff] %v742
          %903 = vst [vmem:[#allocation3 + $0x1b8] sm:$0xff] %v744
          %904 = vst [vmem:[#allocation3 + $0x1c0] sm:$0xff] %v547
          %905 = vst [vmem:[#allocation3 + $0x1c8] sm:$0xff] %v549
          %906 = vst [vmem:[#allocation3 + $0x1d0] sm:$0xff] %v748
          %907 = vst [vmem:[#allocation3 + $0x1d8] sm:$0xff] %v750
          %908 = vst [vmem:[#allocation3 + $0x1e0] sm:$0xff] %v551
          %909 = vst [vmem:[#allocation3 + $0x1e8] sm:$0xff] %v553
          %910 = vst [vmem:[#allocation3 + $0x1f0] sm:$0xff] %v752
          %911 = vst [vmem:[#allocation3 + $0x1f8] sm:$0xff] %v754
          %912 = vst [vmem:[#allocation3 + $0x200] sm:$0xff] %v557
          %913 = vst [vmem:[#allocation3 + $0x208] sm:$0xff] %v559
          %914 = vst [vmem:[#allocation3 + $0x210] sm:$0xff] %v758
          %915 = vst [vmem:[#allocation3 + $0x218] sm:$0xff] %v760
          %916 = vst [vmem:[#allocation3 + $0x220] sm:$0xff] %v561
          %917 = vst [vmem:[#allocation3 + $0x228] sm:$0xff] %v563
          %918 = vst [vmem:[#allocation3 + $0x230] sm:$0xff] %v762
          %919 = vst [vmem:[#allocation3 + $0x238] sm:$0xff] %v764
          %920 = vst [vmem:[#allocation3 + $0x240] sm:$0xff] %v567
          %921 = vst [vmem:[#allocation3 + $0x248] sm:$0xff] %v569
          %922 = vst [vmem:[#allocation3 + $0x250] sm:$0xff] %v768
          %923 = vst [vmem:[#allocation3 + $0x258] sm:$0xff] %v770
          %924 = vst [vmem:[#allocation3 + $0x260] sm:$0xff] %v571
          %925 = vst [vmem:[#allocation3 + $0x268] sm:$0xff] %v573
          %926 = vst [vmem:[#allocation3 + $0x270] sm:$0xff] %v772
          %927 = vst [vmem:[#allocation3 + $0x278] sm:$0xff] %v774
          %928 = vst [vmem:[#allocation3 + $0x280] sm:$0xff] %v577
          %929 = vst [vmem:[#allocation3 + $0x288] sm:$0xff] %v579
          %930 = vst [vmem:[#allocation3 + $0x290] sm:$0xff] %v778
          %931 = vst [vmem:[#allocation3 + $0x298] sm:$0xff] %v780
          %932 = vst [vmem:[#allocation3 + $0x2a0] sm:$0xff] %v581
          %933 = vst [vmem:[#allocation3 + $0x2a8] sm:$0xff] %v583
          %934 = vst [vmem:[#allocation3 + $0x2b0] sm:$0xff] %v782
          %935 = vst [vmem:[#allocation3 + $0x2b8] sm:$0xff] %v784
          %936 = vst [vmem:[#allocation3 + $0x2c0] sm:$0xff] %v587
          %937 = vst [vmem:[#allocation3 + $0x2c8] sm:$0xff] %v589
          %938 = vst [vmem:[#allocation3 + $0x2d0] sm:$0xff] %v788
          %939 = vst [vmem:[#allocation3 + $0x2d8] sm:$0xff] %v790
          %940 = vst [vmem:[#allocation3 + $0x2e0] sm:$0xff] %v591
          %941 = vst [vmem:[#allocation3 + $0x2e8] sm:$0xff] %v593
          %942 = vst [vmem:[#allocation3 + $0x2f0] sm:$0xff] %v792
          %943 = vst [vmem:[#allocation3 + $0x2f8] sm:$0xff] %v794
          %944 = vst [vmem:[#allocation3 + $0x300] sm:$0xff] %v597
          %945 = vst [vmem:[#allocation3 + $0x308] sm:$0xff] %v599
          %946 = vst [vmem:[#allocation3 + $0x310] sm:$0xff] %v798
          %947 = vst [vmem:[#allocation3 + $0x318] sm:$0xff] %v800
          %948 = vst [vmem:[#allocation3 + $0x320] sm:$0xff] %v601
          %949 = vst [vmem:[#allocation3 + $0x328] sm:$0xff] %v603
          %950 = vst [vmem:[#allocation3 + $0x330] sm:$0xff] %v802
          %951 = vst [vmem:[#allocation3 + $0x338] sm:$0xff] %v804
          %952 = vst [vmem:[#allocation3 + $0x340] sm:$0xff] %v607
          %953 = vst [vmem:[#allocation3 + $0x348] sm:$0xff] %v609
          %954 = vst [vmem:[#allocation3 + $0x350] sm:$0xff] %v808
          %955 = vst [vmem:[#allocation3 + $0x358] sm:$0xff] %v810
          %956 = vst [vmem:[#allocation3 + $0x360] sm:$0xff] %v611
          %957 = vst [vmem:[#allocation3 + $0x368] sm:$0xff] %v613
          %958 = vst [vmem:[#allocation3 + $0x370] sm:$0xff] %v812
          %959 = vst [vmem:[#allocation3 + $0x378] sm:$0xff] %v814
          %960 = vst [vmem:[#allocation3 + $0x380] sm:$0xff] %v617
          %961 = vst [vmem:[#allocation3 + $0x388] sm:$0xff] %v619
          %962 = vst [vmem:[#allocation3 + $0x390] sm:$0xff] %v818
          %963 = vst [vmem:[#allocation3 + $0x398] sm:$0xff] %v820
          %964 = vst [vmem:[#allocation3 + $0x3a0] sm:$0xff] %v621
          %965 = vst [vmem:[#allocation3 + $0x3a8] sm:$0xff] %v623
          %966 = vst [vmem:[#allocation3 + $0x3b0] sm:$0xff] %v822
          %967 = vst [vmem:[#allocation3 + $0x3b8] sm:$0xff] %v824
          %968 = vst [vmem:[#allocation3 + $0x3c0] sm:$0xff] %v627
          %969 = vst [vmem:[#allocation3 + $0x3c8] sm:$0xff] %v629
          %970 = vst [vmem:[#allocation3 + $0x3d0] sm:$0xff] %v828
          %971 = vst [vmem:[#allocation3 + $0x3d8] sm:$0xff] %v830
          %972 = vst [vmem:[#allocation3 + $0x3e0] sm:$0xff] %v631
          %973 = vst [vmem:[#allocation3 + $0x3e8] sm:$0xff] %v633
          %974 = vst [vmem:[#allocation3 + $0x3f0] sm:$0xff] %v832
          %975 = vst [vmem:[#allocation3 + $0x3f8] sm:$0xff] %v834
          %976 = vst [vmem:[#allocation3 + $0x400] sm:$0xff] %v637
          %977 = vst [vmem:[#allocation3 + $0x408] sm:$0xff] %v639
          %978 = vst [vmem:[#allocation3 + $0x410] sm:$0xff] %v838
          %979 = vst [vmem:[#allocation3 + $0x418] sm:$0xff] %v840
        $region40: #{tpu_custom_call.1} parent=35 // pred_fallthru
          _
        %p980 = scmp.ne.s32.totalorder %s23, 0
        // Predicated region
        $region41: #{tpu_custom_call.1} parent=35 // pred_check
          %p981 = pneg %p980
        $region42: #{tpu_custom_call.1} parent=35 // pred_check_branch
          %983 = sbr.rel (%p981) target = $region44
        $region43: #{tpu_custom_call.1} parent=35 // pred_region
          %v984 = vld [vmem:[#allocation3] sm:$0xff]
          %v985 = vld [vmem:[#allocation3 + $0x8] sm:$0xff]
          %v986 = vld [vmem:[#allocation3 + $0x10] sm:$0xff]
          %v987 = vld [vmem:[#allocation3 + $0x18] sm:$0xff]
          %v988 = vld [vmem:[#allocation3 + $0x20] sm:$0xff]
          %v989 = vld [vmem:[#allocation3 + $0x28] sm:$0xff]
          %v990 = vld [vmem:[#allocation3 + $0x30] sm:$0xff]
          %v991 = vld [vmem:[#allocation3 + $0x38] sm:$0xff]
          %v992 = vld [vmem:[#allocation3 + $0x40] sm:$0xff]
          %v993 = vld [vmem:[#allocation3 + $0x48] sm:$0xff]
          %v994 = vld [vmem:[#allocation3 + $0x50] sm:$0xff]
          %v995 = vld [vmem:[#allocation3 + $0x58] sm:$0xff]
          %v996 = vld [vmem:[#allocation3 + $0x60] sm:$0xff]
          %v997 = vld [vmem:[#allocation3 + $0x68] sm:$0xff]
          %v998 = vld [vmem:[#allocation3 + $0x70] sm:$0xff]
          %v999 = vld [vmem:[#allocation3 + $0x78] sm:$0xff]
          %v1000 = vld [vmem:[#allocation3 + $0x80] sm:$0xff]
          %v1001 = vld [vmem:[#allocation3 + $0x88] sm:$0xff]
          %v1002 = vld [vmem:[#allocation3 + $0x90] sm:$0xff]
          %v1003 = vld [vmem:[#allocation3 + $0x98] sm:$0xff]
          %v1004 = vld [vmem:[#allocation3 + $0xa0] sm:$0xff]
          %v1005 = vld [vmem:[#allocation3 + $0xa8] sm:$0xff]
          %v1006 = vld [vmem:[#allocation3 + $0xb0] sm:$0xff]
          %v1007 = vld [vmem:[#allocation3 + $0xb8] sm:$0xff]
          %v1008 = vld [vmem:[#allocation3 + $0xc0] sm:$0xff]
          %v1009 = vld [vmem:[#allocation3 + $0xc8] sm:$0xff]
          %v1010 = vld [vmem:[#allocation3 + $0xd0] sm:$0xff]
          %v1011 = vld [vmem:[#allocation3 + $0xd8] sm:$0xff]
          %v1012 = vld [vmem:[#allocation3 + $0xe0] sm:$0xff]
          %v1013 = vld [vmem:[#allocation3 + $0xe8] sm:$0xff]
          %v1014 = vld [vmem:[#allocation3 + $0xf0] sm:$0xff]
          %v1015 = vld [vmem:[#allocation3 + $0xf8] sm:$0xff]
          %v1016 = vld [vmem:[#allocation3 + $0x100] sm:$0xff]
          %v1017 = vld [vmem:[#allocation3 + $0x108] sm:$0xff]
          %v1018 = vld [vmem:[#allocation3 + $0x110] sm:$0xff]
          %v1019 = vld [vmem:[#allocation3 + $0x118] sm:$0xff]
          %v1020 = vld [vmem:[#allocation3 + $0x120] sm:$0xff]
          %v1021 = vld [vmem:[#allocation3 + $0x128] sm:$0xff]
          %v1022 = vld [vmem:[#allocation3 + $0x130] sm:$0xff]
          %v1023 = vld [vmem:[#allocation3 + $0x138] sm:$0xff]
          %v1024 = vld [vmem:[#allocation3 + $0x140] sm:$0xff]
          %v1025 = vld [vmem:[#allocation3 + $0x148] sm:$0xff]
          %v1026 = vld [vmem:[#allocation3 + $0x150] sm:$0xff]
          %v1027 = vld [vmem:[#allocation3 + $0x158] sm:$0xff]
          %v1028 = vld [vmem:[#allocation3 + $0x160] sm:$0xff]
          %v1029 = vld [vmem:[#allocation3 + $0x168] sm:$0xff]
          %v1030 = vld [vmem:[#allocation3 + $0x170] sm:$0xff]
          %v1031 = vld [vmem:[#allocation3 + $0x178] sm:$0xff]
          %v1032 = vld [vmem:[#allocation3 + $0x180] sm:$0xff]
          %v1033 = vld [vmem:[#allocation3 + $0x188] sm:$0xff]
          %v1034 = vld [vmem:[#allocation3 + $0x190] sm:$0xff]
          %v1035 = vld [vmem:[#allocation3 + $0x198] sm:$0xff]
          %v1036 = vld [vmem:[#allocation3 + $0x1a0] sm:$0xff]
          %v1037 = vld [vmem:[#allocation3 + $0x1a8] sm:$0xff]
          %v1038 = vld [vmem:[#allocation3 + $0x1b0] sm:$0xff]
          %v1039 = vld [vmem:[#allocation3 + $0x1b8] sm:$0xff]
          %v1040 = vld [vmem:[#allocation3 + $0x1c0] sm:$0xff]
          %v1041 = vld [vmem:[#allocation3 + $0x1c8] sm:$0xff]
          %v1042 = vld [vmem:[#allocation3 + $0x1d0] sm:$0xff]
          %v1043 = vld [vmem:[#allocation3 + $0x1d8] sm:$0xff]
          %v1044 = vld [vmem:[#allocation3 + $0x1e0] sm:$0xff]
          %v1045 = vld [vmem:[#allocation3 + $0x1e8] sm:$0xff]
          %v1046 = vld [vmem:[#allocation3 + $0x1f0] sm:$0xff]
          %v1047 = vld [vmem:[#allocation3 + $0x1f8] sm:$0xff]
          %v1048 = vld [vmem:[#allocation3 + $0x200] sm:$0xff]
          %v1049 = vld [vmem:[#allocation3 + $0x208] sm:$0xff]
          %v1050 = vld [vmem:[#allocation3 + $0x210] sm:$0xff]
          %v1051 = vld [vmem:[#allocation3 + $0x218] sm:$0xff]
          %v1052 = vld [vmem:[#allocation3 + $0x220] sm:$0xff]
          %v1053 = vld [vmem:[#allocation3 + $0x228] sm:$0xff]
          %v1054 = vld [vmem:[#allocation3 + $0x230] sm:$0xff]
          %v1055 = vld [vmem:[#allocation3 + $0x238] sm:$0xff]
          %v1056 = vld [vmem:[#allocation3 + $0x240] sm:$0xff]
          %v1057 = vld [vmem:[#allocation3 + $0x248] sm:$0xff]
          %v1058 = vld [vmem:[#allocation3 + $0x250] sm:$0xff]
          %v1059 = vld [vmem:[#allocation3 + $0x258] sm:$0xff]
          %v1060 = vld [vmem:[#allocation3 + $0x260] sm:$0xff]
          %v1061 = vld [vmem:[#allocation3 + $0x268] sm:$0xff]
          %v1062 = vld [vmem:[#allocation3 + $0x270] sm:$0xff]
          %v1063 = vld [vmem:[#allocation3 + $0x278] sm:$0xff]
          %v1064 = vld [vmem:[#allocation3 + $0x280] sm:$0xff]
          %v1065 = vld [vmem:[#allocation3 + $0x288] sm:$0xff]
          %v1066 = vld [vmem:[#allocation3 + $0x290] sm:$0xff]
          %v1067 = vld [vmem:[#allocation3 + $0x298] sm:$0xff]
          %v1068 = vld [vmem:[#allocation3 + $0x2a0] sm:$0xff]
          %v1069 = vld [vmem:[#allocation3 + $0x2a8] sm:$0xff]
          %v1070 = vld [vmem:[#allocation3 + $0x2b0] sm:$0xff]
          %v1071 = vld [vmem:[#allocation3 + $0x2b8] sm:$0xff]
          %v1072 = vld [vmem:[#allocation3 + $0x2c0] sm:$0xff]
          %v1073 = vld [vmem:[#allocation3 + $0x2c8] sm:$0xff]
          %v1074 = vld [vmem:[#allocation3 + $0x2d0] sm:$0xff]
          %v1075 = vld [vmem:[#allocation3 + $0x2d8] sm:$0xff]
          %v1076 = vld [vmem:[#allocation3 + $0x2e0] sm:$0xff]
          %v1077 = vld [vmem:[#allocation3 + $0x2e8] sm:$0xff]
          %v1078 = vld [vmem:[#allocation3 + $0x2f0] sm:$0xff]
          %v1079 = vld [vmem:[#allocation3 + $0x2f8] sm:$0xff]
          %v1080 = vld [vmem:[#allocation3 + $0x300] sm:$0xff]
          %v1081 = vld [vmem:[#allocation3 + $0x308] sm:$0xff]
          %v1082 = vld [vmem:[#allocation3 + $0x310] sm:$0xff]
          %v1083 = vld [vmem:[#allocation3 + $0x318] sm:$0xff]
          %v1084 = vld [vmem:[#allocation3 + $0x320] sm:$0xff]
          %v1085 = vld [vmem:[#allocation3 + $0x328] sm:$0xff]
          %v1086 = vld [vmem:[#allocation3 + $0x330] sm:$0xff]
          %v1087 = vld [vmem:[#allocation3 + $0x338] sm:$0xff]
          %v1088 = vld [vmem:[#allocation3 + $0x340] sm:$0xff]
          %v1089 = vld [vmem:[#allocation3 + $0x348] sm:$0xff]
          %v1090 = vld [vmem:[#allocation3 + $0x350] sm:$0xff]
          %v1091 = vld [vmem:[#allocation3 + $0x358] sm:$0xff]
          %v1092 = vld [vmem:[#allocation3 + $0x360] sm:$0xff]
          %v1093 = vld [vmem:[#allocation3 + $0x368] sm:$0xff]
          %v1094 = vld [vmem:[#allocation3 + $0x370] sm:$0xff]
          %v1095 = vld [vmem:[#allocation3 + $0x378] sm:$0xff]
          %v1096 = vld [vmem:[#allocation3 + $0x380] sm:$0xff]
          %v1097 = vld [vmem:[#allocation3 + $0x388] sm:$0xff]
          %v1098 = vld [vmem:[#allocation3 + $0x390] sm:$0xff]
          %v1099 = vld [vmem:[#allocation3 + $0x398] sm:$0xff]
          %v1100 = vld [vmem:[#allocation3 + $0x3a0] sm:$0xff]
          %v1101 = vld [vmem:[#allocation3 + $0x3a8] sm:$0xff]
          %v1102 = vld [vmem:[#allocation3 + $0x3b0] sm:$0xff]
          %v1103 = vld [vmem:[#allocation3 + $0x3b8] sm:$0xff]
          %v1104 = vld [vmem:[#allocation3 + $0x3c0] sm:$0xff]
          %v1105 = vld [vmem:[#allocation3 + $0x3c8] sm:$0xff]
          %v1106 = vld [vmem:[#allocation3 + $0x3d0] sm:$0xff]
          %v1107 = vld [vmem:[#allocation3 + $0x3d8] sm:$0xff]
          %v1108 = vld [vmem:[#allocation3 + $0x3e0] sm:$0xff]
          %v1109 = vld [vmem:[#allocation3 + $0x3e8] sm:$0xff]
          %v1110 = vld [vmem:[#allocation3 + $0x3f0] sm:$0xff]
          %v1111 = vld [vmem:[#allocation3 + $0x3f8] sm:$0xff]
          %v1112 = vld [vmem:[#allocation3 + $0x400] sm:$0xff]
          %v1113 = vld [vmem:[#allocation3 + $0x408] sm:$0xff]
          %v1114 = vld [vmem:[#allocation3 + $0x410] sm:$0xff]
          %v1115 = vld [vmem:[#allocation3 + $0x418] sm:$0xff]
          %v1116 = vadd.f32 %v984, %v477
          %v1117 = vadd.f32 %v985, %v479
          %v1118 = vadd.f32 %v986, %v678
          %v1119 = vadd.f32 %v987, %v680
          %v1120 = vadd.f32 %v988, %v481
          %v1121 = vadd.f32 %v989, %v483
          %v1122 = vadd.f32 %v990, %v682
          %v1123 = vadd.f32 %v991, %v684
          %v1124 = vadd.f32 %v992, %v487
          %v1125 = vadd.f32 %v993, %v489
          %v1126 = vadd.f32 %v994, %v688
          %v1127 = vadd.f32 %v995, %v690
          %v1128 = vadd.f32 %v996, %v491
          %v1129 = vadd.f32 %v997, %v493
          %v1130 = vadd.f32 %v998, %v692
          %v1131 = vadd.f32 %v999, %v694
          %v1132 = vadd.f32 %v1000, %v497
          %v1133 = vadd.f32 %v1001, %v499
          %v1134 = vadd.f32 %v1002, %v698
          %v1135 = vadd.f32 %v1003, %v700
          %v1136 = vadd.f32 %v1004, %v501
          %v1137 = vadd.f32 %v1005, %v503
          %v1138 = vadd.f32 %v1006, %v702
          %v1139 = vadd.f32 %v1007, %v704
          %v1140 = vadd.f32 %v1008, %v507
          %v1141 = vadd.f32 %v1009, %v509
          %v1142 = vadd.f32 %v1010, %v708
          %v1143 = vadd.f32 %v1011, %v710
          %v1144 = vadd.f32 %v1012, %v511
          %v1145 = vadd.f32 %v1013, %v513
          %v1146 = vadd.f32 %v1014, %v712
          %v1147 = vadd.f32 %v1015, %v714
          %v1148 = vadd.f32 %v1016, %v517
          %v1149 = vadd.f32 %v1017, %v519
          %v1150 = vadd.f32 %v1018, %v718
          %v1151 = vadd.f32 %v1019, %v720
          %v1152 = vadd.f32 %v1020, %v521
          %v1153 = vadd.f32 %v1021, %v523
          %v1154 = vadd.f32 %v1022, %v722
          %v1155 = vadd.f32 %v1023, %v724
          %v1156 = vadd.f32 %v1024, %v527
          %v1157 = vadd.f32 %v1025, %v529
          %v1158 = vadd.f32 %v1026, %v728
          %v1159 = vadd.f32 %v1027, %v730
          %v1160 = vadd.f32 %v1028, %v531
          %v1161 = vadd.f32 %v1029, %v533
          %v1162 = vadd.f32 %v1030, %v732
          %v1163 = vadd.f32 %v1031, %v734
          %v1164 = vadd.f32 %v1032, %v537
          %v1165 = vadd.f32 %v1033, %v539
          %v1166 = vadd.f32 %v1034, %v738
          %v1167 = vadd.f32 %v1035, %v740
          %v1168 = vadd.f32 %v1036, %v541
          %v1169 = vadd.f32 %v1037, %v543
          %v1170 = vadd.f32 %v1038, %v742
          %v1171 = vadd.f32 %v1039, %v744
          %v1172 = vadd.f32 %v1040, %v547
          %v1173 = vadd.f32 %v1041, %v549
          %v1174 = vadd.f32 %v1042, %v748
          %v1175 = vadd.f32 %v1043, %v750
          %v1176 = vadd.f32 %v1044, %v551
          %v1177 = vadd.f32 %v1045, %v553
          %v1178 = vadd.f32 %v1046, %v752
          %v1179 = vadd.f32 %v1047, %v754
          %v1180 = vadd.f32 %v1048, %v557
          %v1181 = vadd.f32 %v1049, %v559
          %v1182 = vadd.f32 %v1050, %v758
          %v1183 = vadd.f32 %v1051, %v760
          %v1184 = vadd.f32 %v1052, %v561
          %v1185 = vadd.f32 %v1053, %v563
          %v1186 = vadd.f32 %v1054, %v762
          %v1187 = vadd.f32 %v1055, %v764
          %v1188 = vadd.f32 %v1056, %v567
          %v1189 = vadd.f32 %v1057, %v569
          %v1190 = vadd.f32 %v1058, %v768
          %v1191 = vadd.f32 %v1059, %v770
          %v1192 = vadd.f32 %v1060, %v571
          %v1193 = vadd.f32 %v1061, %v573
          %v1194 = vadd.f32 %v1062, %v772
          %v1195 = vadd.f32 %v1063, %v774
          %v1196 = vadd.f32 %v1064, %v577
          %v1197 = vadd.f32 %v1065, %v579
          %v1198 = vadd.f32 %v1066, %v778
          %v1199 = vadd.f32 %v1067, %v780
          %v1200 = vadd.f32 %v1068, %v581
          %v1201 = vadd.f32 %v1069, %v583
          %v1202 = vadd.f32 %v1070, %v782
          %v1203 = vadd.f32 %v1071, %v784
          %v1204 = vadd.f32 %v1072, %v587
          %v1205 = vadd.f32 %v1073, %v589
          %v1206 = vadd.f32 %v1074, %v788
          %v1207 = vadd.f32 %v1075, %v790
          %v1208 = vadd.f32 %v1076, %v591
          %v1209 = vadd.f32 %v1077, %v593
          %v1210 = vadd.f32 %v1078, %v792
          %v1211 = vadd.f32 %v1079, %v794
          %v1212 = vadd.f32 %v1080, %v597
          %v1213 = vadd.f32 %v1081, %v599
          %v1214 = vadd.f32 %v1082, %v798
          %v1215 = vadd.f32 %v1083, %v800
          %v1216 = vadd.f32 %v1084, %v601
          %v1217 = vadd.f32 %v1085, %v603
          %v1218 = vadd.f32 %v1086, %v802
          %v1219 = vadd.f32 %v1087, %v804
          %v1220 = vadd.f32 %v1088, %v607
          %v1221 = vadd.f32 %v1089, %v609
          %v1222 = vadd.f32 %v1090, %v808
          %v1223 = vadd.f32 %v1091, %v810
          %v1224 = vadd.f32 %v1092, %v611
          %v1225 = vadd.f32 %v1093, %v613
          %v1226 = vadd.f32 %v1094, %v812
          %v1227 = vadd.f32 %v1095, %v814
          %v1228 = vadd.f32 %v1096, %v617
          %v1229 = vadd.f32 %v1097, %v619
          %v1230 = vadd.f32 %v1098, %v818
          %v1231 = vadd.f32 %v1099, %v820
          %v1232 = vadd.f32 %v1100, %v621
          %v1233 = vadd.f32 %v1101, %v623
          %v1234 = vadd.f32 %v1102, %v822
          %v1235 = vadd.f32 %v1103, %v824
          %v1236 = vadd.f32 %v1104, %v627
          %v1237 = vadd.f32 %v1105, %v629
          %v1238 = vadd.f32 %v1106, %v828
          %v1239 = vadd.f32 %v1107, %v830
          %v1240 = vadd.f32 %v1108, %v631
          %v1241 = vadd.f32 %v1109, %v633
          %v1242 = vadd.f32 %v1110, %v832
          %v1243 = vadd.f32 %v1111, %v834
          %v1244 = vadd.f32 %v1112, %v637
          %v1245 = vadd.f32 %v1113, %v639
          %v1246 = vadd.f32 %v1114, %v838
          %v1247 = vadd.f32 %v1115, %v840
          %1248 = vst [vmem:[#allocation3] sm:$0xff] %v1116
          %1249 = vst [vmem:[#allocation3 + $0x8] sm:$0xff] %v1117
          %1250 = vst [vmem:[#allocation3 + $0x10] sm:$0xff] %v1118
          %1251 = vst [vmem:[#allocation3 + $0x18] sm:$0xff] %v1119
          %1252 = vst [vmem:[#allocation3 + $0x20] sm:$0xff] %v1120
          %1253 = vst [vmem:[#allocation3 + $0x28] sm:$0xff] %v1121
          %1254 = vst [vmem:[#allocation3 + $0x30] sm:$0xff] %v1122
          %1255 = vst [vmem:[#allocation3 + $0x38] sm:$0xff] %v1123
          %1256 = vst [vmem:[#allocation3 + $0x40] sm:$0xff] %v1124
          %1257 = vst [vmem:[#allocation3 + $0x48] sm:$0xff] %v1125
          %1258 = vst [vmem:[#allocation3 + $0x50] sm:$0xff] %v1126
          %1259 = vst [vmem:[#allocation3 + $0x58] sm:$0xff] %v1127
          %1260 = vst [vmem:[#allocation3 + $0x60] sm:$0xff] %v1128
          %1261 = vst [vmem:[#allocation3 + $0x68] sm:$0xff] %v1129
          %1262 = vst [vmem:[#allocation3 + $0x70] sm:$0xff] %v1130
          %1263 = vst [vmem:[#allocation3 + $0x78] sm:$0xff] %v1131
          %1264 = vst [vmem:[#allocation3 + $0x80] sm:$0xff] %v1132
          %1265 = vst [vmem:[#allocation3 + $0x88] sm:$0xff] %v1133
          %1266 = vst [vmem:[#allocation3 + $0x90] sm:$0xff] %v1134
          %1267 = vst [vmem:[#allocation3 + $0x98] sm:$0xff] %v1135
          %1268 = vst [vmem:[#allocation3 + $0xa0] sm:$0xff] %v1136
          %1269 = vst [vmem:[#allocation3 + $0xa8] sm:$0xff] %v1137
          %1270 = vst [vmem:[#allocation3 + $0xb0] sm:$0xff] %v1138
          %1271 = vst [vmem:[#allocation3 + $0xb8] sm:$0xff] %v1139
          %1272 = vst [vmem:[#allocation3 + $0xc0] sm:$0xff] %v1140
          %1273 = vst [vmem:[#allocation3 + $0xc8] sm:$0xff] %v1141
          %1274 = vst [vmem:[#allocation3 + $0xd0] sm:$0xff] %v1142
          %1275 = vst [vmem:[#allocation3 + $0xd8] sm:$0xff] %v1143
          %1276 = vst [vmem:[#allocation3 + $0xe0] sm:$0xff] %v1144
          %1277 = vst [vmem:[#allocation3 + $0xe8] sm:$0xff] %v1145
          %1278 = vst [vmem:[#allocation3 + $0xf0] sm:$0xff] %v1146
          %1279 = vst [vmem:[#allocation3 + $0xf8] sm:$0xff] %v1147
          %1280 = vst [vmem:[#allocation3 + $0x100] sm:$0xff] %v1148
          %1281 = vst [vmem:[#allocation3 + $0x108] sm:$0xff] %v1149
          %1282 = vst [vmem:[#allocation3 + $0x110] sm:$0xff] %v1150
          %1283 = vst [vmem:[#allocation3 + $0x118] sm:$0xff] %v1151
          %1284 = vst [vmem:[#allocation3 + $0x120] sm:$0xff] %v1152
          %1285 = vst [vmem:[#allocation3 + $0x128] sm:$0xff] %v1153
          %1286 = vst [vmem:[#allocation3 + $0x130] sm:$0xff] %v1154
          %1287 = vst [vmem:[#allocation3 + $0x138] sm:$0xff] %v1155
          %1288 = vst [vmem:[#allocation3 + $0x140] sm:$0xff] %v1156
          %1289 = vst [vmem:[#allocation3 + $0x148] sm:$0xff] %v1157
          %1290 = vst [vmem:[#allocation3 + $0x150] sm:$0xff] %v1158
          %1291 = vst [vmem:[#allocation3 + $0x158] sm:$0xff] %v1159
          %1292 = vst [vmem:[#allocation3 + $0x160] sm:$0xff] %v1160
          %1293 = vst [vmem:[#allocation3 + $0x168] sm:$0xff] %v1161
          %1294 = vst [vmem:[#allocation3 + $0x170] sm:$0xff] %v1162
          %1295 = vst [vmem:[#allocation3 + $0x178] sm:$0xff] %v1163
          %1296 = vst [vmem:[#allocation3 + $0x180] sm:$0xff] %v1164
          %1297 = vst [vmem:[#allocation3 + $0x188] sm:$0xff] %v1165
          %1298 = vst [vmem:[#allocation3 + $0x190] sm:$0xff] %v1166
          %1299 = vst [vmem:[#allocation3 + $0x198] sm:$0xff] %v1167
          %1300 = vst [vmem:[#allocation3 + $0x1a0] sm:$0xff] %v1168
          %1301 = vst [vmem:[#allocation3 + $0x1a8] sm:$0xff] %v1169
          %1302 = vst [vmem:[#allocation3 + $0x1b0] sm:$0xff] %v1170
          %1303 = vst [vmem:[#allocation3 + $0x1b8] sm:$0xff] %v1171
          %1304 = vst [vmem:[#allocation3 + $0x1c0] sm:$0xff] %v1172
          %1305 = vst [vmem:[#allocation3 + $0x1c8] sm:$0xff] %v1173
          %1306 = vst [vmem:[#allocation3 + $0x1d0] sm:$0xff] %v1174
          %1307 = vst [vmem:[#allocation3 + $0x1d8] sm:$0xff] %v1175
          %1308 = vst [vmem:[#allocation3 + $0x1e0] sm:$0xff] %v1176
          %1309 = vst [vmem:[#allocation3 + $0x1e8] sm:$0xff] %v1177
          %1310 = vst [vmem:[#allocation3 + $0x1f0] sm:$0xff] %v1178
          %1311 = vst [vmem:[#allocation3 + $0x1f8] sm:$0xff] %v1179
          %1312 = vst [vmem:[#allocation3 + $0x200] sm:$0xff] %v1180
          %1313 = vst [vmem:[#allocation3 + $0x208] sm:$0xff] %v1181
          %1314 = vst [vmem:[#allocation3 + $0x210] sm:$0xff] %v1182
          %1315 = vst [vmem:[#allocation3 + $0x218] sm:$0xff] %v1183
          %1316 = vst [vmem:[#allocation3 + $0x220] sm:$0xff] %v1184
          %1317 = vst [vmem:[#allocation3 + $0x228] sm:$0xff] %v1185
          %1318 = vst [vmem:[#allocation3 + $0x230] sm:$0xff] %v1186
          %1319 = vst [vmem:[#allocation3 + $0x238] sm:$0xff] %v1187
          %1320 = vst [vmem:[#allocation3 + $0x240] sm:$0xff] %v1188
          %1321 = vst [vmem:[#allocation3 + $0x248] sm:$0xff] %v1189
          %1322 = vst [vmem:[#allocation3 + $0x250] sm:$0xff] %v1190
          %1323 = vst [vmem:[#allocation3 + $0x258] sm:$0xff] %v1191
          %1324 = vst [vmem:[#allocation3 + $0x260] sm:$0xff] %v1192
          %1325 = vst [vmem:[#allocation3 + $0x268] sm:$0xff] %v1193
          %1326 = vst [vmem:[#allocation3 + $0x270] sm:$0xff] %v1194
          %1327 = vst [vmem:[#allocation3 + $0x278] sm:$0xff] %v1195
          %1328 = vst [vmem:[#allocation3 + $0x280] sm:$0xff] %v1196
          %1329 = vst [vmem:[#allocation3 + $0x288] sm:$0xff] %v1197
          %1330 = vst [vmem:[#allocation3 + $0x290] sm:$0xff] %v1198
          %1331 = vst [vmem:[#allocation3 + $0x298] sm:$0xff] %v1199
          %1332 = vst [vmem:[#allocation3 + $0x2a0] sm:$0xff] %v1200
          %1333 = vst [vmem:[#allocation3 + $0x2a8] sm:$0xff] %v1201
          %1334 = vst [vmem:[#allocation3 + $0x2b0] sm:$0xff] %v1202
          %1335 = vst [vmem:[#allocation3 + $0x2b8] sm:$0xff] %v1203
          %1336 = vst [vmem:[#allocation3 + $0x2c0] sm:$0xff] %v1204
          %1337 = vst [vmem:[#allocation3 + $0x2c8] sm:$0xff] %v1205
          %1338 = vst [vmem:[#allocation3 + $0x2d0] sm:$0xff] %v1206
          %1339 = vst [vmem:[#allocation3 + $0x2d8] sm:$0xff] %v1207
          %1340 = vst [vmem:[#allocation3 + $0x2e0] sm:$0xff] %v1208
          %1341 = vst [vmem:[#allocation3 + $0x2e8] sm:$0xff] %v1209
          %1342 = vst [vmem:[#allocation3 + $0x2f0] sm:$0xff] %v1210
          %1343 = vst [vmem:[#allocation3 + $0x2f8] sm:$0xff] %v1211
          %1344 = vst [vmem:[#allocation3 + $0x300] sm:$0xff] %v1212
          %1345 = vst [vmem:[#allocation3 + $0x308] sm:$0xff] %v1213
          %1346 = vst [vmem:[#allocation3 + $0x310] sm:$0xff] %v1214
          %1347 = vst [vmem:[#allocation3 + $0x318] sm:$0xff] %v1215
          %1348 = vst [vmem:[#allocation3 + $0x320] sm:$0xff] %v1216
          %1349 = vst [vmem:[#allocation3 + $0x328] sm:$0xff] %v1217
          %1350 = vst [vmem:[#allocation3 + $0x330] sm:$0xff] %v1218
          %1351 = vst [vmem:[#allocation3 + $0x338] sm:$0xff] %v1219
          %1352 = vst [vmem:[#allocation3 + $0x340] sm:$0xff] %v1220
          %1353 = vst [vmem:[#allocation3 + $0x348] sm:$0xff] %v1221
          %1354 = vst [vmem:[#allocation3 + $0x350] sm:$0xff] %v1222
          %1355 = vst [vmem:[#allocation3 + $0x358] sm:$0xff] %v1223
          %1356 = vst [vmem:[#allocation3 + $0x360] sm:$0xff] %v1224
          %1357 = vst [vmem:[#allocation3 + $0x368] sm:$0xff] %v1225
          %1358 = vst [vmem:[#allocation3 + $0x370] sm:$0xff] %v1226
          %1359 = vst [vmem:[#allocation3 + $0x378] sm:$0xff] %v1227
          %1360 = vst [vmem:[#allocation3 + $0x380] sm:$0xff] %v1228
          %1361 = vst [vmem:[#allocation3 + $0x388] sm:$0xff] %v1229
          %1362 = vst [vmem:[#allocation3 + $0x390] sm:$0xff] %v1230
          %1363 = vst [vmem:[#allocation3 + $0x398] sm:$0xff] %v1231
          %1364 = vst [vmem:[#allocation3 + $0x3a0] sm:$0xff] %v1232
          %1365 = vst [vmem:[#allocation3 + $0x3a8] sm:$0xff] %v1233
          %1366 = vst [vmem:[#allocation3 + $0x3b0] sm:$0xff] %v1234
          %1367 = vst [vmem:[#allocation3 + $0x3b8] sm:$0xff] %v1235
          %1368 = vst [vmem:[#allocation3 + $0x3c0] sm:$0xff] %v1236
          %1369 = vst [vmem:[#allocation3 + $0x3c8] sm:$0xff] %v1237
          %1370 = vst [vmem:[#allocation3 + $0x3d0] sm:$0xff] %v1238
          %1371 = vst [vmem:[#allocation3 + $0x3d8] sm:$0xff] %v1239
          %1372 = vst [vmem:[#allocation3 + $0x3e0] sm:$0xff] %v1240
          %1373 = vst [vmem:[#allocation3 + $0x3e8] sm:$0xff] %v1241
          %1374 = vst [vmem:[#allocation3 + $0x3f0] sm:$0xff] %v1242
          %1375 = vst [vmem:[#allocation3 + $0x3f8] sm:$0xff] %v1243
          %1376 = vst [vmem:[#allocation3 + $0x400] sm:$0xff] %v1244
          %1377 = vst [vmem:[#allocation3 + $0x408] sm:$0xff] %v1245
          %1378 = vst [vmem:[#allocation3 + $0x410] sm:$0xff] %v1246
          %1379 = vst [vmem:[#allocation3 + $0x418] sm:$0xff] %v1247
        $region44: #{tpu_custom_call.1} parent=35 // pred_fallthru
          _
        // Predicated region
        $region45: #{tpu_custom_call.1} parent=35 // pred_check
          %p1380 = pneg %p844
        $region46: #{tpu_custom_call.1} parent=35 // pred_check_branch
          %1382 = sbr.rel (%p1380) target = $region48
        $region47: #{tpu_custom_call.1} parent=35 // pred_region
          %v1383 = vld [vmem:[%s2] ss:$2 sm:$0x3]
          %s1384 = scalar_lea.vmem %s2, 1
          %v1385 = vld [vmem:[%s1384] ss:$2 sm:$0x3]
          %v1386 = vld [vmem:[#allocation3] sm:$0xff]
          %v1387 = vld [vmem:[#allocation3 + $0x8] sm:$0xff]
          %v1388 = vld [vmem:[#allocation3 + $0x10] sm:$0xff]
          %vm1389 = vcmp.ge.s32.totalorder %v1385, 4
          %vm1390 = vcmp.ge.s32.totalorder %v1383, 4
          %vm1391 = vmand %vm1389, %vm1390
          %v1392 = vsel %vm1391, 1, 0
          %v1393 = vlaneseq
          %v1394 = vshrl.u32 %v1393, 7
          %v1395 = vsub.s32 0, %v1394
          %v1396 = vrot.slane %v1392, %v1395
          %v1397 = vlaneseq
          %v1398 = vshrl.u32 %v1397, 7
          %v1399 = vsub.s32 1, %v1398
          %v1400 = vrot.slane %v1392, %v1399
          %vm1401 = vcmp.eq.s32.totalorder %v1396, 1
          %vm1402 = vcmp.eq.s32.totalorder %v1400, 1
          %1406 = vrot.lane.b32.xlu0 %v1386, 68
          %v1407 = vpop.permute.xlu0 %1406
          %1408 = vrot.lane.b32.xlu0 %v1387, 68
          %v1409 = vpop.permute.xlu0 %1408
          %1410 = vrot.lane.b32.xlu0 %v1388, 68
          %v1411 = vpop.permute.xlu0 %1410
          %vm1412 = vcmask 556032
          %v1413 = vsel %vm1412, %v1407, %v1409
          %v1414 = vsel %vm1412, %v1409, %v1411
          %v1417 = vsel %vm1401, %v1413, 0.0
          %v1418 = vsel %vm1402, %v1414, 0.0
          %v1419 = vadd.f32 %v1417, 0.0
          %v1420 = vadd.f32 %v1418, 0.0
          %v1421 = vld [vmem:[#allocation3 + $0x20] sm:$0xff]
          %v1422 = vld [vmem:[#allocation3 + $0x28] sm:$0xff]
          %v1423 = vld [vmem:[#allocation3 + $0x30] sm:$0xff]
          %v1424 = vsel %vm1390, 1, 0
          %v1425 = vlaneseq
          %v1426 = vshrl.u32 %v1425, 7
          %v1427 = vsub.s32 0, %v1426
          %v1428 = vrot.slane %v1424, %v1427
          %v1429 = vlaneseq
          %v1430 = vshrl.u32 %v1429, 7
          %v1431 = vsub.s32 1, %v1430
          %v1432 = vrot.slane %v1424, %v1431
          %vm1433 = vcmp.eq.s32.totalorder %v1428, 1
          %vm1434 = vcmp.eq.s32.totalorder %v1432, 1
          %1438 = vrot.lane.b32.xlu0 %v1421, 64
          %v1439 = vpop.permute.xlu0 %1438
          %1440 = vrot.lane.b32.xlu0 %v1422, 64
          %v1441 = vpop.permute.xlu0 %1440
          %1442 = vrot.lane.b32.xlu0 %v1423, 64
          %v1443 = vpop.permute.xlu0 %1442
          %vm1444 = vcmask 523264
          %v1445 = vsel %vm1444, %v1439, %v1441
          %v1446 = vsel %vm1444, %v1441, %v1443
          %v1449 = vsel %vm1433, %v1445, 0.0
          %v1450 = vsel %vm1434, %v1446, 0.0
          %v1451 = vadd.f32 %v1419, %v1449
          %v1452 = vadd.f32 %v1420, %v1450
          %v1453 = vld [vmem:[#allocation3 + $0x40] sm:$0xff]
          %v1454 = vld [vmem:[#allocation3 + $0x48] sm:$0xff]
          %v1455 = vld [vmem:[#allocation3 + $0x50] sm:$0xff]
          %vm1456 = vcmp.lt.s32.totalorder %v1385, 12
          %vm1457 = vmand %vm1456, %vm1390
          %v1458 = vsel %vm1457, 1, 0
          %v1459 = vlaneseq
          %v1460 = vshrl.u32 %v1459, 7
          %v1461 = vsub.s32 0, %v1460
          %v1462 = vrot.slane %v1458, %v1461
          %v1463 = vlaneseq
          %v1464 = vshrl.u32 %v1463, 7
          %v1465 = vsub.s32 1, %v1464
          %v1466 = vrot.slane %v1458, %v1465
          %vm1467 = vcmp.eq.s32.totalorder %v1462, 1
          %vm1468 = vcmp.eq.s32.totalorder %v1466, 1
          %1472 = vrot.lane.b32.xlu0 %v1453, 60
          %v1473 = vpop.permute.xlu0 %1472
          %1474 = vrot.lane.b32.xlu0 %v1454, 60
          %v1475 = vpop.permute.xlu0 %1474
          %1476 = vrot.lane.b32.xlu0 %v1455, 60
          %v1477 = vpop.permute.xlu0 %1476
          %vm1478 = vcmask 490496
          %v1479 = vsel %vm1478, %v1473, %v1475
          %v1480 = vsel %vm1478, %v1475, %v1477
          %v1483 = vsel %vm1467, %v1479, 0.0
          %v1484 = vsel %vm1468, %v1480, 0.0
          %v1485 = vadd.f32 %v1451, %v1483
          %v1486 = vadd.f32 %v1452, %v1484
          %v1487 = vld [vmem:[#allocation3 + $0x60] sm:$0xff]
          %v1488 = vld [vmem:[#allocation3 + $0x68] sm:$0xff]
          %v1489 = vld [vmem:[#allocation3 + $0x70] sm:$0xff]
          %vm1490 = vcmp.ge.s32.totalorder %v1385, 3
          %vm1491 = vcmp.ge.s32.totalorder %v1383, 3
          %vm1492 = vmand %vm1490, %vm1491
          %v1493 = vsel %vm1492, 1, 0
          %v1494 = vlaneseq
          %v1495 = vshrl.u32 %v1494, 7
          %v1496 = vsub.s32 0, %v1495
          %v1497 = vrot.slane %v1493, %v1496
          %v1498 = vlaneseq
          %v1499 = vshrl.u32 %v1498, 7
          %v1500 = vsub.s32 1, %v1499
          %v1501 = vrot.slane %v1493, %v1500
          %vm1502 = vcmp.eq.s32.totalorder %v1497, 1
          %vm1503 = vcmp.eq.s32.totalorder %v1501, 1
          %1507 = vrot.lane.b32.xlu0 %v1487, 51
          %v1508 = vpop.permute.xlu0 %1507
          %1509 = vrot.lane.b32.xlu0 %v1488, 51
          %v1510 = vpop.permute.xlu0 %1509
          %1511 = vrot.lane.b32.xlu0 %v1489, 51
          %v1512 = vpop.permute.xlu0 %1511
          %vm1513 = vcmask 416768
          %v1514 = vsel %vm1513, %v1508, %v1510
          %v1515 = vsel %vm1513, %v1510, %v1512
          %v1518 = vsel %vm1502, %v1514, 0.0
          %v1519 = vsel %vm1503, %v1515, 0.0
          %v1520 = vadd.f32 %v1485, %v1518
          %v1521 = vadd.f32 %v1486, %v1519
          %v1522 = vld [vmem:[#allocation3 + $0x80] sm:$0xff]
          %v1523 = vld [vmem:[#allocation3 + $0x88] sm:$0xff]
          %v1524 = vld [vmem:[#allocation3 + $0x90] sm:$0xff]
          %v1525 = vsel %vm1491, 1, 0
          %v1526 = vlaneseq
          %v1527 = vshrl.u32 %v1526, 7
          %v1528 = vsub.s32 0, %v1527
          %v1529 = vrot.slane %v1525, %v1528
          %v1530 = vlaneseq
          %v1531 = vshrl.u32 %v1530, 7
          %v1532 = vsub.s32 1, %v1531
          %v1533 = vrot.slane %v1525, %v1532
          %vm1534 = vcmp.eq.s32.totalorder %v1529, 1
          %vm1535 = vcmp.eq.s32.totalorder %v1533, 1
          %1539 = vrot.lane.b32.xlu0 %v1522, 48
          %v1540 = vpop.permute.xlu0 %1539
          %1541 = vrot.lane.b32.xlu0 %v1523, 48
          %v1542 = vpop.permute.xlu0 %1541
          %1543 = vrot.lane.b32.xlu0 %v1524, 48
          %v1544 = vpop.permute.xlu0 %1543
          %vm1545 = vcmask 392192
          %v1546 = vsel %vm1545, %v1540, %v1542
          %v1547 = vsel %vm1545, %v1542, %v1544
          %v1550 = vsel %vm1534, %v1546, 0.0
          %v1551 = vsel %vm1535, %v1547, 0.0
          %v1552 = vadd.f32 %v1520, %v1550
          %v1553 = vadd.f32 %v1521, %v1551
          %v1554 = vld [vmem:[#allocation3 + $0xa0] sm:$0xff]
          %v1555 = vld [vmem:[#allocation3 + $0xa8] sm:$0xff]
          %v1556 = vld [vmem:[#allocation3 + $0xb0] sm:$0xff]
          %vm1557 = vcmp.lt.s32.totalorder %v1385, 13
          %vm1558 = vmand %vm1557, %vm1491
          %v1559 = vsel %vm1558, 1, 0
          %v1560 = vlaneseq
          %v1561 = vshrl.u32 %v1560, 7
          %v1562 = vsub.s32 0, %v1561
          %v1563 = vrot.slane %v1559, %v1562
          %v1564 = vlaneseq
          %v1565 = vshrl.u32 %v1564, 7
          %v1566 = vsub.s32 1, %v1565
          %v1567 = vrot.slane %v1559, %v1566
          %vm1568 = vcmp.eq.s32.totalorder %v1563, 1
          %vm1569 = vcmp.eq.s32.totalorder %v1567, 1
          %1573 = vrot.lane.b32.xlu0 %v1554, 45
          %v1574 = vpop.permute.xlu0 %1573
          %1575 = vrot.lane.b32.xlu0 %v1555, 45
          %v1576 = vpop.permute.xlu0 %1575
          %1577 = vrot.lane.b32.xlu0 %v1556, 45
          %v1578 = vpop.permute.xlu0 %1577
          %vm1579 = vcmask 367616
          %v1580 = vsel %vm1579, %v1574, %v1576
          %v1581 = vsel %vm1579, %v1576, %v1578
          %v1584 = vsel %vm1568, %v1580, 0.0
          %v1585 = vsel %vm1569, %v1581, 0.0
          %v1586 = vadd.f32 %v1552, %v1584
          %v1587 = vadd.f32 %v1553, %v1585
          %v1588 = vld [vmem:[#allocation3 + $0xc0] sm:$0xff]
          %v1589 = vld [vmem:[#allocation3 + $0xc8] sm:$0xff]
          %v1590 = vld [vmem:[#allocation3 + $0xd0] sm:$0xff]
          %vm1591 = vcmp.ge.s32.totalorder %v1385, 2
          %vm1592 = vcmp.ge.s32.totalorder %v1383, 2
          %vm1593 = vmand %vm1591, %vm1592
          %v1594 = vsel %vm1593, 1, 0
          %v1595 = vlaneseq
          %v1596 = vshrl.u32 %v1595, 7
          %v1597 = vsub.s32 0, %v1596
          %v1598 = vrot.slane %v1594, %v1597
          %v1599 = vlaneseq
          %v1600 = vshrl.u32 %v1599, 7
          %v1601 = vsub.s32 1, %v1600
          %v1602 = vrot.slane %v1594, %v1601
          %vm1603 = vcmp.eq.s32.totalorder %v1598, 1
          %vm1604 = vcmp.eq.s32.totalorder %v1602, 1
          %1608 = vrot.lane.b32.xlu0 %v1588, 34
          %v1609 = vpop.permute.xlu0 %1608
          %1610 = vrot.lane.b32.xlu0 %v1589, 34
          %v1611 = vpop.permute.xlu0 %1610
          %1612 = vrot.lane.b32.xlu0 %v1590, 34
          %v1613 = vpop.permute.xlu0 %1612
          %vm1614 = vcmask 277504
          %v1615 = vsel %vm1614, %v1609, %v1611
          %v1616 = vsel %vm1614, %v1611, %v1613
          %v1619 = vsel %vm1603, %v1615, 0.0
          %v1620 = vsel %vm1604, %v1616, 0.0
          %v1621 = vadd.f32 %v1586, %v1619
          %v1622 = vadd.f32 %v1587, %v1620
          %v1623 = vld [vmem:[#allocation3 + $0xe0] sm:$0xff]
          %v1624 = vld [vmem:[#allocation3 + $0xe8] sm:$0xff]
          %v1625 = vld [vmem:[#allocation3 + $0xf0] sm:$0xff]
          %v1626 = vsel %vm1592, 1, 0
          %v1627 = vlaneseq
          %v1628 = vshrl.u32 %v1627, 7
          %v1629 = vsub.s32 0, %v1628
          %v1630 = vrot.slane %v1626, %v1629
          %v1631 = vlaneseq
          %v1632 = vshrl.u32 %v1631, 7
          %v1633 = vsub.s32 1, %v1632
          %v1634 = vrot.slane %v1626, %v1633
          %vm1635 = vcmp.eq.s32.totalorder %v1630, 1
          %vm1636 = vcmp.eq.s32.totalorder %v1634, 1
          %1640 = vrot.lane.b32.xlu0 %v1623, 32
          %v1641 = vpop.permute.xlu0 %1640
          %1642 = vrot.lane.b32.xlu0 %v1624, 32
          %v1643 = vpop.permute.xlu0 %1642
          %1644 = vrot.lane.b32.xlu0 %v1625, 32
          %v1645 = vpop.permute.xlu0 %1644
          %vm1646 = vcmask 261120
          %v1647 = vsel %vm1646, %v1641, %v1643
          %v1648 = vsel %vm1646, %v1643, %v1645
          %v1651 = vsel %vm1635, %v1647, 0.0
          %v1652 = vsel %vm1636, %v1648, 0.0
          %v1653 = vadd.f32 %v1621, %v1651
          %v1654 = vadd.f32 %v1622, %v1652
          %v1655 = vld [vmem:[#allocation3 + $0x100] sm:$0xff]
          %v1656 = vld [vmem:[#allocation3 + $0x108] sm:$0xff]
          %v1657 = vld [vmem:[#allocation3 + $0x110] sm:$0xff]
          %vm1658 = vcmp.lt.s32.totalorder %v1385, 14
          %vm1659 = vmand %vm1658, %vm1592
          %v1660 = vsel %vm1659, 1, 0
          %v1661 = vlaneseq
          %v1662 = vshrl.u32 %v1661, 7
          %v1663 = vsub.s32 0, %v1662
          %v1664 = vrot.slane %v1660, %v1663
          %v1665 = vlaneseq
          %v1666 = vshrl.u32 %v1665, 7
          %v1667 = vsub.s32 1, %v1666
          %v1668 = vrot.slane %v1660, %v1667
          %vm1669 = vcmp.eq.s32.totalorder %v1664, 1
          %vm1670 = vcmp.eq.s32.totalorder %v1668, 1
          %1674 = vrot.lane.b32.xlu0 %v1655, 30
          %v1675 = vpop.permute.xlu0 %1674
          %1676 = vrot.lane.b32.xlu0 %v1656, 30
          %v1677 = vpop.permute.xlu0 %1676
          %1678 = vrot.lane.b32.xlu0 %v1657, 30
          %v1679 = vpop.permute.xlu0 %1678
          %vm1680 = vcmask 244736
          %v1681 = vsel %vm1680, %v1675, %v1677
          %v1682 = vsel %vm1680, %v1677, %v1679
          %v1685 = vsel %vm1669, %v1681, 0.0
          %v1686 = vsel %vm1670, %v1682, 0.0
          %v1687 = vadd.f32 %v1653, %v1685
          %v1688 = vadd.f32 %v1654, %v1686
          %v1689 = vld [vmem:[#allocation3 + $0x120] sm:$0xff]
          %v1690 = vld [vmem:[#allocation3 + $0x128] sm:$0xff]
          %v1691 = vld [vmem:[#allocation3 + $0x130] sm:$0xff]
          %vm1692 = vcmp.ge.s32.totalorder %v1385, 1
          %vm1693 = vcmp.ge.s32.totalorder %v1383, 1
          %vm1694 = vmand %vm1692, %vm1693
          %v1695 = vsel %vm1694, 1, 0
          %v1696 = vlaneseq
          %v1697 = vshrl.u32 %v1696, 7
          %v1698 = vsub.s32 0, %v1697
          %v1699 = vrot.slane %v1695, %v1698
          %v1700 = vlaneseq
          %v1701 = vshrl.u32 %v1700, 7
          %v1702 = vsub.s32 1, %v1701
          %v1703 = vrot.slane %v1695, %v1702
          %vm1704 = vcmp.eq.s32.totalorder %v1699, 1
          %vm1705 = vcmp.eq.s32.totalorder %v1703, 1
          %1709 = vrot.lane.b32.xlu0 %v1689, 17
          %v1710 = vpop.permute.xlu0 %1709
          %1711 = vrot.lane.b32.xlu0 %v1690, 17
          %v1712 = vpop.permute.xlu0 %1711
          %1713 = vrot.lane.b32.xlu0 %v1691, 17
          %v1714 = vpop.permute.xlu0 %1713
          %vm1715 = vcmask 138240
          %v1716 = vsel %vm1715, %v1710, %v1712
          %v1717 = vsel %vm1715, %v1712, %v1714
          %v1720 = vsel %vm1704, %v1716, 0.0
          %v1721 = vsel %vm1705, %v1717, 0.0
          %v1722 = vadd.f32 %v1687, %v1720
          %v1723 = vadd.f32 %v1688, %v1721
          %v1724 = vld [vmem:[#allocation3 + $0x140] sm:$0xff]
          %v1725 = vld [vmem:[#allocation3 + $0x148] sm:$0xff]
          %v1726 = vld [vmem:[#allocation3 + $0x150] sm:$0xff]
          %v1727 = vsel %vm1693, 1, 0
          %v1728 = vlaneseq
          %v1729 = vshrl.u32 %v1728, 7
          %v1730 = vsub.s32 0, %v1729
          %v1731 = vrot.slane %v1727, %v1730
          %v1732 = vlaneseq
          %v1733 = vshrl.u32 %v1732, 7
          %v1734 = vsub.s32 1, %v1733
          %v1735 = vrot.slane %v1727, %v1734
          %vm1736 = vcmp.eq.s32.totalorder %v1731, 1
          %vm1737 = vcmp.eq.s32.totalorder %v1735, 1
          %1741 = vrot.lane.b32.xlu0 %v1724, 16
          %v1742 = vpop.permute.xlu0 %1741
          %1743 = vrot.lane.b32.xlu0 %v1725, 16
          %v1744 = vpop.permute.xlu0 %1743
          %1745 = vrot.lane.b32.xlu0 %v1726, 16
          %v1746 = vpop.permute.xlu0 %1745
          %vm1747 = vcmask 130048
          %v1748 = vsel %vm1747, %v1742, %v1744
          %v1749 = vsel %vm1747, %v1744, %v1746
          %v1752 = vsel %vm1736, %v1748, 0.0
          %v1753 = vsel %vm1737, %v1749, 0.0
          %v1754 = vadd.f32 %v1722, %v1752
          %v1755 = vadd.f32 %v1723, %v1753
          %v1756 = vld [vmem:[#allocation3 + $0x160] sm:$0xff]
          %v1757 = vld [vmem:[#allocation3 + $0x168] sm:$0xff]
          %v1758 = vld [vmem:[#allocation3 + $0x170] sm:$0xff]
          %vm1759 = vcmp.lt.s32.totalorder %v1385, 15
          %vm1760 = vmand %vm1759, %vm1693
          %v1761 = vsel %vm1760, 1, 0
          %v1762 = vlaneseq
          %v1763 = vshrl.u32 %v1762, 7
          %v1764 = vsub.s32 0, %v1763
          %v1765 = vrot.slane %v1761, %v1764
          %v1766 = vlaneseq
          %v1767 = vshrl.u32 %v1766, 7
          %v1768 = vsub.s32 1, %v1767
          %v1769 = vrot.slane %v1761, %v1768
          %vm1770 = vcmp.eq.s32.totalorder %v1765, 1
          %vm1771 = vcmp.eq.s32.totalorder %v1769, 1
          %1775 = vrot.lane.b32.xlu0 %v1756, 15
          %v1776 = vpop.permute.xlu0 %1775
          %1777 = vrot.lane.b32.xlu0 %v1757, 15
          %v1778 = vpop.permute.xlu0 %1777
          %1779 = vrot.lane.b32.xlu0 %v1758, 15
          %v1780 = vpop.permute.xlu0 %1779
          %vm1781 = vcmask 121856
          %v1782 = vsel %vm1781, %v1776, %v1778
          %v1783 = vsel %vm1781, %v1778, %v1780
          %v1786 = vsel %vm1770, %v1782, 0.0
          %v1787 = vsel %vm1771, %v1783, 0.0
          %v1788 = vadd.f32 %v1754, %v1786
          %v1789 = vadd.f32 %v1755, %v1787
          %v1790 = vld [vmem:[#allocation3 + $0x180] sm:$0xff]
          %v1791 = vld [vmem:[#allocation3 + $0x188] sm:$0xff]
          %v1792 = vld [vmem:[#allocation3 + $0x190] sm:$0xff]
          %v1793 = vsel %vm1389, 1, 0
          %v1794 = vlaneseq
          %v1795 = vshrl.u32 %v1794, 7
          %v1796 = vsub.s32 0, %v1795
          %v1797 = vrot.slane %v1793, %v1796
          %v1798 = vlaneseq
          %v1799 = vshrl.u32 %v1798, 7
          %v1800 = vsub.s32 1, %v1799
          %v1801 = vrot.slane %v1793, %v1800
          %vm1802 = vcmp.eq.s32.totalorder %v1797, 1
          %vm1803 = vcmp.eq.s32.totalorder %v1801, 1
          %1807 = vrot.lane.b32.xlu0 %v1790, 4
          %v1808 = vpop.permute.xlu0 %1807
          %1809 = vrot.lane.b32.xlu0 %v1791, 4
          %v1810 = vpop.permute.xlu0 %1809
          %1811 = vrot.lane.b32.xlu0 %v1792, 4
          %v1812 = vpop.permute.xlu0 %1811
          %v1813 = vsel %vm377, %v1808, %v1810
          %v1814 = vsel %vm377, %v1810, %v1812
          %v1817 = vsel %vm1802, %v1813, 0.0
          %v1818 = vsel %vm1803, %v1814, 0.0
          %v1819 = vadd.f32 %v1788, %v1817
          %v1820 = vadd.f32 %v1789, %v1818
          %v1821 = vld [vmem:[#allocation3 + $0x1a0] sm:$0xff]
          %v1822 = vld [vmem:[#allocation3 + $0x1a8] sm:$0xff]
          %v1823 = vld [vmem:[#allocation3 + $0x1b0] sm:$0xff]
          %v1824 = vsel %vm1490, 1, 0
          %v1825 = vlaneseq
          %v1826 = vshrl.u32 %v1825, 7
          %v1827 = vsub.s32 0, %v1826
          %v1828 = vrot.slane %v1824, %v1827
          %v1829 = vlaneseq
          %v1830 = vshrl.u32 %v1829, 7
          %v1831 = vsub.s32 1, %v1830
          %v1832 = vrot.slane %v1824, %v1831
          %vm1833 = vcmp.eq.s32.totalorder %v1828, 1
          %vm1834 = vcmp.eq.s32.totalorder %v1832, 1
          %1838 = vrot.lane.b32.xlu0 %v1821, 3
          %v1839 = vpop.permute.xlu0 %1838
          %1840 = vrot.lane.b32.xlu0 %v1822, 3
          %v1841 = vpop.permute.xlu0 %1840
          %1842 = vrot.lane.b32.xlu0 %v1823, 3
          %v1843 = vpop.permute.xlu0 %1842
          %vm1844 = vcmask 23552
          %v1845 = vsel %vm1844, %v1839, %v1841
          %v1846 = vsel %vm1844, %v1841, %v1843
          %v1849 = vsel %vm1833, %v1845, 0.0
          %v1850 = vsel %vm1834, %v1846, 0.0
          %v1851 = vadd.f32 %v1819, %v1849
          %v1852 = vadd.f32 %v1820, %v1850
          %v1853 = vld [vmem:[#allocation3 + $0x1c0] sm:$0xff]
          %v1854 = vld [vmem:[#allocation3 + $0x1c8] sm:$0xff]
          %v1855 = vld [vmem:[#allocation3 + $0x1d0] sm:$0xff]
          %v1856 = vsel %vm1591, 1, 0
          %v1857 = vlaneseq
          %v1858 = vshrl.u32 %v1857, 7
          %v1859 = vsub.s32 0, %v1858
          %v1860 = vrot.slane %v1856, %v1859
          %v1861 = vlaneseq
          %v1862 = vshrl.u32 %v1861, 7
          %v1863 = vsub.s32 1, %v1862
          %v1864 = vrot.slane %v1856, %v1863
          %vm1865 = vcmp.eq.s32.totalorder %v1860, 1
          %vm1866 = vcmp.eq.s32.totalorder %v1864, 1
          %1870 = vrot.lane.b32.xlu0 %v1853, 2
          %v1871 = vpop.permute.xlu0 %1870
          %1872 = vrot.lane.b32.xlu0 %v1854, 2
          %v1873 = vpop.permute.xlu0 %1872
          %1874 = vrot.lane.b32.xlu0 %v1855, 2
          %v1875 = vpop.permute.xlu0 %1874
          %vm1876 = vcmask 15360
          %v1877 = vsel %vm1876, %v1871, %v1873
          %v1878 = vsel %vm1876, %v1873, %v1875
          %v1881 = vsel %vm1865, %v1877, 0.0
          %v1882 = vsel %vm1866, %v1878, 0.0
          %v1883 = vadd.f32 %v1851, %v1881
          %v1884 = vadd.f32 %v1852, %v1882
          %v1885 = vld [vmem:[#allocation3 + $0x1e0] sm:$0xff]
          %v1886 = vld [vmem:[#allocation3 + $0x1e8] sm:$0xff]
          %v1887 = vld [vmem:[#allocation3 + $0x1f0] sm:$0xff]
          %v1888 = vsel %vm1692, 1, 0
          %v1889 = vlaneseq
          %v1890 = vshrl.u32 %v1889, 7
          %v1891 = vsub.s32 0, %v1890
          %v1892 = vrot.slane %v1888, %v1891
          %v1893 = vlaneseq
          %v1894 = vshrl.u32 %v1893, 7
          %v1895 = vsub.s32 1, %v1894
          %v1896 = vrot.slane %v1888, %v1895
          %vm1897 = vcmp.eq.s32.totalorder %v1892, 1
          %vm1898 = vcmp.eq.s32.totalorder %v1896, 1
          %1902 = vrot.lane.b32.xlu0 %v1885, 1
          %v1903 = vpop.permute.xlu0 %1902
          %1904 = vrot.lane.b32.xlu0 %v1886, 1
          %v1905 = vpop.permute.xlu0 %1904
          %1906 = vrot.lane.b32.xlu0 %v1887, 1
          %v1907 = vpop.permute.xlu0 %1906
          %vm1908 = vcmask 7168
          %v1909 = vsel %vm1908, %v1903, %v1905
          %v1910 = vsel %vm1908, %v1905, %v1907
          %v1913 = vsel %vm1897, %v1909, 0.0
          %v1914 = vsel %vm1898, %v1910, 0.0
          %v1915 = vadd.f32 %v1883, %v1913
          %v1916 = vadd.f32 %v1884, %v1914
          %v1917 = vld [vmem:[#allocation3 + $0x208] sm:$0xff]
          %v1918 = vld [vmem:[#allocation3 + $0x210] sm:$0xff]
          %v1919 = vadd.f32 %v1915, %v1917
          %v1920 = vadd.f32 %v1916, %v1918
          %v1921 = vld [vmem:[#allocation3 + $0x228] sm:$0xff]
          %v1922 = vld [vmem:[#allocation3 + $0x230] sm:$0xff]
          %v1923 = vld [vmem:[#allocation3 + $0x238] sm:$0xff]
          %v1924 = vsel %vm1759, 1, 0
          %v1925 = vlaneseq
          %v1926 = vshrl.u32 %v1925, 7
          %v1927 = vsub.s32 0, %v1926
          %v1928 = vrot.slane %v1924, %v1927
          %v1929 = vlaneseq
          %v1930 = vshrl.u32 %v1929, 7
          %v1931 = vsub.s32 1, %v1930
          %v1932 = vrot.slane %v1924, %v1931
          %vm1933 = vcmp.eq.s32.totalorder %v1928, 1
          %vm1934 = vcmp.eq.s32.totalorder %v1932, 1
          %1938 = vrot.lane.b32.xlu0 %v1921, 127
          %v1939 = vpop.permute.xlu0 %1938
          %1940 = vrot.lane.b32.xlu0 %v1922, 127
          %v1941 = vpop.permute.xlu0 %1940
          %1942 = vrot.lane.b32.xlu0 %v1923, 127
          %v1943 = vpop.permute.xlu0 %1942
          %vm1944 = vcmask 1039360
          %v1945 = vsel %vm1944, %v1939, %v1941
          %v1946 = vsel %vm1944, %v1941, %v1943
          %v1949 = vsel %vm1933, %v1945, 0.0
          %v1950 = vsel %vm1934, %v1946, 0.0
          %v1951 = vadd.f32 %v1919, %v1949
          %v1952 = vadd.f32 %v1920, %v1950
          %v1953 = vld [vmem:[#allocation3 + $0x248] sm:$0xff]
          %v1954 = vld [vmem:[#allocation3 + $0x250] sm:$0xff]
          %v1955 = vld [vmem:[#allocation3 + $0x258] sm:$0xff]
          %v1956 = vsel %vm1658, 1, 0
          %v1957 = vlaneseq
          %v1958 = vshrl.u32 %v1957, 7
          %v1959 = vsub.s32 0, %v1958
          %v1960 = vrot.slane %v1956, %v1959
          %v1961 = vlaneseq
          %v1962 = vshrl.u32 %v1961, 7
          %v1963 = vsub.s32 1, %v1962
          %v1964 = vrot.slane %v1956, %v1963
          %vm1965 = vcmp.eq.s32.totalorder %v1960, 1
          %vm1966 = vcmp.eq.s32.totalorder %v1964, 1
          %1970 = vrot.lane.b32.xlu0 %v1953, 126
          %v1971 = vpop.permute.xlu0 %1970
          %1972 = vrot.lane.b32.xlu0 %v1954, 126
          %v1973 = vpop.permute.xlu0 %1972
          %1974 = vrot.lane.b32.xlu0 %v1955, 126
          %v1975 = vpop.permute.xlu0 %1974
          %vm1976 = vcmask 1031168
          %v1977 = vsel %vm1976, %v1971, %v1973
          %v1978 = vsel %vm1976, %v1973, %v1975
          %v1981 = vsel %vm1965, %v1977, 0.0
          %v1982 = vsel %vm1966, %v1978, 0.0
          %v1983 = vadd.f32 %v1951, %v1981
          %v1984 = vadd.f32 %v1952, %v1982
          %v1985 = vld [vmem:[#allocation3 + $0x268] sm:$0xff]
          %v1986 = vld [vmem:[#allocation3 + $0x270] sm:$0xff]
          %v1987 = vld [vmem:[#allocation3 + $0x278] sm:$0xff]
          %v1988 = vsel %vm1557, 1, 0
          %v1989 = vlaneseq
          %v1990 = vshrl.u32 %v1989, 7
          %v1991 = vsub.s32 0, %v1990
          %v1992 = vrot.slane %v1988, %v1991
          %v1993 = vlaneseq
          %v1994 = vshrl.u32 %v1993, 7
          %v1995 = vsub.s32 1, %v1994
          %v1996 = vrot.slane %v1988, %v1995
          %vm1997 = vcmp.eq.s32.totalorder %v1992, 1
          %vm1998 = vcmp.eq.s32.totalorder %v1996, 1
          %2002 = vrot.lane.b32.xlu0 %v1985, 125
          %v2003 = vpop.permute.xlu0 %2002
          %2004 = vrot.lane.b32.xlu0 %v1986, 125
          %v2005 = vpop.permute.xlu0 %2004
          %2006 = vrot.lane.b32.xlu0 %v1987, 125
          %v2007 = vpop.permute.xlu0 %2006
          %vm2008 = vcmask 1022976
          %v2009 = vsel %vm2008, %v2003, %v2005
          %v2010 = vsel %vm2008, %v2005, %v2007
          %v2013 = vsel %vm1997, %v2009, 0.0
          %v2014 = vsel %vm1998, %v2010, 0.0
          %v2015 = vadd.f32 %v1983, %v2013
          %v2016 = vadd.f32 %v1984, %v2014
          %v2017 = vld [vmem:[#allocation3 + $0x288] sm:$0xff]
          %v2018 = vld [vmem:[#allocation3 + $0x290] sm:$0xff]
          %v2019 = vld [vmem:[#allocation3 + $0x298] sm:$0xff]
          %v2020 = vsel %vm1456, 1, 0
          %v2021 = vlaneseq
          %v2022 = vshrl.u32 %v2021, 7
          %v2023 = vsub.s32 0, %v2022
          %v2024 = vrot.slane %v2020, %v2023
          %v2025 = vlaneseq
          %v2026 = vshrl.u32 %v2025, 7
          %v2027 = vsub.s32 1, %v2026
          %v2028 = vrot.slane %v2020, %v2027
          %vm2029 = vcmp.eq.s32.totalorder %v2024, 1
          %vm2030 = vcmp.eq.s32.totalorder %v2028, 1
          %2034 = vrot.lane.b32.xlu0 %v2017, 124
          %v2035 = vpop.permute.xlu0 %2034
          %2036 = vrot.lane.b32.xlu0 %v2018, 124
          %v2037 = vpop.permute.xlu0 %2036
          %2038 = vrot.lane.b32.xlu0 %v2019, 124
          %v2039 = vpop.permute.xlu0 %2038
          %vm2040 = vcmask 1014784
          %v2041 = vsel %vm2040, %v2035, %v2037
          %v2042 = vsel %vm2040, %v2037, %v2039
          %v2045 = vsel %vm2029, %v2041, 0.0
          %v2046 = vsel %vm2030, %v2042, 0.0
          %v2047 = vadd.f32 %v2015, %v2045
          %v2048 = vadd.f32 %v2016, %v2046
          %v2049 = vld [vmem:[#allocation3 + $0x2a8] sm:$0xff]
          %v2050 = vld [vmem:[#allocation3 + $0x2b0] sm:$0xff]
          %v2051 = vld [vmem:[#allocation3 + $0x2b8] sm:$0xff]
          %vm2052 = vcmp.lt.s32.totalorder %v1383, 15
          %vm2053 = vmand %vm1692, %vm2052
          %v2054 = vsel %vm2053, 1, 0
          %v2055 = vlaneseq
          %v2056 = vshrl.u32 %v2055, 7
          %v2057 = vsub.s32 0, %v2056
          %v2058 = vrot.slane %v2054, %v2057
          %v2059 = vlaneseq
          %v2060 = vshrl.u32 %v2059, 7
          %v2061 = vsub.s32 1, %v2060
          %v2062 = vrot.slane %v2054, %v2061
          %vm2063 = vcmp.eq.s32.totalorder %v2058, 1
          %vm2064 = vcmp.eq.s32.totalorder %v2062, 1
          %2068 = vrot.lane.b32.xlu0 %v2049, 113
          %v2069 = vpop.permute.xlu0 %2068
          %2070 = vrot.lane.b32.xlu0 %v2050, 113
          %v2071 = vpop.permute.xlu0 %2070
          %2072 = vrot.lane.b32.xlu0 %v2051, 113
          %v2073 = vpop.permute.xlu0 %2072
          %vm2074 = vcmask 924672
          %v2075 = vsel %vm2074, %v2069, %v2071
          %v2076 = vsel %vm2074, %v2071, %v2073
          %v2079 = vsel %vm2063, %v2075, 0.0
          %v2080 = vsel %vm2064, %v2076, 0.0
          %v2081 = vadd.f32 %v2047, %v2079
          %v2082 = vadd.f32 %v2048, %v2080
          %v2083 = vld [vmem:[#allocation3 + $0x2c8] sm:$0xff]
          %v2084 = vld [vmem:[#allocation3 + $0x2d0] sm:$0xff]
          %v2085 = vld [vmem:[#allocation3 + $0x2d8] sm:$0xff]
          %v2086 = vsel %vm2052, 1, 0
          %v2087 = vlaneseq
          %v2088 = vshrl.u32 %v2087, 7
          %v2089 = vsub.s32 0, %v2088
          %v2090 = vrot.slane %v2086, %v2089
          %v2091 = vlaneseq
          %v2092 = vshrl.u32 %v2091, 7
          %v2093 = vsub.s32 1, %v2092
          %v2094 = vrot.slane %v2086, %v2093
          %vm2095 = vcmp.eq.s32.totalorder %v2090, 1
          %vm2096 = vcmp.eq.s32.totalorder %v2094, 1
          %2100 = vrot.lane.b32.xlu0 %v2083, 112
          %v2101 = vpop.permute.xlu0 %2100
          %2102 = vrot.lane.b32.xlu0 %v2084, 112
          %v2103 = vpop.permute.xlu0 %2102
          %2104 = vrot.lane.b32.xlu0 %v2085, 112
          %v2105 = vpop.permute.xlu0 %2104
          %vm2106 = vcmask 916480
          %v2107 = vsel %vm2106, %v2101, %v2103
          %v2108 = vsel %vm2106, %v2103, %v2105
          %v2111 = vsel %vm2095, %v2107, 0.0
          %v2112 = vsel %vm2096, %v2108, 0.0
          %v2113 = vadd.f32 %v2081, %v2111
          %v2114 = vadd.f32 %v2082, %v2112
          %v2115 = vld [vmem:[#allocation3 + $0x2e8] sm:$0xff]
          %v2116 = vld [vmem:[#allocation3 + $0x2f0] sm:$0xff]
          %v2117 = vld [vmem:[#allocation3 + $0x2f8] sm:$0xff]
          %vm2118 = vmand %vm1759, %vm2052
          %v2119 = vsel %vm2118, 1, 0
          %v2120 = vlaneseq
          %v2121 = vshrl.u32 %v2120, 7
          %v2122 = vsub.s32 0, %v2121
          %v2123 = vrot.slane %v2119, %v2122
          %v2124 = vlaneseq
          %v2125 = vshrl.u32 %v2124, 7
          %v2126 = vsub.s32 1, %v2125
          %v2127 = vrot.slane %v2119, %v2126
          %vm2128 = vcmp.eq.s32.totalorder %v2123, 1
          %vm2129 = vcmp.eq.s32.totalorder %v2127, 1
          %2133 = vrot.lane.b32.xlu0 %v2115, 111
          %v2134 = vpop.permute.xlu0 %2133
          %2135 = vrot.lane.b32.xlu0 %v2116, 111
          %v2136 = vpop.permute.xlu0 %2135
          %2137 = vrot.lane.b32.xlu0 %v2117, 111
          %v2138 = vpop.permute.xlu0 %2137
          %vm2139 = vcmask 908288
          %v2140 = vsel %vm2139, %v2134, %v2136
          %v2141 = vsel %vm2139, %v2136, %v2138
          %v2144 = vsel %vm2128, %v2140, 0.0
          %v2145 = vsel %vm2129, %v2141, 0.0
          %v2146 = vadd.f32 %v2113, %v2144
          %v2147 = vadd.f32 %v2114, %v2145
          %v2148 = vld [vmem:[#allocation3 + $0x308] sm:$0xff]
          %v2149 = vld [vmem:[#allocation3 + $0x310] sm:$0xff]
          %v2150 = vld [vmem:[#allocation3 + $0x318] sm:$0xff]
          %vm2151 = vcmp.lt.s32.totalorder %v1383, 14
          %vm2152 = vmand %vm1591, %vm2151
          %v2153 = vsel %vm2152, 1, 0
          %v2154 = vlaneseq
          %v2155 = vshrl.u32 %v2154, 7
          %v2156 = vsub.s32 0, %v2155
          %v2157 = vrot.slane %v2153, %v2156
          %v2158 = vlaneseq
          %v2159 = vshrl.u32 %v2158, 7
          %v2160 = vsub.s32 1, %v2159
          %v2161 = vrot.slane %v2153, %v2160
          %vm2162 = vcmp.eq.s32.totalorder %v2157, 1
          %vm2163 = vcmp.eq.s32.totalorder %v2161, 1
          %2167 = vrot.lane.b32.xlu0 %v2148, 98
          %v2168 = vpop.permute.xlu0 %2167
          %2169 = vrot.lane.b32.xlu0 %v2149, 98
          %v2170 = vpop.permute.xlu0 %2169
          %2171 = vrot.lane.b32.xlu0 %v2150, 98
          %v2172 = vpop.permute.xlu0 %2171
          %vm2173 = vcmask 801792
          %v2174 = vsel %vm2173, %v2168, %v2170
          %v2175 = vsel %vm2173, %v2170, %v2172
          %v2178 = vsel %vm2162, %v2174, 0.0
          %v2179 = vsel %vm2163, %v2175, 0.0
          %v2180 = vadd.f32 %v2146, %v2178
          %v2181 = vadd.f32 %v2147, %v2179
          %v2182 = vld [vmem:[#allocation3 + $0x328] sm:$0xff]
          %v2183 = vld [vmem:[#allocation3 + $0x330] sm:$0xff]
          %v2184 = vld [vmem:[#allocation3 + $0x338] sm:$0xff]
          %v2185 = vsel %vm2151, 1, 0
          %v2186 = vlaneseq
          %v2187 = vshrl.u32 %v2186, 7
          %v2188 = vsub.s32 0, %v2187
          %v2189 = vrot.slane %v2185, %v2188
          %v2190 = vlaneseq
          %v2191 = vshrl.u32 %v2190, 7
          %v2192 = vsub.s32 1, %v2191
          %v2193 = vrot.slane %v2185, %v2192
          %vm2194 = vcmp.eq.s32.totalorder %v2189, 1
          %vm2195 = vcmp.eq.s32.totalorder %v2193, 1
          %2199 = vrot.lane.b32.xlu0 %v2182, 96
          %v2200 = vpop.permute.xlu0 %2199
          %2201 = vrot.lane.b32.xlu0 %v2183, 96
          %v2202 = vpop.permute.xlu0 %2201
          %2203 = vrot.lane.b32.xlu0 %v2184, 96
          %v2204 = vpop.permute.xlu0 %2203
          %vm2205 = vcmask 785408
          %v2206 = vsel %vm2205, %v2200, %v2202
          %v2207 = vsel %vm2205, %v2202, %v2204
          %v2210 = vsel %vm2194, %v2206, 0.0
          %v2211 = vsel %vm2195, %v2207, 0.0
          %v2212 = vadd.f32 %v2180, %v2210
          %v2213 = vadd.f32 %v2181, %v2211
          %v2214 = vld [vmem:[#allocation3 + $0x348] sm:$0xff]
          %v2215 = vld [vmem:[#allocation3 + $0x350] sm:$0xff]
          %v2216 = vld [vmem:[#allocation3 + $0x358] sm:$0xff]
          %vm2217 = vmand %vm1658, %vm2151
          %v2218 = vsel %vm2217, 1, 0
          %v2219 = vlaneseq
          %v2220 = vshrl.u32 %v2219, 7
          %v2221 = vsub.s32 0, %v2220
          %v2222 = vrot.slane %v2218, %v2221
          %v2223 = vlaneseq
          %v2224 = vshrl.u32 %v2223, 7
          %v2225 = vsub.s32 1, %v2224
          %v2226 = vrot.slane %v2218, %v2225
          %vm2227 = vcmp.eq.s32.totalorder %v2222, 1
          %vm2228 = vcmp.eq.s32.totalorder %v2226, 1
          %2232 = vrot.lane.b32.xlu0 %v2214, 94
          %v2233 = vpop.permute.xlu0 %2232
          %2234 = vrot.lane.b32.xlu0 %v2215, 94
          %v2235 = vpop.permute.xlu0 %2234
          %2236 = vrot.lane.b32.xlu0 %v2216, 94
          %v2237 = vpop.permute.xlu0 %2236
          %vm2238 = vcmask 769024
          %v2239 = vsel %vm2238, %v2233, %v2235
          %v2240 = vsel %vm2238, %v2235, %v2237
          %v2243 = vsel %vm2227, %v2239, 0.0
          %v2244 = vsel %vm2228, %v2240, 0.0
          %v2245 = vadd.f32 %v2212, %v2243
          %v2246 = vadd.f32 %v2213, %v2244
          %v2247 = vld [vmem:[#allocation3 + $0x368] sm:$0xff]
          %v2248 = vld [vmem:[#allocation3 + $0x370] sm:$0xff]
          %v2249 = vld [vmem:[#allocation3 + $0x378] sm:$0xff]
          %vm2250 = vcmp.lt.s32.totalorder %v1383, 13
          %vm2251 = vmand %vm1490, %vm2250
          %v2252 = vsel %vm2251, 1, 0
          %v2253 = vlaneseq
          %v2254 = vshrl.u32 %v2253, 7
          %v2255 = vsub.s32 0, %v2254
          %v2256 = vrot.slane %v2252, %v2255
          %v2257 = vlaneseq
          %v2258 = vshrl.u32 %v2257, 7
          %v2259 = vsub.s32 1, %v2258
          %v2260 = vrot.slane %v2252, %v2259
          %vm2261 = vcmp.eq.s32.totalorder %v2256, 1
          %vm2262 = vcmp.eq.s32.totalorder %v2260, 1
          %2266 = vrot.lane.b32.xlu0 %v2247, 83
          %v2267 = vpop.permute.xlu0 %2266
          %2268 = vrot.lane.b32.xlu0 %v2248, 83
          %v2269 = vpop.permute.xlu0 %2268
          %2270 = vrot.lane.b32.xlu0 %v2249, 83
          %v2271 = vpop.permute.xlu0 %2270
          %vm2272 = vcmask 678912
          %v2273 = vsel %vm2272, %v2267, %v2269
          %v2274 = vsel %vm2272, %v2269, %v2271
          %v2277 = vsel %vm2261, %v2273, 0.0
          %v2278 = vsel %vm2262, %v2274, 0.0
          %v2279 = vadd.f32 %v2245, %v2277
          %v2280 = vadd.f32 %v2246, %v2278
          %v2281 = vld [vmem:[#allocation3 + $0x388] sm:$0xff]
          %v2282 = vld [vmem:[#allocation3 + $0x390] sm:$0xff]
          %v2283 = vld [vmem:[#allocation3 + $0x398] sm:$0xff]
          %v2284 = vsel %vm2250, 1, 0
          %v2285 = vlaneseq
          %v2286 = vshrl.u32 %v2285, 7
          %v2287 = vsub.s32 0, %v2286
          %v2288 = vrot.slane %v2284, %v2287
          %v2289 = vlaneseq
          %v2290 = vshrl.u32 %v2289, 7
          %v2291 = vsub.s32 1, %v2290
          %v2292 = vrot.slane %v2284, %v2291
          %vm2293 = vcmp.eq.s32.totalorder %v2288, 1
          %vm2294 = vcmp.eq.s32.totalorder %v2292, 1
          %2298 = vrot.lane.b32.xlu0 %v2281, 80
          %v2299 = vpop.permute.xlu0 %2298
          %2300 = vrot.lane.b32.xlu0 %v2282, 80
          %v2301 = vpop.permute.xlu0 %2300
          %2302 = vrot.lane.b32.xlu0 %v2283, 80
          %v2303 = vpop.permute.xlu0 %2302
          %vm2304 = vcmask 654336
          %v2305 = vsel %vm2304, %v2299, %v2301
          %v2306 = vsel %vm2304, %v2301, %v2303
          %v2309 = vsel %vm2293, %v2305, 0.0
          %v2310 = vsel %vm2294, %v2306, 0.0
          %v2311 = vadd.f32 %v2279, %v2309
          %v2312 = vadd.f32 %v2280, %v2310
          %v2313 = vld [vmem:[#allocation3 + $0x3a8] sm:$0xff]
          %v2314 = vld [vmem:[#allocation3 + $0x3b0] sm:$0xff]
          %v2315 = vld [vmem:[#allocation3 + $0x3b8] sm:$0xff]
          %vm2316 = vmand %vm1557, %vm2250
          %v2317 = vsel %vm2316, 1, 0
          %v2318 = vlaneseq
          %v2319 = vshrl.u32 %v2318, 7
          %v2320 = vsub.s32 0, %v2319
          %v2321 = vrot.slane %v2317, %v2320
          %v2322 = vlaneseq
          %v2323 = vshrl.u32 %v2322, 7
          %v2324 = vsub.s32 1, %v2323
          %v2325 = vrot.slane %v2317, %v2324
          %vm2326 = vcmp.eq.s32.totalorder %v2321, 1
          %vm2327 = vcmp.eq.s32.totalorder %v2325, 1
          %2331 = vrot.lane.b32.xlu0 %v2313, 77
          %v2332 = vpop.permute.xlu0 %2331
          %2333 = vrot.lane.b32.xlu0 %v2314, 77
          %v2334 = vpop.permute.xlu0 %2333
          %2335 = vrot.lane.b32.xlu0 %v2315, 77
          %v2336 = vpop.permute.xlu0 %2335
          %vm2337 = vcmask 629760
          %v2338 = vsel %vm2337, %v2332, %v2334
          %v2339 = vsel %vm2337, %v2334, %v2336
          %v2342 = vsel %vm2326, %v2338, 0.0
          %v2343 = vsel %vm2327, %v2339, 0.0
          %v2344 = vadd.f32 %v2311, %v2342
          %v2345 = vadd.f32 %v2312, %v2343
          %v2346 = vld [vmem:[#allocation3 + $0x3c8] sm:$0xff]
          %v2347 = vld [vmem:[#allocation3 + $0x3d0] sm:$0xff]
          %v2348 = vld [vmem:[#allocation3 + $0x3d8] sm:$0xff]
          %vm2349 = vcmp.lt.s32.totalorder %v1383, 12
          %vm2350 = vmand %vm1389, %vm2349
          %v2351 = vsel %vm2350, 1, 0
          %v2352 = vlaneseq
          %v2353 = vshrl.u32 %v2352, 7
          %v2354 = vsub.s32 0, %v2353
          %v2355 = vrot.slane %v2351, %v2354
          %v2356 = vlaneseq
          %v2357 = vshrl.u32 %v2356, 7
          %v2358 = vsub.s32 1, %v2357
          %v2359 = vrot.slane %v2351, %v2358
          %vm2360 = vcmp.eq.s32.totalorder %v2355, 1
          %vm2361 = vcmp.eq.s32.totalorder %v2359, 1
          %2365 = vrot.lane.b32.xlu0 %v2346, 68
          %v2366 = vpop.permute.xlu0 %2365
          %2367 = vrot.lane.b32.xlu0 %v2347, 68
          %v2368 = vpop.permute.xlu0 %2367
          %2369 = vrot.lane.b32.xlu0 %v2348, 68
          %v2370 = vpop.permute.xlu0 %2369
          %v2371 = vsel %vm1412, %v2366, %v2368
          %v2372 = vsel %vm1412, %v2368, %v2370
          %v2375 = vsel %vm2360, %v2371, 0.0
          %v2376 = vsel %vm2361, %v2372, 0.0
          %v2377 = vadd.f32 %v2344, %v2375
          %v2378 = vadd.f32 %v2345, %v2376
          %v2379 = vld [vmem:[#allocation3 + $0x3e8] sm:$0xff]
          %v2380 = vld [vmem:[#allocation3 + $0x3f0] sm:$0xff]
          %v2381 = vld [vmem:[#allocation3 + $0x3f8] sm:$0xff]
          %v2382 = vsel %vm2349, 1, 0
          %v2383 = vlaneseq
          %v2384 = vshrl.u32 %v2383, 7
          %v2385 = vsub.s32 0, %v2384
          %v2386 = vrot.slane %v2382, %v2385
          %v2387 = vlaneseq
          %v2388 = vshrl.u32 %v2387, 7
          %v2389 = vsub.s32 1, %v2388
          %v2390 = vrot.slane %v2382, %v2389
          %vm2391 = vcmp.eq.s32.totalorder %v2386, 1
          %vm2392 = vcmp.eq.s32.totalorder %v2390, 1
          %2396 = vrot.lane.b32.xlu0 %v2379, 64
          %v2397 = vpop.permute.xlu0 %2396
          %2398 = vrot.lane.b32.xlu0 %v2380, 64
          %v2399 = vpop.permute.xlu0 %2398
          %2400 = vrot.lane.b32.xlu0 %v2381, 64
          %v2401 = vpop.permute.xlu0 %2400
          %v2402 = vsel %vm1444, %v2397, %v2399
          %v2403 = vsel %vm1444, %v2399, %v2401
          %v2406 = vsel %vm2391, %v2402, 0.0
          %v2407 = vsel %vm2392, %v2403, 0.0
          %v2408 = vadd.f32 %v2377, %v2406
          %v2409 = vadd.f32 %v2378, %v2407
          %v2410 = vld [vmem:[#allocation3 + $0x408] sm:$0xff]
          %v2411 = vld [vmem:[#allocation3 + $0x410] sm:$0xff]
          %v2412 = vld [vmem:[#allocation3 + $0x418] sm:$0xff]
          %vm2413 = vmand %vm1456, %vm2349
          %v2414 = vsel %vm2413, 1, 0
          %v2415 = vlaneseq
          %v2416 = vshrl.u32 %v2415, 7
          %v2417 = vsub.s32 0, %v2416
          %v2418 = vrot.slane %v2414, %v2417
          %v2419 = vlaneseq
          %v2420 = vshrl.u32 %v2419, 7
          %v2421 = vsub.s32 1, %v2420
          %v2422 = vrot.slane %v2414, %v2421
          %vm2423 = vcmp.eq.s32.totalorder %v2418, 1
          %vm2424 = vcmp.eq.s32.totalorder %v2422, 1
          %2428 = vrot.lane.b32.xlu0 %v2410, 60
          %v2429 = vpop.permute.xlu0 %2428
          %2430 = vrot.lane.b32.xlu0 %v2411, 60
          %v2431 = vpop.permute.xlu0 %2430
          %2432 = vrot.lane.b32.xlu0 %v2412, 60
          %v2433 = vpop.permute.xlu0 %2432
          %v2434 = vsel %vm1478, %v2429, %v2431
          %v2435 = vsel %vm1478, %v2431, %v2433
          %v2438 = vsel %vm2423, %v2434, 0.0
          %v2439 = vsel %vm2424, %v2435, 0.0
          %v2440 = vadd.f32 %v2408, %v2438
          %v2441 = vadd.f32 %v2409, %v2439
          %v2442 = vld [vmem:[%s3] sm:$0xff]
          %2444 = vset.pattern.permute.xlu0 0
          %2445 = vperm.xlu0 %2444, %v2442
          %v2446 = vpop.permute.xlu0 %2445
          %v2448 = vadd.f32 %v2440, %v2446
          %v2449 = vadd.f32 %v2441, %v2446
          %2450 = vst [vmem:[%s225] sm:$0xff] %v2448
          %2451 = vst [vmem:[%s225 + $0x8] sm:$0xff] %v2449
        $region48: #{tpu_custom_call.1} parent=35 // pred_fallthru
          _
        %s2452 = sand.u32 %s134, 1
        %s2453 = scalar_lea.sflag [#allocation5], %s2452
        %s2454 = sand.u32 %s134, 1
        %s2455 = smul.addr %s2454, 16
        %s2456 = scalar_lea.vmem [#allocation4], %s2455
        // Predicated region
        $region49: #{tpu_custom_call.1} parent=35 // pred_check
          %p2457 = pneg %p144
        $region50: #{tpu_custom_call.1} parent=35 // pred_check_branch
          %2459 = sbr.rel (%p2457) target = $region52
        $region51: #{tpu_custom_call.1} parent=35 // pred_region
          %s2461 = ssub.s32 256, 256
          %2462 = vsyncadd %s2453, %s2461
          %s2463 = smul.addr %s22, 2
          %s2464 = smul.addr %s2463, 128
          %s2465 = scalar_lea.hbm %s4, %s2464
          %s2467 = sshll.u32 %s2456, 4
          %s2468 = int_to_ptr.vmem [resolvable:$true] %s2467
          %2470 = dma.vmem_to_hbm [thread:$0]  %s2468, 256, %s2465, %s2453
        $region52: #{tpu_custom_call.1} parent=35 // pred_fallthru
          _
      $region36: #{tpu_custom_call.1} parent=5 // pred_fallthru
        _
      %p2471 = scmp.le.s32.totalorder 2, %s13
      // Predicated region
      $region53: #{tpu_custom_call.1} parent=5 // pred_check
        %p2472 = pneg %p2471
      $region54: #{tpu_custom_call.1} parent=5 // pred_check_branch
        %2474 = sbr.rel (%p2472) target = $region56
      $region55: #{tpu_custom_call.1} parent=5 // pred_region
        %s2475 = ssub.s32 %s13, 2
        // Predicated region
        $region57: #{tpu_custom_call.1} parent=55 // pred_check
          %p2476 = pneg %p150
        $region58: #{tpu_custom_call.1} parent=55 // pred_check_branch
          %2478 = sbr.rel (%p2476) target = $region60
        $region59: #{tpu_custom_call.1} parent=55 // pred_region
          %s2479 = sand.u32 %s135, 1
          %s2480 = scalar_lea.sflag [#allocation5], %s2479
          %s2481 = sand.u32 %s135, 1
          %s2482 = smul.addr %s2481, 16
          %s2483 = scalar_lea.vmem [#allocation4], %s2482
          %2484 = dma.done %s2480, 256
        $region60: #{tpu_custom_call.1} parent=55 // pred_fallthru
          _
      $region56: #{tpu_custom_call.1} parent=5 // pred_fallthru
        _
    $region6: #{tpu_custom_call.1} parent=1 // loop_footer
      %s17 = sadd.s32 1, %s13
    $region7: #{tpu_custom_call.1} parent=1 // loop_footer_branch
      %12 = sbr.rel target = $region3
    $region8: #{tpu_custom_call.1} parent=1 // loop_exit
      _
    %2485 = vsyncpa [#allocation5], 1
    %s2486 = scalar_lea.sflag [#allocation5], 1
    %2487 = vsyncpa %s2486, 1

</llo_original>
